<compile_context>
chip_gen: v6e
topology: v6e:2x2x1
jax: 0.10.0
libtpu: 0.0.40
codegen_flags: <defaults>
</compile_context>

<pallas_src>
import math
import functools

import jax
import jax.numpy as jnp
from jax.experimental import pallas as pl
from jax.experimental.pallas import tpu as pltpu


# ----------------------------- in-kernel helpers -----------------------------

def _layernorm(z, g, b, eps):
    mu = jnp.mean(z, axis=-1, keepdims=True)
    var = jnp.mean((z - mu) ** 2, axis=-1, keepdims=True)
    return (z - mu) * jax.lax.rsqrt(var + eps) * g + b


def _softmax_rows(s):
    s = s - jnp.max(s, axis=-1, keepdims=True)
    p = jnp.exp(s)
    return p * pl.reciprocal(jnp.sum(p, axis=-1, keepdims=True), approx=True)


def _row(ref, i):
    # Static single-row slice -> (1, D); broadcasts cleanly against (S, D).
    return ref[pl.ds(i, 1), :]


def _bf16(x):
    return x.astype(jnp.bfloat16)


def _const_spec(a):
    n = a.ndim
    return pl.BlockSpec(a.shape, lambda i, _n=n: (0,) * _n)


# ------------------------------ fused kernel ----------------------------------

def _fused_kernel(rule_x_ref, stim_x_ref,
                  rule_we_ref, rule_bepe_ref,
                  stim_we_ref, stim_bepe_ref,
                  wqkv_ref, w3_ref, bln_ref,
                  xq_ref, xkv_ref, xb_ref,
                  wout_ref, bout_ref,
                  out_ref, lat_ref,
                  *, E, H, eps):
    f32 = jnp.float32

    # ------------- fused TransformerBlock (absolute PE, nhead=1) -------------
    # bln layout per block (10 rows): [bq, bk, bv, bo, bm1, bm2, g0, beta0, g1, beta1]
    def run_block(x, we_ref_, bepe_ref_, blk):
        scale = 1.0 / math.sqrt(E)
        b0 = 10 * blk
        # embedding linear + (embed-bias + positional encoding) pre-folded at init
        emb = jnp.dot(_bf16(x), we_ref_[...], preferred_element_type=f32) + bepe_ref_[...]
        # fused Q/K/V projection: one (S, 3E) matmul, static lane slices afterwards
        qkv = jnp.dot(_bf16(emb), wqkv_ref[blk], preferred_element_type=f32)
        q = qkv[:, 0:E] + _row(bln_ref, b0 + 0)
        k = qkv[:, E:2 * E] + _row(bln_ref, b0 + 1)
        v = qkv[:, 2 * E:3 * E] + _row(bln_ref, b0 + 2)
        s = jax.lax.dot_general(_bf16(q), _bf16(k), (((1,), (1,)), ((), ())),
                                preferred_element_type=f32) * scale
        p = _softmax_rows(s)
        attn = jnp.dot(_bf16(p), _bf16(v), preferred_element_type=f32)
        attn = (jnp.dot(_bf16(attn), w3_ref[3 * blk + 0], preferred_element_type=f32)
                + _row(bln_ref, b0 + 3))
        # layernorm0(attn + embedding)
        attn = _layernorm(attn + emb, _row(bln_ref, b0 + 6), _row(bln_ref, b0 + 7), eps)
        # MLP: Linear - ReLU - Linear - ReLU
        h = jnp.maximum(jnp.dot(_bf16(attn), w3_ref[3 * blk + 1],
                                preferred_element_type=f32) + _row(bln_ref, b0 + 4), 0.0)
        h = jnp.maximum(jnp.dot(_bf16(h), w3_ref[3 * blk + 2],
                                preferred_element_type=f32) + _row(bln_ref, b0 + 5), 0.0)
        # layernorm1(mlp + attn)
        return _layernorm(h + attn, _row(bln_ref, b0 + 8), _row(bln_ref, b0 + 9), eps)

    rule_out = run_block(rule_x_ref[0], rule_we_ref, rule_bepe_ref, 0)   # (Sr, E), VMEM-resident
    stim_out = run_block(stim_x_ref[0], stim_we_ref, stim_bepe_ref, 1)   # (Ss, E), VMEM-resident

    # ------------------- cross-attention tail (nhead=1) -----------------------
    # xq layout: [rule_wq, rule_wo, stim_wq, stim_wo];  xkv: [rule_wk, rule_wv, stim_wk, stim_wv]
    # xb layout: [r_bq, r_bk, r_bv, r_bo, s_bq, s_bk, s_bv, s_bo, ln_g, ln_b]
    xscale = 1.0 / math.sqrt(H)

    def run_xattn(lat, mem, blk):
        b0 = 4 * blk
        q = (jnp.dot(_bf16(lat), xq_ref[2 * blk + 0], preferred_element_type=f32)
             + _row(xb_ref, b0 + 0))                                            # (1, H)
        k = (jnp.dot(_bf16(mem), xkv_ref[2 * blk + 0], preferred_element_type=f32)
             + _row(xb_ref, b0 + 1))                                            # (Sm, H)
        v = (jnp.dot(_bf16(mem), xkv_ref[2 * blk + 1], preferred_element_type=f32)
             + _row(xb_ref, b0 + 2))                                            # (Sm, H)
        s = jax.lax.dot_general(_bf16(q), _bf16(k), (((1,), (1,)), ((), ())),
                                preferred_element_type=f32) * xscale            # (1, Sm)
        pr = _softmax_rows(s)
        a = jnp.dot(_bf16(pr), _bf16(v), preferred_element_type=f32)            # (1, H)
        return (jnp.dot(_bf16(a), xq_ref[2 * blk + 1], preferred_element_type=f32)
                + _row(xb_ref, b0 + 3))

    ln_g = _row(xb_ref, 8)
    ln_b = _row(xb_ref, 9)
    lat = jnp.zeros((1, H), f32)                       # initial latents (zeros, as in PyTorch)
    lat = _layernorm(run_xattn(lat, rule_out, 0) + lat, ln_g, ln_b, eps)
    lat = _layernorm(run_xattn(lat, stim_out, 1) + lat, ln_g, ln_b, eps)

    # w_out: Linear + LogSoftmax(dim=-1)
    logits = jnp.dot(_bf16(lat), wout_ref[...], preferred_element_type=f32) + bout_ref[...]
    sh = logits - jnp.max(logits, axis=-1, keepdims=True)
    logp = sh - jnp.log(jnp.sum(jnp.exp(sh), axis=-1, keepdims=True))

    out_ref[0] = logp.astype(out_ref.dtype)
    lat_ref[0] = lat.astype(lat_ref.dtype)


# ------------------------------- forward pass ---------------------------------

def transformer_cross_attn_forward(params, rule_inputs, stim_inputs):
    """Full TransformerCrossAttn.forward as a single fused pallas_call.

    rule_inputs: (B, seq_rule, num_rule_inputs)
    stim_inputs: (B, seq_stim, num_stim_inputs, 1)
    Returns (log-prob outputs (B, num_outputs), latents (B, num_hidden)).
    """
    assert stim_inputs.shape[3] == 1
    stim_x = stim_inputs[:, :, :, 0]
    B, Sr, Dr = rule_inputs.shape
    Ss, Ds = stim_x.shape[1], stim_x.shape[2]
    E = params["wqkv_stack"].shape[1]
    H = params["xq_stack"].shape[1]
    M = params["w_out_t"].shape[1]

    args = [rule_inputs, stim_x,
            params["rule_we_t"], params["rule_bepe"][:Sr],
            params["stim_we_t"], params["stim_bepe"][:Ss],
            params["wqkv_stack"], params["w3_stack"], params["bln_stack"],
            params["xq_stack"], params["xkv_stack"], params["xb_stack"],
            params["w_out_t"], params["b_out"]]

    in_specs = [pl.BlockSpec((1, Sr, Dr), lambda i: (i, 0, 0)),
                pl.BlockSpec((1, Ss, Ds), lambda i: (i, 0, 0))]
    in_specs += [_const_spec(a) for a in args[2:]]      # weights: full blocks, resident

    logp, lat = pl.pallas_call(
        functools.partial(_fused_kernel, E=E, H=H, eps=1e-5),
        out_shape=(jax.ShapeDtypeStruct((B, 1, M), jnp.float32),
                   jax.ShapeDtypeStruct((B, 1, H), jnp.float32)),
        grid=(B,),
        in_specs=in_specs,
        out_specs=(pl.BlockSpec((1, 1, M), lambda i: (i, 0, 0)),
                   pl.BlockSpec((1, 1, H), lambda i: (i, 0, 0))),
        compiler_params=pltpu.CompilerParams(dimension_semantics=("parallel",)),
    )(*args)
    return logp[:, 0, :], lat[:, 0, :]


# ------------------------- parameter construction ----------------------------

def positional_encoding(d_model, max_len):
    position = jnp.arange(max_len, dtype=jnp.float32)[:, None]
    div_term = jnp.exp(jnp.arange(0, d_model, 2, dtype=jnp.float32)
                       * (-math.log(10000.0) / d_model))
    pe = jnp.zeros((max_len, d_model), jnp.float32)
    pe = pe.at[:, 0::2].set(jnp.sin(position * div_term))
    pe = pe.at[:, 1::2].set(jnp.cos(position * div_term))
    return pe


def _rand(key, shape, scale=0.05):
    return jax.random.normal(key, shape, jnp.float32) * scale


def _init_block(key, dim_input, n_tokens, emb_dim):
    ks = jax.random.split(key, 14)
    we, be = _rand(ks[0], (dim_input, emb_dim)), _rand(ks[1], (emb_dim,))
    wq, bq = _rand(ks[2], (emb_dim, emb_dim)), _rand(ks[3], (emb_dim,))
    wk, bk = _rand(ks[4], (emb_dim, emb_dim)), _rand(ks[5], (emb_dim,))
    wv, bv = _rand(ks[6], (emb_dim, emb_dim)), _rand(ks[7], (emb_dim,))
    wo, bo = _rand(ks[8], (emb_dim, emb_dim)), _rand(ks[9], (emb_dim,))
    w1, b1 = _rand(ks[10], (emb_dim, emb_dim)), _rand(ks[11], (emb_dim,))
    w2, b2 = _rand(ks[12], (emb_dim, emb_dim)), _rand(ks[13], (emb_dim,))
    g0 = jnp.ones((emb_dim,), jnp.float32); z0 = jnp.zeros((emb_dim,), jnp.float32)
    g1 = jnp.ones((emb_dim,), jnp.float32); z1 = jnp.zeros((emb_dim,), jnp.float32)
    return {
        "we_t": we.astype(jnp.bfloat16),                                    # (Din, E) bf16
        "bepe": positional_encoding(emb_dim, n_tokens) + be[None, :],       # embed bias folded into PE
        "wqkv_t": jnp.concatenate([wq, wk, wv], 1).astype(jnp.bfloat16),    # (E, 3E) bf16
        "w3": jnp.stack([wo, w1, w2]).astype(jnp.bfloat16),                 # (3, E, E) bf16
        "bln": jnp.stack([bq, bk, bv, bo, b1, b2, g0, z0, g1, z1]),         # (10, E) f32
    }


def _init_xattn(key, num_hidden, emb_dim):
    ks = jax.random.split(key, 8)
    wq, bq = _rand(ks[0], (num_hidden, num_hidden)), _rand(ks[1], (num_hidden,))
    wk, bk = _rand(ks[2], (emb_dim, num_hidden)), _rand(ks[3], (num_hidden,))    # kdim = E
    wv, bv = _rand(ks[4], (emb_dim, num_hidden)), _rand(ks[5], (num_hidden,))    # vdim = E
    wo, bo = _rand(ks[6], (num_hidden, num_hidden)), _rand(ks[7], (num_hidden,))
    return wq, wk, wv, wo, (bq, bk, bv, bo)


def init_model(key, num_rule_inputs, num_stim_inputs, emb_dim, num_hidden,
               num_outputs, max_tokens_rule, max_tokens_stim):
    keys = jax.random.split(key, 5)
    rule_blk = _init_block(keys[0], num_rule_inputs, max_tokens_rule, emb_dim)
    stim_blk = _init_block(keys[1], num_stim_inputs, max_tokens_stim, emb_dim)
    r_wq, r_wk, r_wv, r_wo, r_b = _init_xattn(keys[2], num_hidden, emb_dim)
    s_wq, s_wk, s_wv, s_wo, s_b = _init_xattn(keys[3], num_hidden, emb_dim)
    kw, kb = jax.random.split(keys[4])
    w_out = _rand(kw, (num_hidden, num_outputs))
    b_out = _rand(kb, (1, num_outputs))
    ln_g = jnp.ones((num_hidden,), jnp.float32)
    ln_b = jnp.zeros((num_hidden,), jnp.float32)
    return {
        # per-block operands (shapes differ between rule / stim)
        "rule_we_t": rule_blk["we_t"], "rule_bepe": rule_blk["bepe"],
        "stim_we_t": stim_blk["we_t"], "stim_bepe": stim_blk["bepe"],
        # packed operands shared by both blocks (static blk index inside kernel)
        "wqkv_stack": jnp.stack([rule_blk["wqkv_t"], stim_blk["wqkv_t"]]),    # (2, E, 3E) bf16
        "w3_stack": jnp.concatenate([rule_blk["w3"], stim_blk["w3"]], 0),     # (6, E, E) bf16
        "bln_stack": jnp.concatenate([rule_blk["bln"], stim_blk["bln"]], 0),  # (20, E) f32
        # packed cross-attention tail
        "xq_stack": jnp.stack([r_wq, r_wo, s_wq, s_wo]).astype(jnp.bfloat16),   # (4, H, H)
        "xkv_stack": jnp.stack([r_wk, r_wv, s_wk, s_wv]).astype(jnp.bfloat16),  # (4, E, H)
        "xb_stack": jnp.stack(list(r_b) + list(s_b) + [ln_g, ln_b]),            # (10, H) f32
        "w_out_t": w_out.astype(jnp.bfloat16),                                  # (H, M) bf16
        "b_out": b_out,                                                         # (1, M) f32
    }


# ----------------------------------- main --------------------------------------

if __name__ == "__main__":
    # Small synthetic configuration consistent with the module:
    #   num_rule_inputs=12, num_stim_inputs=10, GRIDSIZE 3x3 -> max_tokens_stim=10,
    #   max_tree_depth=100 -> max_tokens_rule=100, embedding_dim=num_hidden=32,
    #   num_motor_decision_outputs=16, nhead=1.
    B = 2
    seq_rule, num_rule_inputs = 8, 12
    seq_stim, num_stim_inputs = 10, 10
    emb_dim = 32
    num_hidden = 32
    num_outputs = 16
    max_tokens_rule = 100
    max_tokens_stim = 3 * 3 + 1

    root = jax.random.PRNGKey(0)
    k_rule, k_stim, k_params = jax.random.split(root, 3)

    rule_inputs = jax.random.normal(k_rule, (B, seq_rule, num_rule_inputs), jnp.float32)
    stim_inputs = jax.random.normal(k_stim, (B, seq_stim, num_stim_inputs, 1), jnp.float32)

    params = init_model(k_params, num_rule_inputs, num_stim_inputs, emb_dim,
                        num_hidden, num_outputs, max_tokens_rule, max_tokens_stim)

    fwd = jax.jit(transformer_cross_attn_forward)
    outputs, latents = fwd(params, rule_inputs, stim_inputs)
    jax.block_until_ready((outputs, latents))

    assert outputs.shape == (B, num_outputs)
    assert latents.shape == (B, num_hidden)
    print("KERNEL_OK")
</pallas_src>

<mosaic_0001>
module attributes {stable_mosaic.version = 11 : i64} {
  func.func @_fused_kernel(%arg0: i32, %arg1: memref<1x8x12xf32, #tpu.memory_space<vmem>>, %arg2: memref<1x10x10xf32, #tpu.memory_space<vmem>>, %arg3: memref<12x32xbf16, #tpu.memory_space<vmem>>, %arg4: memref<8x32xf32, #tpu.memory_space<vmem>>, %arg5: memref<10x32xbf16, #tpu.memory_space<vmem>>, %arg6: memref<10x32xf32, #tpu.memory_space<vmem>>, %arg7: memref<2x32x96xbf16, #tpu.memory_space<vmem>>, %arg8: memref<6x32x32xbf16, #tpu.memory_space<vmem>>, %arg9: memref<20x32xf32, #tpu.memory_space<vmem>>, %arg10: memref<4x32x32xbf16, #tpu.memory_space<vmem>>, %arg11: memref<4x32x32xbf16, #tpu.memory_space<vmem>>, %arg12: memref<10x32xf32, #tpu.memory_space<vmem>>, %arg13: memref<32x16xbf16, #tpu.memory_space<vmem>>, %arg14: memref<1x16xf32, #tpu.memory_space<vmem>>, %arg15: memref<1x1x16xf32, #tpu.memory_space<vmem>>, %arg16: memref<1x1x32xf32, #tpu.memory_space<vmem>>) attributes {dimension_semantics = [#tpu.dimension_semantics<parallel>], iteration_bounds = array<i64: 2>, scalar_prefetch = 0 : i64, scratch_operands = 0 : i64, tpu.core_type = #tpu.core_type<tc>, window_params = [{transform_indices = @transform_0, window_bounds = array<i64: 1, 8, 12>}, {transform_indices = @transform_1, window_bounds = array<i64: 1, 10, 10>}, {pipeline_mode = #tpu.pipeline_mode<synchronous>, transform_indices = @transform_2, window_bounds = array<i64: 12, 32>}, {pipeline_mode = #tpu.pipeline_mode<synchronous>, transform_indices = @transform_3, window_bounds = array<i64: 8, 32>}, {pipeline_mode = #tpu.pipeline_mode<synchronous>, transform_indices = @transform_4, window_bounds = array<i64: 10, 32>}, {pipeline_mode = #tpu.pipeline_mode<synchronous>, transform_indices = @transform_5, window_bounds = array<i64: 10, 32>}, {pipeline_mode = #tpu.pipeline_mode<synchronous>, transform_indices = @transform_6, window_bounds = array<i64: 2, 32, 96>}, {pipeline_mode = #tpu.pipeline_mode<synchronous>, transform_indices = @transform_7, window_bounds = array<i64: 6, 32, 32>}, {pipeline_mode = #tpu.pipeline_mode<synchronous>, transform_indices = @transform_8, window_bounds = array<i64: 20, 32>}, {pipeline_mode = #tpu.pipeline_mode<synchronous>, transform_indices = @transform_9, window_bounds = array<i64: 4, 32, 32>}, {pipeline_mode = #tpu.pipeline_mode<synchronous>, transform_indices = @transform_10, window_bounds = array<i64: 4, 32, 32>}, {pipeline_mode = #tpu.pipeline_mode<synchronous>, transform_indices = @transform_11, window_bounds = array<i64: 10, 32>}, {pipeline_mode = #tpu.pipeline_mode<synchronous>, transform_indices = @transform_12, window_bounds = array<i64: 32, 16>}, {pipeline_mode = #tpu.pipeline_mode<synchronous>, transform_indices = @transform_13, window_bounds = array<i64: 1, 16>}, {transform_indices = @transform_14, window_bounds = array<i64: 1, 1, 16>}, {transform_indices = @transform_15, window_bounds = array<i64: 1, 1, 32>}]} {
    %c0 = arith.constant 0 : index
    %c0_0 = arith.constant 0 : index
    %c0_1 = arith.constant 0 : index
    %0 = vector.load %arg1[%c0, %c0_0, %c0_1] : memref<1x8x12xf32, #tpu.memory_space<vmem>>, vector<1x8x12xf32>
    %1 = vector.shape_cast %0 : vector<1x8x12xf32> to vector<8x12xf32>
    %2 = arith.truncf %1 : vector<8x12xf32> to vector<8x12xbf16>
    %c0_2 = arith.constant 0 : index
    %c0_3 = arith.constant 0 : index
    %3 = vector.load %arg3[%c0_2, %c0_3] : memref<12x32xbf16, #tpu.memory_space<vmem>>, vector<12x32xbf16>
    %cst = arith.constant dense<0.000000e+00> : vector<8x32xf32>
    %4 = tpu.matmul %2, %3, %cst {dimension_numbers = #tpu.dot_dimension_numbers<[1], [0], [0], [1], [0, 0, 1, 1], [], []>} : vector<8x12xbf16>, vector<12x32xbf16>, vector<8x32xf32> -> vector<8x32xf32>
    %c0_4 = arith.constant 0 : index
    %c0_5 = arith.constant 0 : index
    %5 = vector.load %arg4[%c0_4, %c0_5] : memref<8x32xf32, #tpu.memory_space<vmem>>, vector<8x32xf32>
    %6 = arith.addf %4, %5 : vector<8x32xf32>
    %7 = arith.truncf %6 : vector<8x32xf32> to vector<8x32xbf16>
    %c0_6 = arith.constant 0 : index
    %c0_7 = arith.constant 0 : index
    %c0_8 = arith.constant 0 : index
    %8 = vector.load %arg7[%c0_6, %c0_7, %c0_8] : memref<2x32x96xbf16, #tpu.memory_space<vmem>>, vector<1x32x96xbf16>
    %9 = vector.shape_cast %8 : vector<1x32x96xbf16> to vector<32x96xbf16>
    %cst_9 = arith.constant dense<0.000000e+00> : vector<8x96xf32>
    %10 = tpu.matmul %7, %9, %cst_9 {dimension_numbers = #tpu.dot_dimension_numbers<[1], [0], [0], [1], [0, 0, 1, 1], [], []>} : vector<8x32xbf16>, vector<32x96xbf16>, vector<8x96xf32> -> vector<8x96xf32>
    %11 = vector.extract_strided_slice %10 {offsets = [0, 0], sizes = [8, 32], strides = [1, 1]} : vector<8x96xf32> to vector<8x32xf32>
    %c0_10 = arith.constant 0 : index
    %c0_11 = arith.constant 0 : index
    %12 = vector.load %arg9[%c0_10, %c0_11] : memref<20x32xf32, #tpu.memory_space<vmem>>, vector<1x32xf32>
    %13 = vector.broadcast %12 : vector<1x32xf32> to vector<8x32xf32>
    %14 = arith.addf %11, %13 : vector<8x32xf32>
    %15 = vector.extract_strided_slice %10 {offsets = [0, 32], sizes = [8, 32], strides = [1, 1]} : vector<8x96xf32> to vector<8x32xf32>
    %c1 = arith.constant 1 : index
    %c0_12 = arith.constant 0 : index
    %16 = vector.load %arg9[%c1, %c0_12] : memref<20x32xf32, #tpu.memory_space<vmem>>, vector<1x32xf32>
    %17 = vector.broadcast %16 : vector<1x32xf32> to vector<8x32xf32>
    %18 = arith.addf %15, %17 : vector<8x32xf32>
    %19 = vector.extract_strided_slice %10 {offsets = [0, 64], sizes = [8, 32], strides = [1, 1]} : vector<8x96xf32> to vector<8x32xf32>
    %c2 = arith.constant 2 : index
    %c0_13 = arith.constant 0 : index
    %20 = vector.load %arg9[%c2, %c0_13] : memref<20x32xf32, #tpu.memory_space<vmem>>, vector<1x32xf32>
    %21 = vector.broadcast %20 : vector<1x32xf32> to vector<8x32xf32>
    %22 = arith.addf %19, %21 : vector<8x32xf32>
    %23 = arith.truncf %14 : vector<8x32xf32> to vector<8x32xbf16>
    %24 = arith.truncf %18 : vector<8x32xf32> to vector<8x32xbf16>
    %cst_14 = arith.constant dense<0.000000e+00> : vector<8x8xf32>
    %25 = tpu.matmul %23, %24, %cst_14 {dimension_numbers = #tpu.dot_dimension_numbers<[1], [1], [0], [0], [0, 0, 1, 0], [], []>} : vector<8x32xbf16>, vector<8x32xbf16>, vector<8x8xf32> -> vector<8x8xf32>
    %cst_15 = arith.constant 0.176776692 : f32
    %26 = vector.broadcast %cst_15 : f32 to vector<8x8xf32>
    %27 = arith.mulf %25, %26 : vector<8x8xf32>
    %cst_16 = arith.constant dense<0xFF800000> : vector<8xf32>
    %28 = vector.multi_reduction <maximumf>, %27, %cst_16 [1] : vector<8x8xf32> to vector<8xf32>
    %29 = vector.shape_cast %28 : vector<8xf32> to vector<8x1xf32>
    %30 = vector.broadcast %29 : vector<8x1xf32> to vector<8x8xf32>
    %31 = arith.subf %27, %30 : vector<8x8xf32>
    %32 = math.exp %31 : vector<8x8xf32>
    %cst_17 = arith.constant dense<0.000000e+00> : vector<8xf32>
    %33 = vector.multi_reduction <add>, %32, %cst_17 [1] : vector<8x8xf32> to vector<8xf32>
    %34 = vector.shape_cast %33 : vector<8xf32> to vector<8x1xf32>
    %35 = tpu.reciprocal %34 {approx = true} : vector<8x1xf32> -> vector<8x1xf32>
    %36 = vector.broadcast %35 : vector<8x1xf32> to vector<8x8xf32>
    %37 = arith.mulf %32, %36 : vector<8x8xf32>
    %38 = arith.truncf %37 : vector<8x8xf32> to vector<8x8xbf16>
    %39 = arith.truncf %22 : vector<8x32xf32> to vector<8x32xbf16>
    %cst_18 = arith.constant dense<0.000000e+00> : vector<8x32xf32>
    %40 = tpu.matmul %38, %39, %cst_18 {dimension_numbers = #tpu.dot_dimension_numbers<[1], [0], [0], [1], [0, 0, 1, 1], [], []>} : vector<8x8xbf16>, vector<8x32xbf16>, vector<8x32xf32> -> vector<8x32xf32>
    %41 = arith.truncf %40 : vector<8x32xf32> to vector<8x32xbf16>
    %c0_19 = arith.constant 0 : index
    %c0_20 = arith.constant 0 : index
    %c0_21 = arith.constant 0 : index
    %42 = vector.load %arg8[%c0_19, %c0_20, %c0_21] : memref<6x32x32xbf16, #tpu.memory_space<vmem>>, vector<1x32x32xbf16>
    %43 = vector.shape_cast %42 : vector<1x32x32xbf16> to vector<32x32xbf16>
    %cst_22 = arith.constant dense<0.000000e+00> : vector<8x32xf32>
    %44 = tpu.matmul %41, %43, %cst_22 {dimension_numbers = #tpu.dot_dimension_numbers<[1], [0], [0], [1], [0, 0, 1, 1], [], []>} : vector<8x32xbf16>, vector<32x32xbf16>, vector<8x32xf32> -> vector<8x32xf32>
    %c3 = arith.constant 3 : index
    %c0_23 = arith.constant 0 : index
    %45 = vector.load %arg9[%c3, %c0_23] : memref<20x32xf32, #tpu.memory_space<vmem>>, vector<1x32xf32>
    %46 = vector.broadcast %45 : vector<1x32xf32> to vector<8x32xf32>
    %47 = arith.addf %44, %46 : vector<8x32xf32>
    %48 = arith.addf %47, %6 : vector<8x32xf32>
    %c6 = arith.constant 6 : index
    %c0_24 = arith.constant 0 : index
    %49 = vector.load %arg9[%c6, %c0_24] : memref<20x32xf32, #tpu.memory_space<vmem>>, vector<1x32xf32>
    %c7 = arith.constant 7 : index
    %c0_25 = arith.constant 0 : index
    %50 = vector.load %arg9[%c7, %c0_25] : memref<20x32xf32, #tpu.memory_space<vmem>>, vector<1x32xf32>
    %cst_26 = arith.constant dense<0.000000e+00> : vector<8xf32>
    %51 = vector.multi_reduction <add>, %48, %cst_26 [1] : vector<8x32xf32> to vector<8xf32>
    %52 = vector.shape_cast %51 : vector<8xf32> to vector<8x1xf32>
    %cst_27 = arith.constant 3.200000e+01 : f32
    %53 = vector.broadcast %cst_27 : f32 to vector<8x1xf32>
    %54 = arith.divf %52, %53 : vector<8x1xf32>
    %55 = vector.broadcast %54 : vector<8x1xf32> to vector<8x32xf32>
    %56 = arith.subf %48, %55 : vector<8x32xf32>
    %57 = arith.mulf %56, %56 : vector<8x32xf32>
    %cst_28 = arith.constant dense<0.000000e+00> : vector<8xf32>
    %58 = vector.multi_reduction <add>, %57, %cst_28 [1] : vector<8x32xf32> to vector<8xf32>
    %59 = vector.shape_cast %58 : vector<8xf32> to vector<8x1xf32>
    %cst_29 = arith.constant 3.200000e+01 : f32
    %60 = vector.broadcast %cst_29 : f32 to vector<8x1xf32>
    %61 = arith.divf %59, %60 : vector<8x1xf32>
    %62 = vector.broadcast %54 : vector<8x1xf32> to vector<8x32xf32>
    %63 = arith.subf %48, %62 : vector<8x32xf32>
    %cst_30 = arith.constant 9.99999974E-6 : f32
    %64 = vector.broadcast %cst_30 : f32 to vector<8x1xf32>
    %65 = arith.addf %61, %64 : vector<8x1xf32>
    %66 = math.rsqrt %65 : vector<8x1xf32>
    %67 = vector.broadcast %66 : vector<8x1xf32> to vector<8x32xf32>
    %68 = arith.mulf %63, %67 : vector<8x32xf32>
    %69 = vector.broadcast %49 : vector<1x32xf32> to vector<8x32xf32>
    %70 = arith.mulf %68, %69 : vector<8x32xf32>
    %71 = vector.broadcast %50 : vector<1x32xf32> to vector<8x32xf32>
    %72 = arith.addf %70, %71 : vector<8x32xf32>
    %73 = arith.truncf %72 : vector<8x32xf32> to vector<8x32xbf16>
    %c1_31 = arith.constant 1 : index
    %c0_32 = arith.constant 0 : index
    %c0_33 = arith.constant 0 : index
    %74 = vector.load %arg8[%c1_31, %c0_32, %c0_33] : memref<6x32x32xbf16, #tpu.memory_space<vmem>>, vector<1x32x32xbf16>
    %75 = vector.shape_cast %74 : vector<1x32x32xbf16> to vector<32x32xbf16>
    %cst_34 = arith.constant dense<0.000000e+00> : vector<8x32xf32>
    %76 = tpu.matmul %73, %75, %cst_34 {dimension_numbers = #tpu.dot_dimension_numbers<[1], [0], [0], [1], [0, 0, 1, 1], [], []>} : vector<8x32xbf16>, vector<32x32xbf16>, vector<8x32xf32> -> vector<8x32xf32>
    %c4 = arith.constant 4 : index
    %c0_35 = arith.constant 0 : index
    %77 = vector.load %arg9[%c4, %c0_35] : memref<20x32xf32, #tpu.memory_space<vmem>>, vector<1x32xf32>
    %78 = vector.broadcast %77 : vector<1x32xf32> to vector<8x32xf32>
    %79 = arith.addf %76, %78 : vector<8x32xf32>
    %cst_36 = arith.constant 0.000000e+00 : f32
    %80 = vector.broadcast %cst_36 : f32 to vector<8x32xf32>
    %81 = arith.maximumf %79, %80 : vector<8x32xf32>
    %82 = arith.truncf %81 : vector<8x32xf32> to vector<8x32xbf16>
    %c2_37 = arith.constant 2 : index
    %c0_38 = arith.constant 0 : index
    %c0_39 = arith.constant 0 : index
    %83 = vector.load %arg8[%c2_37, %c0_38, %c0_39] : memref<6x32x32xbf16, #tpu.memory_space<vmem>>, vector<1x32x32xbf16>
    %84 = vector.shape_cast %83 : vector<1x32x32xbf16> to vector<32x32xbf16>
    %cst_40 = arith.constant dense<0.000000e+00> : vector<8x32xf32>
    %85 = tpu.matmul %82, %84, %cst_40 {dimension_numbers = #tpu.dot_dimension_numbers<[1], [0], [0], [1], [0, 0, 1, 1], [], []>} : vector<8x32xbf16>, vector<32x32xbf16>, vector<8x32xf32> -> vector<8x32xf32>
    %c5 = arith.constant 5 : index
    %c0_41 = arith.constant 0 : index
    %86 = vector.load %arg9[%c5, %c0_41] : memref<20x32xf32, #tpu.memory_space<vmem>>, vector<1x32xf32>
    %87 = vector.broadcast %86 : vector<1x32xf32> to vector<8x32xf32>
    %88 = arith.addf %85, %87 : vector<8x32xf32>
    %cst_42 = arith.constant 0.000000e+00 : f32
    %89 = vector.broadcast %cst_42 : f32 to vector<8x32xf32>
    %90 = arith.maximumf %88, %89 : vector<8x32xf32>
    %91 = arith.addf %90, %72 : vector<8x32xf32>
    %c8 = arith.constant 8 : index
    %c0_43 = arith.constant 0 : index
    %92 = vector.load %arg9[%c8, %c0_43] : memref<20x32xf32, #tpu.memory_space<vmem>>, vector<1x32xf32>
    %c9 = arith.constant 9 : index
    %c0_44 = arith.constant 0 : index
    %93 = vector.load %arg9[%c9, %c0_44] : memref<20x32xf32, #tpu.memory_space<vmem>>, vector<1x32xf32>
    %cst_45 = arith.constant dense<0.000000e+00> : vector<8xf32>
    %94 = vector.multi_reduction <add>, %91, %cst_45 [1] : vector<8x32xf32> to vector<8xf32>
    %95 = vector.shape_cast %94 : vector<8xf32> to vector<8x1xf32>
    %cst_46 = arith.constant 3.200000e+01 : f32
    %96 = vector.broadcast %cst_46 : f32 to vector<8x1xf32>
    %97 = arith.divf %95, %96 : vector<8x1xf32>
    %98 = vector.broadcast %97 : vector<8x1xf32> to vector<8x32xf32>
    %99 = arith.subf %91, %98 : vector<8x32xf32>
    %100 = arith.mulf %99, %99 : vector<8x32xf32>
    %cst_47 = arith.constant dense<0.000000e+00> : vector<8xf32>
    %101 = vector.multi_reduction <add>, %100, %cst_47 [1] : vector<8x32xf32> to vector<8xf32>
    %102 = vector.shape_cast %101 : vector<8xf32> to vector<8x1xf32>
    %cst_48 = arith.constant 3.200000e+01 : f32
    %103 = vector.broadcast %cst_48 : f32 to vector<8x1xf32>
    %104 = arith.divf %102, %103 : vector<8x1xf32>
    %105 = vector.broadcast %97 : vector<8x1xf32> to vector<8x32xf32>
    %106 = arith.subf %91, %105 : vector<8x32xf32>
    %cst_49 = arith.constant 9.99999974E-6 : f32
    %107 = vector.broadcast %cst_49 : f32 to vector<8x1xf32>
    %108 = arith.addf %104, %107 : vector<8x1xf32>
    %109 = math.rsqrt %108 : vector<8x1xf32>
    %110 = vector.broadcast %109 : vector<8x1xf32> to vector<8x32xf32>
    %111 = arith.mulf %106, %110 : vector<8x32xf32>
    %112 = vector.broadcast %92 : vector<1x32xf32> to vector<8x32xf32>
    %113 = arith.mulf %111, %112 : vector<8x32xf32>
    %114 = vector.broadcast %93 : vector<1x32xf32> to vector<8x32xf32>
    %115 = arith.addf %113, %114 : vector<8x32xf32>
    %c0_50 = arith.constant 0 : index
    %c0_51 = arith.constant 0 : index
    %c0_52 = arith.constant 0 : index
    %116 = vector.load %arg2[%c0_50, %c0_51, %c0_52] : memref<1x10x10xf32, #tpu.memory_space<vmem>>, vector<1x10x10xf32>
    %117 = vector.shape_cast %116 : vector<1x10x10xf32> to vector<10x10xf32>
    %118 = arith.truncf %117 : vector<10x10xf32> to vector<10x10xbf16>
    %c0_53 = arith.constant 0 : index
    %c0_54 = arith.constant 0 : index
    %119 = vector.load %arg5[%c0_53, %c0_54] : memref<10x32xbf16, #tpu.memory_space<vmem>>, vector<10x32xbf16>
    %cst_55 = arith.constant dense<0.000000e+00> : vector<10x32xf32>
    %120 = tpu.matmul %118, %119, %cst_55 {dimension_numbers = #tpu.dot_dimension_numbers<[1], [0], [0], [1], [0, 0, 1, 1], [], []>} : vector<10x10xbf16>, vector<10x32xbf16>, vector<10x32xf32> -> vector<10x32xf32>
    %c0_56 = arith.constant 0 : index
    %c0_57 = arith.constant 0 : index
    %121 = vector.load %arg6[%c0_56, %c0_57] : memref<10x32xf32, #tpu.memory_space<vmem>>, vector<10x32xf32>
    %122 = arith.addf %120, %121 : vector<10x32xf32>
    %123 = arith.truncf %122 : vector<10x32xf32> to vector<10x32xbf16>
    %c1_58 = arith.constant 1 : index
    %c0_59 = arith.constant 0 : index
    %c0_60 = arith.constant 0 : index
    %124 = vector.load %arg7[%c1_58, %c0_59, %c0_60] : memref<2x32x96xbf16, #tpu.memory_space<vmem>>, vector<1x32x96xbf16>
    %125 = vector.shape_cast %124 : vector<1x32x96xbf16> to vector<32x96xbf16>
    %cst_61 = arith.constant dense<0.000000e+00> : vector<10x96xf32>
    %126 = tpu.matmul %123, %125, %cst_61 {dimension_numbers = #tpu.dot_dimension_numbers<[1], [0], [0], [1], [0, 0, 1, 1], [], []>} : vector<10x32xbf16>, vector<32x96xbf16>, vector<10x96xf32> -> vector<10x96xf32>
    %127 = vector.extract_strided_slice %126 {offsets = [0, 0], sizes = [10, 32], strides = [1, 1]} : vector<10x96xf32> to vector<10x32xf32>
    %c10 = arith.constant 10 : index
    %c0_62 = arith.constant 0 : index
    %128 = vector.load %arg9[%c10, %c0_62] : memref<20x32xf32, #tpu.memory_space<vmem>>, vector<1x32xf32>
    %129 = vector.broadcast %128 : vector<1x32xf32> to vector<10x32xf32>
    %130 = arith.addf %127, %129 : vector<10x32xf32>
    %131 = vector.extract_strided_slice %126 {offsets = [0, 32], sizes = [10, 32], strides = [1, 1]} : vector<10x96xf32> to vector<10x32xf32>
    %c11 = arith.constant 11 : index
    %c0_63 = arith.constant 0 : index
    %132 = vector.load %arg9[%c11, %c0_63] : memref<20x32xf32, #tpu.memory_space<vmem>>, vector<1x32xf32>
    %133 = vector.broadcast %132 : vector<1x32xf32> to vector<10x32xf32>
    %134 = arith.addf %131, %133 : vector<10x32xf32>
    %135 = vector.extract_strided_slice %126 {offsets = [0, 64], sizes = [10, 32], strides = [1, 1]} : vector<10x96xf32> to vector<10x32xf32>
    %c12 = arith.constant 12 : index
    %c0_64 = arith.constant 0 : index
    %136 = vector.load %arg9[%c12, %c0_64] : memref<20x32xf32, #tpu.memory_space<vmem>>, vector<1x32xf32>
    %137 = vector.broadcast %136 : vector<1x32xf32> to vector<10x32xf32>
    %138 = arith.addf %135, %137 : vector<10x32xf32>
    %139 = arith.truncf %130 : vector<10x32xf32> to vector<10x32xbf16>
    %140 = arith.truncf %134 : vector<10x32xf32> to vector<10x32xbf16>
    %cst_65 = arith.constant dense<0.000000e+00> : vector<10x10xf32>
    %141 = tpu.matmul %139, %140, %cst_65 {dimension_numbers = #tpu.dot_dimension_numbers<[1], [1], [0], [0], [0, 0, 1, 0], [], []>} : vector<10x32xbf16>, vector<10x32xbf16>, vector<10x10xf32> -> vector<10x10xf32>
    %cst_66 = arith.constant 0.176776692 : f32
    %142 = vector.broadcast %cst_66 : f32 to vector<10x10xf32>
    %143 = arith.mulf %141, %142 : vector<10x10xf32>
    %cst_67 = arith.constant dense<0xFF800000> : vector<10xf32>
    %144 = vector.multi_reduction <maximumf>, %143, %cst_67 [1] : vector<10x10xf32> to vector<10xf32>
    %145 = vector.shape_cast %144 : vector<10xf32> to vector<10x1xf32>
    %146 = vector.broadcast %145 : vector<10x1xf32> to vector<10x10xf32>
    %147 = arith.subf %143, %146 : vector<10x10xf32>
    %148 = math.exp %147 : vector<10x10xf32>
    %cst_68 = arith.constant dense<0.000000e+00> : vector<10xf32>
    %149 = vector.multi_reduction <add>, %148, %cst_68 [1] : vector<10x10xf32> to vector<10xf32>
    %150 = vector.shape_cast %149 : vector<10xf32> to vector<10x1xf32>
    %151 = tpu.reciprocal %150 {approx = true} : vector<10x1xf32> -> vector<10x1xf32>
    %152 = vector.broadcast %151 : vector<10x1xf32> to vector<10x10xf32>
    %153 = arith.mulf %148, %152 : vector<10x10xf32>
    %154 = arith.truncf %153 : vector<10x10xf32> to vector<10x10xbf16>
    %155 = arith.truncf %138 : vector<10x32xf32> to vector<10x32xbf16>
    %cst_69 = arith.constant dense<0.000000e+00> : vector<10x32xf32>
    %156 = tpu.matmul %154, %155, %cst_69 {dimension_numbers = #tpu.dot_dimension_numbers<[1], [0], [0], [1], [0, 0, 1, 1], [], []>} : vector<10x10xbf16>, vector<10x32xbf16>, vector<10x32xf32> -> vector<10x32xf32>
    %157 = arith.truncf %156 : vector<10x32xf32> to vector<10x32xbf16>
    %c3_70 = arith.constant 3 : index
    %c0_71 = arith.constant 0 : index
    %c0_72 = arith.constant 0 : index
    %158 = vector.load %arg8[%c3_70, %c0_71, %c0_72] : memref<6x32x32xbf16, #tpu.memory_space<vmem>>, vector<1x32x32xbf16>
    %159 = vector.shape_cast %158 : vector<1x32x32xbf16> to vector<32x32xbf16>
    %cst_73 = arith.constant dense<0.000000e+00> : vector<10x32xf32>
    %160 = tpu.matmul %157, %159, %cst_73 {dimension_numbers = #tpu.dot_dimension_numbers<[1], [0], [0], [1], [0, 0, 1, 1], [], []>} : vector<10x32xbf16>, vector<32x32xbf16>, vector<10x32xf32> -> vector<10x32xf32>
    %c13 = arith.constant 13 : index
    %c0_74 = arith.constant 0 : index
    %161 = vector.load %arg9[%c13, %c0_74] : memref<20x32xf32, #tpu.memory_space<vmem>>, vector<1x32xf32>
    %162 = vector.broadcast %161 : vector<1x32xf32> to vector<10x32xf32>
    %163 = arith.addf %160, %162 : vector<10x32xf32>
    %164 = arith.addf %163, %122 : vector<10x32xf32>
    %c16 = arith.constant 16 : index
    %c0_75 = arith.constant 0 : index
    %165 = vector.load %arg9[%c16, %c0_75] : memref<20x32xf32, #tpu.memory_space<vmem>>, vector<1x32xf32>
    %c17 = arith.constant 17 : index
    %c0_76 = arith.constant 0 : index
    %166 = vector.load %arg9[%c17, %c0_76] : memref<20x32xf32, #tpu.memory_space<vmem>>, vector<1x32xf32>
    %cst_77 = arith.constant dense<0.000000e+00> : vector<10xf32>
    %167 = vector.multi_reduction <add>, %164, %cst_77 [1] : vector<10x32xf32> to vector<10xf32>
    %168 = vector.shape_cast %167 : vector<10xf32> to vector<10x1xf32>
    %cst_78 = arith.constant 3.200000e+01 : f32
    %169 = vector.broadcast %cst_78 : f32 to vector<10x1xf32>
    %170 = arith.divf %168, %169 : vector<10x1xf32>
    %171 = vector.broadcast %170 : vector<10x1xf32> to vector<10x32xf32>
    %172 = arith.subf %164, %171 : vector<10x32xf32>
    %173 = arith.mulf %172, %172 : vector<10x32xf32>
    %cst_79 = arith.constant dense<0.000000e+00> : vector<10xf32>
    %174 = vector.multi_reduction <add>, %173, %cst_79 [1] : vector<10x32xf32> to vector<10xf32>
    %175 = vector.shape_cast %174 : vector<10xf32> to vector<10x1xf32>
    %cst_80 = arith.constant 3.200000e+01 : f32
    %176 = vector.broadcast %cst_80 : f32 to vector<10x1xf32>
    %177 = arith.divf %175, %176 : vector<10x1xf32>
    %178 = vector.broadcast %170 : vector<10x1xf32> to vector<10x32xf32>
    %179 = arith.subf %164, %178 : vector<10x32xf32>
    %cst_81 = arith.constant 9.99999974E-6 : f32
    %180 = vector.broadcast %cst_81 : f32 to vector<10x1xf32>
    %181 = arith.addf %177, %180 : vector<10x1xf32>
    %182 = math.rsqrt %181 : vector<10x1xf32>
    %183 = vector.broadcast %182 : vector<10x1xf32> to vector<10x32xf32>
    %184 = arith.mulf %179, %183 : vector<10x32xf32>
    %185 = vector.broadcast %165 : vector<1x32xf32> to vector<10x32xf32>
    %186 = arith.mulf %184, %185 : vector<10x32xf32>
    %187 = vector.broadcast %166 : vector<1x32xf32> to vector<10x32xf32>
    %188 = arith.addf %186, %187 : vector<10x32xf32>
    %189 = arith.truncf %188 : vector<10x32xf32> to vector<10x32xbf16>
    %c4_82 = arith.constant 4 : index
    %c0_83 = arith.constant 0 : index
    %c0_84 = arith.constant 0 : index
    %190 = vector.load %arg8[%c4_82, %c0_83, %c0_84] : memref<6x32x32xbf16, #tpu.memory_space<vmem>>, vector<1x32x32xbf16>
    %191 = vector.shape_cast %190 : vector<1x32x32xbf16> to vector<32x32xbf16>
    %cst_85 = arith.constant dense<0.000000e+00> : vector<10x32xf32>
    %192 = tpu.matmul %189, %191, %cst_85 {dimension_numbers = #tpu.dot_dimension_numbers<[1], [0], [0], [1], [0, 0, 1, 1], [], []>} : vector<10x32xbf16>, vector<32x32xbf16>, vector<10x32xf32> -> vector<10x32xf32>
    %c14 = arith.constant 14 : index
    %c0_86 = arith.constant 0 : index
    %193 = vector.load %arg9[%c14, %c0_86] : memref<20x32xf32, #tpu.memory_space<vmem>>, vector<1x32xf32>
    %194 = vector.broadcast %193 : vector<1x32xf32> to vector<10x32xf32>
    %195 = arith.addf %192, %194 : vector<10x32xf32>
    %cst_87 = arith.constant 0.000000e+00 : f32
    %196 = vector.broadcast %cst_87 : f32 to vector<10x32xf32>
    %197 = arith.maximumf %195, %196 : vector<10x32xf32>
    %198 = arith.truncf %197 : vector<10x32xf32> to vector<10x32xbf16>
    %c5_88 = arith.constant 5 : index
    %c0_89 = arith.constant 0 : index
    %c0_90 = arith.constant 0 : index
    %199 = vector.load %arg8[%c5_88, %c0_89, %c0_90] : memref<6x32x32xbf16, #tpu.memory_space<vmem>>, vector<1x32x32xbf16>
    %200 = vector.shape_cast %199 : vector<1x32x32xbf16> to vector<32x32xbf16>
    %cst_91 = arith.constant dense<0.000000e+00> : vector<10x32xf32>
    %201 = tpu.matmul %198, %200, %cst_91 {dimension_numbers = #tpu.dot_dimension_numbers<[1], [0], [0], [1], [0, 0, 1, 1], [], []>} : vector<10x32xbf16>, vector<32x32xbf16>, vector<10x32xf32> -> vector<10x32xf32>
    %c15 = arith.constant 15 : index
    %c0_92 = arith.constant 0 : index
    %202 = vector.load %arg9[%c15, %c0_92] : memref<20x32xf32, #tpu.memory_space<vmem>>, vector<1x32xf32>
    %203 = vector.broadcast %202 : vector<1x32xf32> to vector<10x32xf32>
    %204 = arith.addf %201, %203 : vector<10x32xf32>
    %cst_93 = arith.constant 0.000000e+00 : f32
    %205 = vector.broadcast %cst_93 : f32 to vector<10x32xf32>
    %206 = arith.maximumf %204, %205 : vector<10x32xf32>
    %207 = arith.addf %206, %188 : vector<10x32xf32>
    %c18 = arith.constant 18 : index
    %c0_94 = arith.constant 0 : index
    %208 = vector.load %arg9[%c18, %c0_94] : memref<20x32xf32, #tpu.memory_space<vmem>>, vector<1x32xf32>
    %c19 = arith.constant 19 : index
    %c0_95 = arith.constant 0 : index
    %209 = vector.load %arg9[%c19, %c0_95] : memref<20x32xf32, #tpu.memory_space<vmem>>, vector<1x32xf32>
    %cst_96 = arith.constant dense<0.000000e+00> : vector<10xf32>
    %210 = vector.multi_reduction <add>, %207, %cst_96 [1] : vector<10x32xf32> to vector<10xf32>
    %211 = vector.shape_cast %210 : vector<10xf32> to vector<10x1xf32>
    %cst_97 = arith.constant 3.200000e+01 : f32
    %212 = vector.broadcast %cst_97 : f32 to vector<10x1xf32>
    %213 = arith.divf %211, %212 : vector<10x1xf32>
    %214 = vector.broadcast %213 : vector<10x1xf32> to vector<10x32xf32>
    %215 = arith.subf %207, %214 : vector<10x32xf32>
    %216 = arith.mulf %215, %215 : vector<10x32xf32>
    %cst_98 = arith.constant dense<0.000000e+00> : vector<10xf32>
    %217 = vector.multi_reduction <add>, %216, %cst_98 [1] : vector<10x32xf32> to vector<10xf32>
    %218 = vector.shape_cast %217 : vector<10xf32> to vector<10x1xf32>
    %cst_99 = arith.constant 3.200000e+01 : f32
    %219 = vector.broadcast %cst_99 : f32 to vector<10x1xf32>
    %220 = arith.divf %218, %219 : vector<10x1xf32>
    %221 = vector.broadcast %213 : vector<10x1xf32> to vector<10x32xf32>
    %222 = arith.subf %207, %221 : vector<10x32xf32>
    %cst_100 = arith.constant 9.99999974E-6 : f32
    %223 = vector.broadcast %cst_100 : f32 to vector<10x1xf32>
    %224 = arith.addf %220, %223 : vector<10x1xf32>
    %225 = math.rsqrt %224 : vector<10x1xf32>
    %226 = vector.broadcast %225 : vector<10x1xf32> to vector<10x32xf32>
    %227 = arith.mulf %222, %226 : vector<10x32xf32>
    %228 = vector.broadcast %208 : vector<1x32xf32> to vector<10x32xf32>
    %229 = arith.mulf %227, %228 : vector<10x32xf32>
    %230 = vector.broadcast %209 : vector<1x32xf32> to vector<10x32xf32>
    %231 = arith.addf %229, %230 : vector<10x32xf32>
    %c8_101 = arith.constant 8 : index
    %c0_102 = arith.constant 0 : index
    %232 = vector.load %arg12[%c8_101, %c0_102] : memref<10x32xf32, #tpu.memory_space<vmem>>, vector<1x32xf32>
    %c9_103 = arith.constant 9 : index
    %c0_104 = arith.constant 0 : index
    %233 = vector.load %arg12[%c9_103, %c0_104] : memref<10x32xf32, #tpu.memory_space<vmem>>, vector<1x32xf32>
    %cst_105 = arith.constant 0.000000e+00 : f32
    %234 = vector.broadcast %cst_105 : f32 to vector<1x32xf32>
    %235 = arith.truncf %234 : vector<1x32xf32> to vector<1x32xbf16>
    %c0_106 = arith.constant 0 : index
    %c0_107 = arith.constant 0 : index
    %c0_108 = arith.constant 0 : index
    %236 = vector.load %arg10[%c0_106, %c0_107, %c0_108] : memref<4x32x32xbf16, #tpu.memory_space<vmem>>, vector<1x32x32xbf16>
    %237 = vector.shape_cast %236 : vector<1x32x32xbf16> to vector<32x32xbf16>
    %cst_109 = arith.constant dense<0.000000e+00> : vector<1x32xf32>
    %238 = tpu.matmul %235, %237, %cst_109 {dimension_numbers = #tpu.dot_dimension_numbers<[1], [0], [0], [1], [0, 0, 1, 1], [], []>} : vector<1x32xbf16>, vector<32x32xbf16>, vector<1x32xf32> -> vector<1x32xf32>
    %c0_110 = arith.constant 0 : index
    %c0_111 = arith.constant 0 : index
    %239 = vector.load %arg12[%c0_110, %c0_111] : memref<10x32xf32, #tpu.memory_space<vmem>>, vector<1x32xf32>
    %240 = arith.addf %238, %239 : vector<1x32xf32>
    %241 = arith.truncf %115 : vector<8x32xf32> to vector<8x32xbf16>
    %c0_112 = arith.constant 0 : index
    %c0_113 = arith.constant 0 : index
    %c0_114 = arith.constant 0 : index
    %242 = vector.load %arg11[%c0_112, %c0_113, %c0_114] : memref<4x32x32xbf16, #tpu.memory_space<vmem>>, vector<1x32x32xbf16>
    %243 = vector.shape_cast %242 : vector<1x32x32xbf16> to vector<32x32xbf16>
    %cst_115 = arith.constant dense<0.000000e+00> : vector<8x32xf32>
    %244 = tpu.matmul %241, %243, %cst_115 {dimension_numbers = #tpu.dot_dimension_numbers<[1], [0], [0], [1], [0, 0, 1, 1], [], []>} : vector<8x32xbf16>, vector<32x32xbf16>, vector<8x32xf32> -> vector<8x32xf32>
    %c1_116 = arith.constant 1 : index
    %c0_117 = arith.constant 0 : index
    %245 = vector.load %arg12[%c1_116, %c0_117] : memref<10x32xf32, #tpu.memory_space<vmem>>, vector<1x32xf32>
    %246 = vector.broadcast %245 : vector<1x32xf32> to vector<8x32xf32>
    %247 = arith.addf %244, %246 : vector<8x32xf32>
    %248 = arith.truncf %115 : vector<8x32xf32> to vector<8x32xbf16>
    %c1_118 = arith.constant 1 : index
    %c0_119 = arith.constant 0 : index
    %c0_120 = arith.constant 0 : index
    %249 = vector.load %arg11[%c1_118, %c0_119, %c0_120] : memref<4x32x32xbf16, #tpu.memory_space<vmem>>, vector<1x32x32xbf16>
    %250 = vector.shape_cast %249 : vector<1x32x32xbf16> to vector<32x32xbf16>
    %cst_121 = arith.constant dense<0.000000e+00> : vector<8x32xf32>
    %251 = tpu.matmul %248, %250, %cst_121 {dimension_numbers = #tpu.dot_dimension_numbers<[1], [0], [0], [1], [0, 0, 1, 1], [], []>} : vector<8x32xbf16>, vector<32x32xbf16>, vector<8x32xf32> -> vector<8x32xf32>
    %c2_122 = arith.constant 2 : index
    %c0_123 = arith.constant 0 : index
    %252 = vector.load %arg12[%c2_122, %c0_123] : memref<10x32xf32, #tpu.memory_space<vmem>>, vector<1x32xf32>
    %253 = vector.broadcast %252 : vector<1x32xf32> to vector<8x32xf32>
    %254 = arith.addf %251, %253 : vector<8x32xf32>
    %255 = arith.truncf %240 : vector<1x32xf32> to vector<1x32xbf16>
    %256 = arith.truncf %247 : vector<8x32xf32> to vector<8x32xbf16>
    %cst_124 = arith.constant dense<0.000000e+00> : vector<1x8xf32>
    %257 = tpu.matmul %255, %256, %cst_124 {dimension_numbers = #tpu.dot_dimension_numbers<[1], [1], [0], [0], [0, 0, 1, 0], [], []>} : vector<1x32xbf16>, vector<8x32xbf16>, vector<1x8xf32> -> vector<1x8xf32>
    %cst_125 = arith.constant 0.176776692 : f32
    %258 = vector.broadcast %cst_125 : f32 to vector<1x8xf32>
    %259 = arith.mulf %257, %258 : vector<1x8xf32>
    %cst_126 = arith.constant dense<0xFF800000> : vector<1xf32>
    %260 = vector.multi_reduction <maximumf>, %259, %cst_126 [1] : vector<1x8xf32> to vector<1xf32>
    %261 = vector.shape_cast %260 : vector<1xf32> to vector<1x1xf32>
    %262 = vector.broadcast %261 : vector<1x1xf32> to vector<1x8xf32>
    %263 = arith.subf %259, %262 : vector<1x8xf32>
    %264 = math.exp %263 : vector<1x8xf32>
    %cst_127 = arith.constant dense<0.000000e+00> : vector<1xf32>
    %265 = vector.multi_reduction <add>, %264, %cst_127 [1] : vector<1x8xf32> to vector<1xf32>
    %266 = vector.shape_cast %265 : vector<1xf32> to vector<1x1xf32>
    %267 = tpu.reciprocal %266 {approx = true} : vector<1x1xf32> -> vector<1x1xf32>
    %268 = vector.broadcast %267 : vector<1x1xf32> to vector<1x8xf32>
    %269 = arith.mulf %264, %268 : vector<1x8xf32>
    %270 = arith.truncf %269 : vector<1x8xf32> to vector<1x8xbf16>
    %271 = arith.truncf %254 : vector<8x32xf32> to vector<8x32xbf16>
    %cst_128 = arith.constant dense<0.000000e+00> : vector<1x32xf32>
    %272 = tpu.matmul %270, %271, %cst_128 {dimension_numbers = #tpu.dot_dimension_numbers<[1], [0], [0], [1], [0, 0, 1, 1], [], []>} : vector<1x8xbf16>, vector<8x32xbf16>, vector<1x32xf32> -> vector<1x32xf32>
    %273 = arith.truncf %272 : vector<1x32xf32> to vector<1x32xbf16>
    %c1_129 = arith.constant 1 : index
    %c0_130 = arith.constant 0 : index
    %c0_131 = arith.constant 0 : index
    %274 = vector.load %arg10[%c1_129, %c0_130, %c0_131] : memref<4x32x32xbf16, #tpu.memory_space<vmem>>, vector<1x32x32xbf16>
    %275 = vector.shape_cast %274 : vector<1x32x32xbf16> to vector<32x32xbf16>
    %cst_132 = arith.constant dense<0.000000e+00> : vector<1x32xf32>
    %276 = tpu.matmul %273, %275, %cst_132 {dimension_numbers = #tpu.dot_dimension_numbers<[1], [0], [0], [1], [0, 0, 1, 1], [], []>} : vector<1x32xbf16>, vector<32x32xbf16>, vector<1x32xf32> -> vector<1x32xf32>
    %c3_133 = arith.constant 3 : index
    %c0_134 = arith.constant 0 : index
    %277 = vector.load %arg12[%c3_133, %c0_134] : memref<10x32xf32, #tpu.memory_space<vmem>>, vector<1x32xf32>
    %278 = arith.addf %276, %277 : vector<1x32xf32>
    %279 = arith.addf %278, %234 : vector<1x32xf32>
    %cst_135 = arith.constant dense<0.000000e+00> : vector<1xf32>
    %280 = vector.multi_reduction <add>, %279, %cst_135 [1] : vector<1x32xf32> to vector<1xf32>
    %281 = vector.shape_cast %280 : vector<1xf32> to vector<1x1xf32>
    %cst_136 = arith.constant 3.200000e+01 : f32
    %282 = vector.broadcast %cst_136 : f32 to vector<1x1xf32>
    %283 = arith.divf %281, %282 : vector<1x1xf32>
    %284 = vector.broadcast %283 : vector<1x1xf32> to vector<1x32xf32>
    %285 = arith.subf %279, %284 : vector<1x32xf32>
    %286 = arith.mulf %285, %285 : vector<1x32xf32>
    %cst_137 = arith.constant dense<0.000000e+00> : vector<1xf32>
    %287 = vector.multi_reduction <add>, %286, %cst_137 [1] : vector<1x32xf32> to vector<1xf32>
    %288 = vector.shape_cast %287 : vector<1xf32> to vector<1x1xf32>
    %cst_138 = arith.constant 3.200000e+01 : f32
    %289 = vector.broadcast %cst_138 : f32 to vector<1x1xf32>
    %290 = arith.divf %288, %289 : vector<1x1xf32>
    %291 = vector.broadcast %283 : vector<1x1xf32> to vector<1x32xf32>
    %292 = arith.subf %279, %291 : vector<1x32xf32>
    %cst_139 = arith.constant 9.99999974E-6 : f32
    %293 = vector.broadcast %cst_139 : f32 to vector<1x1xf32>
    %294 = arith.addf %290, %293 : vector<1x1xf32>
    %295 = math.rsqrt %294 : vector<1x1xf32>
    %296 = vector.broadcast %295 : vector<1x1xf32> to vector<1x32xf32>
    %297 = arith.mulf %292, %296 : vector<1x32xf32>
    %298 = arith.mulf %297, %232 : vector<1x32xf32>
    %299 = arith.addf %298, %233 : vector<1x32xf32>
    %300 = arith.truncf %299 : vector<1x32xf32> to vector<1x32xbf16>
    %c2_140 = arith.constant 2 : index
    %c0_141 = arith.constant 0 : index
    %c0_142 = arith.constant 0 : index
    %301 = vector.load %arg10[%c2_140, %c0_141, %c0_142] : memref<4x32x32xbf16, #tpu.memory_space<vmem>>, vector<1x32x32xbf16>
    %302 = vector.shape_cast %301 : vector<1x32x32xbf16> to vector<32x32xbf16>
    %cst_143 = arith.constant dense<0.000000e+00> : vector<1x32xf32>
    %303 = tpu.matmul %300, %302, %cst_143 {dimension_numbers = #tpu.dot_dimension_numbers<[1], [0], [0], [1], [0, 0, 1, 1], [], []>} : vector<1x32xbf16>, vector<32x32xbf16>, vector<1x32xf32> -> vector<1x32xf32>
    %c4_144 = arith.constant 4 : index
    %c0_145 = arith.constant 0 : index
    %304 = vector.load %arg12[%c4_144, %c0_145] : memref<10x32xf32, #tpu.memory_space<vmem>>, vector<1x32xf32>
    %305 = arith.addf %303, %304 : vector<1x32xf32>
    %306 = arith.truncf %231 : vector<10x32xf32> to vector<10x32xbf16>
    %c2_146 = arith.constant 2 : index
    %c0_147 = arith.constant 0 : index
    %c0_148 = arith.constant 0 : index
    %307 = vector.load %arg11[%c2_146, %c0_147, %c0_148] : memref<4x32x32xbf16, #tpu.memory_space<vmem>>, vector<1x32x32xbf16>
    %308 = vector.shape_cast %307 : vector<1x32x32xbf16> to vector<32x32xbf16>
    %cst_149 = arith.constant dense<0.000000e+00> : vector<10x32xf32>
    %309 = tpu.matmul %306, %308, %cst_149 {dimension_numbers = #tpu.dot_dimension_numbers<[1], [0], [0], [1], [0, 0, 1, 1], [], []>} : vector<10x32xbf16>, vector<32x32xbf16>, vector<10x32xf32> -> vector<10x32xf32>
    %c5_150 = arith.constant 5 : index
    %c0_151 = arith.constant 0 : index
    %310 = vector.load %arg12[%c5_150, %c0_151] : memref<10x32xf32, #tpu.memory_space<vmem>>, vector<1x32xf32>
    %311 = vector.broadcast %310 : vector<1x32xf32> to vector<10x32xf32>
    %312 = arith.addf %309, %311 : vector<10x32xf32>
    %313 = arith.truncf %231 : vector<10x32xf32> to vector<10x32xbf16>
    %c3_152 = arith.constant 3 : index
    %c0_153 = arith.constant 0 : index
    %c0_154 = arith.constant 0 : index
    %314 = vector.load %arg11[%c3_152, %c0_153, %c0_154] : memref<4x32x32xbf16, #tpu.memory_space<vmem>>, vector<1x32x32xbf16>
    %315 = vector.shape_cast %314 : vector<1x32x32xbf16> to vector<32x32xbf16>
    %cst_155 = arith.constant dense<0.000000e+00> : vector<10x32xf32>
    %316 = tpu.matmul %313, %315, %cst_155 {dimension_numbers = #tpu.dot_dimension_numbers<[1], [0], [0], [1], [0, 0, 1, 1], [], []>} : vector<10x32xbf16>, vector<32x32xbf16>, vector<10x32xf32> -> vector<10x32xf32>
    %c6_156 = arith.constant 6 : index
    %c0_157 = arith.constant 0 : index
    %317 = vector.load %arg12[%c6_156, %c0_157] : memref<10x32xf32, #tpu.memory_space<vmem>>, vector<1x32xf32>
    %318 = vector.broadcast %317 : vector<1x32xf32> to vector<10x32xf32>
    %319 = arith.addf %316, %318 : vector<10x32xf32>
    %320 = arith.truncf %305 : vector<1x32xf32> to vector<1x32xbf16>
    %321 = arith.truncf %312 : vector<10x32xf32> to vector<10x32xbf16>
    %cst_158 = arith.constant dense<0.000000e+00> : vector<1x10xf32>
    %322 = tpu.matmul %320, %321, %cst_158 {dimension_numbers = #tpu.dot_dimension_numbers<[1], [1], [0], [0], [0, 0, 1, 0], [], []>} : vector<1x32xbf16>, vector<10x32xbf16>, vector<1x10xf32> -> vector<1x10xf32>
    %cst_159 = arith.constant 0.176776692 : f32
    %323 = vector.broadcast %cst_159 : f32 to vector<1x10xf32>
    %324 = arith.mulf %322, %323 : vector<1x10xf32>
    %cst_160 = arith.constant dense<0xFF800000> : vector<1xf32>
    %325 = vector.multi_reduction <maximumf>, %324, %cst_160 [1] : vector<1x10xf32> to vector<1xf32>
    %326 = vector.shape_cast %325 : vector<1xf32> to vector<1x1xf32>
    %327 = vector.broadcast %326 : vector<1x1xf32> to vector<1x10xf32>
    %328 = arith.subf %324, %327 : vector<1x10xf32>
    %329 = math.exp %328 : vector<1x10xf32>
    %cst_161 = arith.constant dense<0.000000e+00> : vector<1xf32>
    %330 = vector.multi_reduction <add>, %329, %cst_161 [1] : vector<1x10xf32> to vector<1xf32>
    %331 = vector.shape_cast %330 : vector<1xf32> to vector<1x1xf32>
    %332 = tpu.reciprocal %331 {approx = true} : vector<1x1xf32> -> vector<1x1xf32>
    %333 = vector.broadcast %332 : vector<1x1xf32> to vector<1x10xf32>
    %334 = arith.mulf %329, %333 : vector<1x10xf32>
    %335 = arith.truncf %334 : vector<1x10xf32> to vector<1x10xbf16>
    %336 = arith.truncf %319 : vector<10x32xf32> to vector<10x32xbf16>
    %cst_162 = arith.constant dense<0.000000e+00> : vector<1x32xf32>
    %337 = tpu.matmul %335, %336, %cst_162 {dimension_numbers = #tpu.dot_dimension_numbers<[1], [0], [0], [1], [0, 0, 1, 1], [], []>} : vector<1x10xbf16>, vector<10x32xbf16>, vector<1x32xf32> -> vector<1x32xf32>
    %338 = arith.truncf %337 : vector<1x32xf32> to vector<1x32xbf16>
    %c3_163 = arith.constant 3 : index
    %c0_164 = arith.constant 0 : index
    %c0_165 = arith.constant 0 : index
    %339 = vector.load %arg10[%c3_163, %c0_164, %c0_165] : memref<4x32x32xbf16, #tpu.memory_space<vmem>>, vector<1x32x32xbf16>
    %340 = vector.shape_cast %339 : vector<1x32x32xbf16> to vector<32x32xbf16>
    %cst_166 = arith.constant dense<0.000000e+00> : vector<1x32xf32>
    %341 = tpu.matmul %338, %340, %cst_166 {dimension_numbers = #tpu.dot_dimension_numbers<[1], [0], [0], [1], [0, 0, 1, 1], [], []>} : vector<1x32xbf16>, vector<32x32xbf16>, vector<1x32xf32> -> vector<1x32xf32>
    %c7_167 = arith.constant 7 : index
    %c0_168 = arith.constant 0 : index
    %342 = vector.load %arg12[%c7_167, %c0_168] : memref<10x32xf32, #tpu.memory_space<vmem>>, vector<1x32xf32>
    %343 = arith.addf %341, %342 : vector<1x32xf32>
    %344 = arith.addf %343, %299 : vector<1x32xf32>
    %cst_169 = arith.constant dense<0.000000e+00> : vector<1xf32>
    %345 = vector.multi_reduction <add>, %344, %cst_169 [1] : vector<1x32xf32> to vector<1xf32>
    %346 = vector.shape_cast %345 : vector<1xf32> to vector<1x1xf32>
    %cst_170 = arith.constant 3.200000e+01 : f32
    %347 = vector.broadcast %cst_170 : f32 to vector<1x1xf32>
    %348 = arith.divf %346, %347 : vector<1x1xf32>
    %349 = vector.broadcast %348 : vector<1x1xf32> to vector<1x32xf32>
    %350 = arith.subf %344, %349 : vector<1x32xf32>
    %351 = arith.mulf %350, %350 : vector<1x32xf32>
    %cst_171 = arith.constant dense<0.000000e+00> : vector<1xf32>
    %352 = vector.multi_reduction <add>, %351, %cst_171 [1] : vector<1x32xf32> to vector<1xf32>
    %353 = vector.shape_cast %352 : vector<1xf32> to vector<1x1xf32>
    %cst_172 = arith.constant 3.200000e+01 : f32
    %354 = vector.broadcast %cst_172 : f32 to vector<1x1xf32>
    %355 = arith.divf %353, %354 : vector<1x1xf32>
    %356 = vector.broadcast %348 : vector<1x1xf32> to vector<1x32xf32>
    %357 = arith.subf %344, %356 : vector<1x32xf32>
    %cst_173 = arith.constant 9.99999974E-6 : f32
    %358 = vector.broadcast %cst_173 : f32 to vector<1x1xf32>
    %359 = arith.addf %355, %358 : vector<1x1xf32>
    %360 = math.rsqrt %359 : vector<1x1xf32>
    %361 = vector.broadcast %360 : vector<1x1xf32> to vector<1x32xf32>
    %362 = arith.mulf %357, %361 : vector<1x32xf32>
    %363 = arith.mulf %362, %232 : vector<1x32xf32>
    %364 = arith.addf %363, %233 : vector<1x32xf32>
    %365 = arith.truncf %364 : vector<1x32xf32> to vector<1x32xbf16>
    %c0_174 = arith.constant 0 : index
    %c0_175 = arith.constant 0 : index
    %366 = vector.load %arg13[%c0_174, %c0_175] : memref<32x16xbf16, #tpu.memory_space<vmem>>, vector<32x16xbf16>
    %cst_176 = arith.constant dense<0.000000e+00> : vector<1x16xf32>
    %367 = tpu.matmul %365, %366, %cst_176 {dimension_numbers = #tpu.dot_dimension_numbers<[1], [0], [0], [1], [0, 0, 1, 1], [], []>} : vector<1x32xbf16>, vector<32x16xbf16>, vector<1x16xf32> -> vector<1x16xf32>
    %c0_177 = arith.constant 0 : index
    %c0_178 = arith.constant 0 : index
    %368 = vector.load %arg14[%c0_177, %c0_178] : memref<1x16xf32, #tpu.memory_space<vmem>>, vector<1x16xf32>
    %369 = arith.addf %367, %368 : vector<1x16xf32>
    %cst_179 = arith.constant dense<0xFF800000> : vector<1xf32>
    %370 = vector.multi_reduction <maximumf>, %369, %cst_179 [1] : vector<1x16xf32> to vector<1xf32>
    %371 = vector.shape_cast %370 : vector<1xf32> to vector<1x1xf32>
    %372 = vector.broadcast %371 : vector<1x1xf32> to vector<1x16xf32>
    %373 = arith.subf %369, %372 : vector<1x16xf32>
    %374 = math.exp %373 : vector<1x16xf32>
    %cst_180 = arith.constant dense<0.000000e+00> : vector<1xf32>
    %375 = vector.multi_reduction <add>, %374, %cst_180 [1] : vector<1x16xf32> to vector<1xf32>
    %376 = vector.shape_cast %375 : vector<1xf32> to vector<1x1xf32>
    %377 = math.log %376 : vector<1x1xf32>
    %378 = vector.broadcast %377 : vector<1x1xf32> to vector<1x16xf32>
    %379 = arith.subf %373, %378 : vector<1x16xf32>
    %c0_181 = arith.constant 0 : index
    %c0_182 = arith.constant 0 : index
    %c0_183 = arith.constant 0 : index
    %380 = vector.load %arg15[%c0_181, %c0_182, %c0_183] : memref<1x1x16xf32, #tpu.memory_space<vmem>>, vector<1x1x16xf32>
    %381 = vector.shape_cast %380 : vector<1x1x16xf32> to vector<1x16xf32>
    %382 = vector.shape_cast %379 : vector<1x16xf32> to vector<1x1x16xf32>
    tpu.vector_store %arg15[%c0_181, %c0_182, %c0_183], %382 {strides = array<i32>} : memref<1x1x16xf32, #tpu.memory_space<vmem>>, vector<1x1x16xf32>,
    %c0_184 = arith.constant 0 : index
    %c0_185 = arith.constant 0 : index
    %c0_186 = arith.constant 0 : index
    %383 = vector.load %arg16[%c0_184, %c0_185, %c0_186] : memref<1x1x32xf32, #tpu.memory_space<vmem>>, vector<1x1x32xf32>
    %384 = vector.shape_cast %383 : vector<1x1x32xf32> to vector<1x32xf32>
    %385 = vector.shape_cast %364 : vector<1x32xf32> to vector<1x1x32xf32>
    tpu.vector_store %arg16[%c0_184, %c0_185, %c0_186], %385 {strides = array<i32>} : memref<1x1x32xf32, #tpu.memory_space<vmem>>, vector<1x1x32xf32>,
    return
  }
  func.func @transform_0(%arg0: i32) -> (i32, i32, i32) {
    %c0_i32 = arith.constant 0 : i32
    %c0_i32_0 = arith.constant 0 : i32
    %c0_i32_1 = arith.constant 0 : i32
    return %arg0, %c0_i32, %c0_i32_0 : i32, i32, i32
  }
  func.func @transform_1(%arg0: i32) -> (i32, i32, i32) {
    %c0_i32 = arith.constant 0 : i32
    %c0_i32_0 = arith.constant 0 : i32
    %c0_i32_1 = arith.constant 0 : i32
    return %arg0, %c0_i32, %c0_i32_0 : i32, i32, i32
  }
  func.func @transform_2(%arg0: i32) -> (i32, i32) {
    %c0_i32 = arith.constant 0 : i32
    %c0_i32_0 = arith.constant 0 : i32
    %c0_i32_1 = arith.constant 0 : i32
    return %c0_i32, %c0_i32_0 : i32, i32
  }
  func.func @transform_3(%arg0: i32) -> (i32, i32) {
    %c0_i32 = arith.constant 0 : i32
    %c0_i32_0 = arith.constant 0 : i32
    %c0_i32_1 = arith.constant 0 : i32
    return %c0_i32, %c0_i32_0 : i32, i32
  }
  func.func @transform_4(%arg0: i32) -> (i32, i32) {
    %c0_i32 = arith.constant 0 : i32
    %c0_i32_0 = arith.constant 0 : i32
    %c0_i32_1 = arith.constant 0 : i32
    return %c0_i32, %c0_i32_0 : i32, i32
  }
  func.func @transform_5(%arg0: i32) -> (i32, i32) {
    %c0_i32 = arith.constant 0 : i32
    %c0_i32_0 = arith.constant 0 : i32
    %c0_i32_1 = arith.constant 0 : i32
    return %c0_i32, %c0_i32_0 : i32, i32
  }
  func.func @transform_6(%arg0: i32) -> (i32, i32, i32) {
    %c0_i32 = arith.constant 0 : i32
    %c0_i32_0 = arith.constant 0 : i32
    %c0_i32_1 = arith.constant 0 : i32
    %c0_i32_2 = arith.constant 0 : i32
    return %c0_i32, %c0_i32_0, %c0_i32_1 : i32, i32, i32
  }
  func.func @transform_7(%arg0: i32) -> (i32, i32, i32) {
    %c0_i32 = arith.constant 0 : i32
    %c0_i32_0 = arith.constant 0 : i32
    %c0_i32_1 = arith.constant 0 : i32
    %c0_i32_2 = arith.constant 0 : i32
    return %c0_i32, %c0_i32_0, %c0_i32_1 : i32, i32, i32
  }
  func.func @transform_8(%arg0: i32) -> (i32, i32) {
    %c0_i32 = arith.constant 0 : i32
    %c0_i32_0 = arith.constant 0 : i32
    %c0_i32_1 = arith.constant 0 : i32
    return %c0_i32, %c0_i32_0 : i32, i32
  }
  func.func @transform_9(%arg0: i32) -> (i32, i32, i32) {
    %c0_i32 = arith.constant 0 : i32
    %c0_i32_0 = arith.constant 0 : i32
    %c0_i32_1 = arith.constant 0 : i32
    %c0_i32_2 = arith.constant 0 : i32
    return %c0_i32, %c0_i32_0, %c0_i32_1 : i32, i32, i32
  }
  func.func @transform_10(%arg0: i32) -> (i32, i32, i32) {
    %c0_i32 = arith.constant 0 : i32
    %c0_i32_0 = arith.constant 0 : i32
    %c0_i32_1 = arith.constant 0 : i32
    %c0_i32_2 = arith.constant 0 : i32
    return %c0_i32, %c0_i32_0, %c0_i32_1 : i32, i32, i32
  }
  func.func @transform_11(%arg0: i32) -> (i32, i32) {
    %c0_i32 = arith.constant 0 : i32
    %c0_i32_0 = arith.constant 0 : i32
    %c0_i32_1 = arith.constant 0 : i32
    return %c0_i32, %c0_i32_0 : i32, i32
  }
  func.func @transform_12(%arg0: i32) -> (i32, i32) {
    %c0_i32 = arith.constant 0 : i32
    %c0_i32_0 = arith.constant 0 : i32
    %c0_i32_1 = arith.constant 0 : i32
    return %c0_i32, %c0_i32_0 : i32, i32
  }
  func.func @transform_13(%arg0: i32) -> (i32, i32) {
    %c0_i32 = arith.constant 0 : i32
    %c0_i32_0 = arith.constant 0 : i32
    %c0_i32_1 = arith.constant 0 : i32
    return %c0_i32, %c0_i32_0 : i32, i32
  }
  func.func @transform_14(%arg0: i32) -> (i32, i32, i32) {
    %c0_i32 = arith.constant 0 : i32
    %c0_i32_0 = arith.constant 0 : i32
    %c0_i32_1 = arith.constant 0 : i32
    return %arg0, %c0_i32, %c0_i32_0 : i32, i32, i32
  }
  func.func @transform_15(%arg0: i32) -> (i32, i32, i32) {
    %c0_i32 = arith.constant 0 : i32
    %c0_i32_0 = arith.constant 0 : i32
    %c0_i32_1 = arith.constant 0 : i32
    return %arg0, %c0_i32, %c0_i32_0 : i32, i32, i32
  }
}

</mosaic_0001>

<llo_original>
// kernel: transformer_cross_attn_forward.1
$region0: #{transformer_cross_attn_forward.1}
  #allocation0 [shape = 'u32[]', space=smem, size = 0x4, offset = 0x4, fixed_abs, tag = 'smem constant byte address 0x4 - core index']
  #allocation1 [shape = 'u32[144,128]{1,0:T(1,128)}', space=vmem, size = 0x12000, scoped, tag = 'internal scratch']
  %s0 = inlined_call_operand.hbm [shape: f32[2,8,12], index: 0, kind: input, shape index: {}]
  %s1 = inlined_call_operand.vmem [shape: f32[2,10,10], index: 1, kind: input, shape index: {}]
  %s2 = inlined_call_operand.hbm [shape: bf16[12,32], index: 2, kind: input, shape index: {}]
  %s3 = inlined_call_operand.vmem [shape: f32[8,32], index: 3, kind: input, shape index: {}]
  %s4 = inlined_call_operand.hbm [shape: bf16[10,32], index: 4, kind: input, shape index: {}]
  %s5 = inlined_call_operand.hbm [shape: f32[10,32], index: 5, kind: input, shape index: {}]
  %s6 = inlined_call_operand.hbm [shape: bf16[2,32,96], index: 6, kind: input, shape index: {}]
  %s7 = inlined_call_operand.vmem [shape: bf16[6,32,32], index: 7, kind: input, shape index: {}]
  %s8 = inlined_call_operand.hbm [shape: f32[20,32], index: 8, kind: input, shape index: {}]
  %s9 = inlined_call_operand.vmem [shape: bf16[4,32,32], index: 9, kind: input, shape index: {}]
  %s10 = inlined_call_operand.hbm [shape: bf16[4,32,32], index: 10, kind: input, shape index: {}]
  %s11 = inlined_call_operand.hbm [shape: f32[10,32], index: 11, kind: input, shape index: {}]
  %s12 = inlined_call_operand.vmem [shape: bf16[32,16], index: 12, kind: input, shape index: {}]
  %s13 = inlined_call_operand.vmem [shape: f32[1,16], index: 13, kind: input, shape index: {}]
  %s14 = inlined_call_operand.hbm [shape: f32[2,1,16], index: 14, kind: output, shape index: {0}]
  %s15 = inlined_call_operand.hbm [shape: f32[2,1,32], index: 15, kind: output, shape index: {1}]
  %16 = xla_tuple %s14, %s15
  %s17 = sld [smem:[#allocation0]]
  $region129: #{transformer_cross_attn_forward.1} parent=0
    _
  %s19 = ssub.s32 1, %s17
  %s20 = scalar_select 0, %s19, %s17
  $region1: #{transformer_cross_attn_forward.1} parent=0
    #allocation2 [shape = 'u8[8192]{0}', space=vmem, size = 0x2000, scoped, tag = 'input window, operand 0']
    #allocation3 [shape = 's32[2]{0}', space=sflag, size = 0x8, scoped, tag = 'scoped memory for transformer_cross_attn_forward.1']
    #allocation4 [shape = 's32[2]{0}', space=sflag, size = 0x8, scoped, tag = 'scoped memory for transformer_cross_attn_forward.1']
    #allocation5 [shape = 'u8[4096]{0}', space=vmem, size = 0x1000, scoped, tag = 'input window, operand 2, single buffered']
    #allocation6 [shape = 's32[1]{0}', space=sflag, size = 0x4, scoped, tag = 'scoped memory for transformer_cross_attn_forward.1']
    #allocation7 [shape = 'u8[4096]{0}', space=vmem, size = 0x1000, scoped, tag = 'input window, operand 4, single buffered']
    #allocation8 [shape = 'u8[8192]{0}', space=vmem, size = 0x2000, scoped, tag = 'input window, operand 5, single buffered']
    #allocation9 [shape = 's32[1]{0}', space=sflag, size = 0x4, scoped, tag = 'scoped memory for transformer_cross_attn_forward.1']
    #allocation10 [shape = 'u8[16384]{0}', space=vmem, size = 0x4000, scoped, tag = 'input window, operand 6, single buffered']
    #allocation11 [shape = 'u8[12288]{0}', space=vmem, size = 0x3000, scoped, tag = 'input window, operand 8, single buffered']
    #allocation12 [shape = 's32[1]{0}', space=sflag, size = 0x4, scoped, tag = 'scoped memory for transformer_cross_attn_forward.1']
    #allocation13 [shape = 'u8[32768]{0}', space=vmem, size = 0x8000, scoped, tag = 'input window, operand 10, single buffered']
    #allocation14 [shape = 'u8[8192]{0}', space=vmem, size = 0x2000, scoped, tag = 'input window, operand 11, single buffered']
    #allocation15 [shape = 's32[1]{0}', space=sflag, size = 0x4, scoped, tag = 'scoped memory for transformer_cross_attn_forward.1']
    #allocation16 [shape = 'u8[1024]{0}', space=vmem, size = 0x400, scoped, tag = 'output window, operand 0']
    #allocation17 [shape = 'u8[1024]{0}', space=vmem, size = 0x400, scoped, tag = 'output window, operand 1']
    #allocation18 [shape = 's32[2]{0}', space=sflag, size = 0x8, scoped, tag = 'scoped memory for transformer_cross_attn_forward.1']
    %21 = vsyncpa [#allocation3], 0
    %s22 = scalar_lea.sflag [#allocation3], 1
    %23 = vsyncpa %s22, 0
    %24 = vsyncpa [#allocation6], 0
    %25 = vsyncpa [#allocation9], 0
    %26 = vsyncpa [#allocation12], 0
    %27 = vsyncpa [#allocation15], 0
    %28 = vsyncpa [#allocation4], 0
    %s29 = scalar_lea.sflag [#allocation4], 1
    %30 = vsyncpa %s29, 0
    %31 = vsyncpa [#allocation18], 0
    %s32 = scalar_lea.sflag [#allocation18], 1
    %33 = vsyncpa %s32, 0
    loop: start=0, step=1, limit=4
    $region2: #{transformer_cross_attn_forward.1} parent=1 // loop_pre_header
      _
    $region3: #{transformer_cross_attn_forward.1} parent=1 // loop_header
      %s35 = sphi 0, %s39
      %p36 = scmp.ge.s32.totalorder %s35, 4
      %s45 = sphi 0, %s47
      %s48 = sphi 0, %s45
      %s49 = sphi 0, %s48
      %s65 = sphi 0, %s49
      %s71 = sphi 0, %s73
      %s74 = sphi 0, %s71
      %s75 = sphi 0, %s74
      %s91 = sphi 0, %s75
      %s95 = sphi 0, %s95
      %s97 = sphi 0, %s95
      %s98 = sphi 0, %s97
      %s112 = sphi 0, %s98
      %s116 = sphi 0, %s116
      %s118 = sphi 0, %s116
      %s119 = sphi 0, %s118
      %s133 = sphi 0, %s119
      %s137 = sphi 0, %s137
      %s139 = sphi 0, %s137
      %s140 = sphi 0, %s139
      %s154 = sphi 0, %s140
      %s158 = sphi 0, %s158
      %s160 = sphi 0, %s158
      %s161 = sphi 0, %s160
      %s175 = sphi 0, %s161
      %s179 = sphi 0, %s179
      %s181 = sphi 0, %s179
      %s182 = sphi 0, %s181
      %s196 = sphi 0, %s182
      %s200 = sphi 0, %s200
      %s202 = sphi 0, %s200
      %s203 = sphi 0, %s202
      %s217 = sphi 0, %s203
      %s221 = sphi 0, %s221
      %s223 = sphi 0, %s221
      %s224 = sphi 0, %s223
      %s238 = sphi 0, %s224
      %s242 = sphi 0, %s242
      %s244 = sphi 0, %s242
      %s245 = sphi 0, %s244
      %s259 = sphi 0, %s245
      %s263 = sphi 0, %s263
      %s265 = sphi 0, %s263
      %s266 = sphi 0, %s265
      %s280 = sphi 0, %s266
      %s284 = sphi 0, %s284
      %s286 = sphi 0, %s284
      %s287 = sphi 0, %s286
      %s301 = sphi 0, %s287
      %s305 = sphi 0, %s305
      %s307 = sphi 0, %s305
      %s308 = sphi 0, %s307
      %s322 = sphi 0, %s308
      %s326 = sphi 0, %s326
      %s328 = sphi 0, %s326
      %s329 = sphi 0, %s328
      %s343 = sphi 0, %s329
      %s349 = sphi 0, %s351
      %s352 = sphi 0, %s349
      %s353 = sphi 0, %s352
      %s369 = sphi 0, %s353
      %s375 = sphi 0, %s377
      %s378 = sphi 0, %s375
      %s379 = sphi 0, %s378
      %s395 = sphi 0, %s379
    $region4: #{transformer_cross_attn_forward.1} parent=1 // loop_header_branch
      %38 = sbr.rel (%p36) target = $region8
    $region5: #{transformer_cross_attn_forward.1} parent=1 // loop_body
      %s40 = ssub.s32 %s35, 1
      %s41 = ssub.s32 %s35, 2
      %s42 = sadd.s32 %s35, 1
      %s43 = ssub.s32 %s35, %s42
      %p44 = scmp.eq.s32.totalorder %s43, 0
      %s46 = sadd.s32 %s45, 1
      %s47 = scalar_select %p44, %s45, %s46
      %p50 = pneg %p44
      %p51 = scmp.eq.s32.totalorder %s35, 1
      %p52 = por %p50, %p51
      %p53 = scmp.ne.s32.totalorder %s45, %s48
      %p54 = scmp.eq.s32.totalorder %s35, 0
      %p55 = por %p53, %p54
      %p56 = scmp.ne.s32.totalorder %s45, %s48
      %p57 = scmp.eq.s32.totalorder %s40, 1
      %p58 = por %p56, %p57
      %p59 = scmp.ne.s32.totalorder %s48, %s49
      %p60 = scmp.eq.s32.totalorder %s40, 0
      %p61 = por %p59, %p60
      %p62 = scmp.ne.s32.totalorder %s48, %s49
      %p63 = scmp.eq.s32.totalorder %s41, 1
      %p64 = por %p62, %p63
      %p66 = scmp.ne.s32.totalorder %s49, %s65
      %p67 = scmp.eq.s32.totalorder %s41, 0
      %p68 = por %p66, %p67
      %s69 = ssub.s32 %s35, %s42
      %p70 = scmp.eq.s32.totalorder %s69, 0
      %s72 = sadd.s32 %s71, 1
      %s73 = scalar_select %p70, %s71, %s72
      %p76 = pneg %p70
      %p77 = scmp.eq.s32.totalorder %s35, 1
      %p78 = por %p76, %p77
      %p79 = scmp.ne.s32.totalorder %s71, %s74
      %p80 = scmp.eq.s32.totalorder %s35, 0
      %p81 = por %p79, %p80
      %p82 = scmp.ne.s32.totalorder %s71, %s74
      %p83 = scmp.eq.s32.totalorder %s40, 1
      %p84 = por %p82, %p83
      %p85 = scmp.ne.s32.totalorder %s74, %s75
      %p86 = scmp.eq.s32.totalorder %s40, 0
      %p87 = por %p85, %p86
      %p88 = scmp.ne.s32.totalorder %s74, %s75
      %p89 = scmp.eq.s32.totalorder %s41, 1
      %p90 = por %p88, %p89
      %p92 = scmp.ne.s32.totalorder %s75, %s91
      %p93 = scmp.eq.s32.totalorder %s41, 0
      %p94 = por %p92, %p93
      %s96 = sadd.s32 %s95, 1
      %p99 = scmp.eq.s32.totalorder %s35, 1
      %p100 = scmp.ne.s32.totalorder %s95, %s97
      %p101 = scmp.eq.s32.totalorder %s35, 0
      %p102 = por %p100, %p101
      %p103 = scmp.ne.s32.totalorder %s95, %s97
      %p104 = scmp.eq.s32.totalorder %s40, 1
      %p105 = por %p103, %p104
      %p106 = scmp.ne.s32.totalorder %s97, %s98
      %p107 = scmp.eq.s32.totalorder %s40, 0
      %p108 = por %p106, %p107
      %p109 = scmp.ne.s32.totalorder %s97, %s98
      %p110 = scmp.eq.s32.totalorder %s41, 1
      %p111 = por %p109, %p110
      %p113 = scmp.ne.s32.totalorder %s98, %s112
      %p114 = scmp.eq.s32.totalorder %s41, 0
      %p115 = por %p113, %p114
      %s117 = sadd.s32 %s116, 1
      %p120 = scmp.eq.s32.totalorder %s35, 1
      %p121 = scmp.ne.s32.totalorder %s116, %s118
      %p122 = scmp.eq.s32.totalorder %s35, 0
      %p123 = por %p121, %p122
      %p124 = scmp.ne.s32.totalorder %s116, %s118
      %p125 = scmp.eq.s32.totalorder %s40, 1
      %p126 = por %p124, %p125
      %p127 = scmp.ne.s32.totalorder %s118, %s119
      %p128 = scmp.eq.s32.totalorder %s40, 0
      %p129 = por %p127, %p128
      %p130 = scmp.ne.s32.totalorder %s118, %s119
      %p131 = scmp.eq.s32.totalorder %s41, 1
      %p132 = por %p130, %p131
      %p134 = scmp.ne.s32.totalorder %s119, %s133
      %p135 = scmp.eq.s32.totalorder %s41, 0
      %p136 = por %p134, %p135
      %s138 = sadd.s32 %s137, 1
      %p141 = scmp.eq.s32.totalorder %s35, 1
      %p142 = scmp.ne.s32.totalorder %s137, %s139
      %p143 = scmp.eq.s32.totalorder %s35, 0
      %p144 = por %p142, %p143
      %p145 = scmp.ne.s32.totalorder %s137, %s139
      %p146 = scmp.eq.s32.totalorder %s40, 1
      %p147 = por %p145, %p146
      %p148 = scmp.ne.s32.totalorder %s139, %s140
      %p149 = scmp.eq.s32.totalorder %s40, 0
      %p150 = por %p148, %p149
      %p151 = scmp.ne.s32.totalorder %s139, %s140
      %p152 = scmp.eq.s32.totalorder %s41, 1
      %p153 = por %p151, %p152
      %p155 = scmp.ne.s32.totalorder %s140, %s154
      %p156 = scmp.eq.s32.totalorder %s41, 0
      %p157 = por %p155, %p156
      %s159 = sadd.s32 %s158, 1
      %p162 = scmp.eq.s32.totalorder %s35, 1
      %p163 = scmp.ne.s32.totalorder %s158, %s160
      %p164 = scmp.eq.s32.totalorder %s35, 0
      %p165 = por %p163, %p164
      %p166 = scmp.ne.s32.totalorder %s158, %s160
      %p167 = scmp.eq.s32.totalorder %s40, 1
      %p168 = por %p166, %p167
      %p169 = scmp.ne.s32.totalorder %s160, %s161
      %p170 = scmp.eq.s32.totalorder %s40, 0
      %p171 = por %p169, %p170
      %p172 = scmp.ne.s32.totalorder %s160, %s161
      %p173 = scmp.eq.s32.totalorder %s41, 1
      %p174 = por %p172, %p173
      %p176 = scmp.ne.s32.totalorder %s161, %s175
      %p177 = scmp.eq.s32.totalorder %s41, 0
      %p178 = por %p176, %p177
      %s180 = sadd.s32 %s179, 1
      %p183 = scmp.eq.s32.totalorder %s35, 1
      %p184 = scmp.ne.s32.totalorder %s179, %s181
      %p185 = scmp.eq.s32.totalorder %s35, 0
      %p186 = por %p184, %p185
      %p187 = scmp.ne.s32.totalorder %s179, %s181
      %p188 = scmp.eq.s32.totalorder %s40, 1
      %p189 = por %p187, %p188
      %p190 = scmp.ne.s32.totalorder %s181, %s182
      %p191 = scmp.eq.s32.totalorder %s40, 0
      %p192 = por %p190, %p191
      %p193 = scmp.ne.s32.totalorder %s181, %s182
      %p194 = scmp.eq.s32.totalorder %s41, 1
      %p195 = por %p193, %p194
      %p197 = scmp.ne.s32.totalorder %s182, %s196
      %p198 = scmp.eq.s32.totalorder %s41, 0
      %p199 = por %p197, %p198
      %s201 = sadd.s32 %s200, 1
      %p204 = scmp.eq.s32.totalorder %s35, 1
      %p205 = scmp.ne.s32.totalorder %s200, %s202
      %p206 = scmp.eq.s32.totalorder %s35, 0
      %p207 = por %p205, %p206
      %p208 = scmp.ne.s32.totalorder %s200, %s202
      %p209 = scmp.eq.s32.totalorder %s40, 1
      %p210 = por %p208, %p209
      %p211 = scmp.ne.s32.totalorder %s202, %s203
      %p212 = scmp.eq.s32.totalorder %s40, 0
      %p213 = por %p211, %p212
      %p214 = scmp.ne.s32.totalorder %s202, %s203
      %p215 = scmp.eq.s32.totalorder %s41, 1
      %p216 = por %p214, %p215
      %p218 = scmp.ne.s32.totalorder %s203, %s217
      %p219 = scmp.eq.s32.totalorder %s41, 0
      %p220 = por %p218, %p219
      %s222 = sadd.s32 %s221, 1
      %p225 = scmp.eq.s32.totalorder %s35, 1
      %p226 = scmp.ne.s32.totalorder %s221, %s223
      %p227 = scmp.eq.s32.totalorder %s35, 0
      %p228 = por %p226, %p227
      %p229 = scmp.ne.s32.totalorder %s221, %s223
      %p230 = scmp.eq.s32.totalorder %s40, 1
      %p231 = por %p229, %p230
      %p232 = scmp.ne.s32.totalorder %s223, %s224
      %p233 = scmp.eq.s32.totalorder %s40, 0
      %p234 = por %p232, %p233
      %p235 = scmp.ne.s32.totalorder %s223, %s224
      %p236 = scmp.eq.s32.totalorder %s41, 1
      %p237 = por %p235, %p236
      %p239 = scmp.ne.s32.totalorder %s224, %s238
      %p240 = scmp.eq.s32.totalorder %s41, 0
      %p241 = por %p239, %p240
      %s243 = sadd.s32 %s242, 1
      %p246 = scmp.eq.s32.totalorder %s35, 1
      %p247 = scmp.ne.s32.totalorder %s242, %s244
      %p248 = scmp.eq.s32.totalorder %s35, 0
      %p249 = por %p247, %p248
      %p250 = scmp.ne.s32.totalorder %s242, %s244
      %p251 = scmp.eq.s32.totalorder %s40, 1
      %p252 = por %p250, %p251
      %p253 = scmp.ne.s32.totalorder %s244, %s245
      %p254 = scmp.eq.s32.totalorder %s40, 0
      %p255 = por %p253, %p254
      %p256 = scmp.ne.s32.totalorder %s244, %s245
      %p257 = scmp.eq.s32.totalorder %s41, 1
      %p258 = por %p256, %p257
      %p260 = scmp.ne.s32.totalorder %s245, %s259
      %p261 = scmp.eq.s32.totalorder %s41, 0
      %p262 = por %p260, %p261
      %s264 = sadd.s32 %s263, 1
      %p267 = scmp.eq.s32.totalorder %s35, 1
      %p268 = scmp.ne.s32.totalorder %s263, %s265
      %p269 = scmp.eq.s32.totalorder %s35, 0
      %p270 = por %p268, %p269
      %p271 = scmp.ne.s32.totalorder %s263, %s265
      %p272 = scmp.eq.s32.totalorder %s40, 1
      %p273 = por %p271, %p272
      %p274 = scmp.ne.s32.totalorder %s265, %s266
      %p275 = scmp.eq.s32.totalorder %s40, 0
      %p276 = por %p274, %p275
      %p277 = scmp.ne.s32.totalorder %s265, %s266
      %p278 = scmp.eq.s32.totalorder %s41, 1
      %p279 = por %p277, %p278
      %p281 = scmp.ne.s32.totalorder %s266, %s280
      %p282 = scmp.eq.s32.totalorder %s41, 0
      %p283 = por %p281, %p282
      %s285 = sadd.s32 %s284, 1
      %p288 = scmp.eq.s32.totalorder %s35, 1
      %p289 = scmp.ne.s32.totalorder %s284, %s286
      %p290 = scmp.eq.s32.totalorder %s35, 0
      %p291 = por %p289, %p290
      %p292 = scmp.ne.s32.totalorder %s284, %s286
      %p293 = scmp.eq.s32.totalorder %s40, 1
      %p294 = por %p292, %p293
      %p295 = scmp.ne.s32.totalorder %s286, %s287
      %p296 = scmp.eq.s32.totalorder %s40, 0
      %p297 = por %p295, %p296
      %p298 = scmp.ne.s32.totalorder %s286, %s287
      %p299 = scmp.eq.s32.totalorder %s41, 1
      %p300 = por %p298, %p299
      %p302 = scmp.ne.s32.totalorder %s287, %s301
      %p303 = scmp.eq.s32.totalorder %s41, 0
      %p304 = por %p302, %p303
      %s306 = sadd.s32 %s305, 1
      %p309 = scmp.eq.s32.totalorder %s35, 1
      %p310 = scmp.ne.s32.totalorder %s305, %s307
      %p311 = scmp.eq.s32.totalorder %s35, 0
      %p312 = por %p310, %p311
      %p313 = scmp.ne.s32.totalorder %s305, %s307
      %p314 = scmp.eq.s32.totalorder %s40, 1
      %p315 = por %p313, %p314
      %p316 = scmp.ne.s32.totalorder %s307, %s308
      %p317 = scmp.eq.s32.totalorder %s40, 0
      %p318 = por %p316, %p317
      %p319 = scmp.ne.s32.totalorder %s307, %s308
      %p320 = scmp.eq.s32.totalorder %s41, 1
      %p321 = por %p319, %p320
      %p323 = scmp.ne.s32.totalorder %s308, %s322
      %p324 = scmp.eq.s32.totalorder %s41, 0
      %p325 = por %p323, %p324
      %s327 = sadd.s32 %s326, 1
      %p330 = scmp.eq.s32.totalorder %s35, 1
      %p331 = scmp.ne.s32.totalorder %s326, %s328
      %p332 = scmp.eq.s32.totalorder %s35, 0
      %p333 = por %p331, %p332
      %p334 = scmp.ne.s32.totalorder %s326, %s328
      %p335 = scmp.eq.s32.totalorder %s40, 1
      %p336 = por %p334, %p335
      %p337 = scmp.ne.s32.totalorder %s328, %s329
      %p338 = scmp.eq.s32.totalorder %s40, 0
      %p339 = por %p337, %p338
      %p340 = scmp.ne.s32.totalorder %s328, %s329
      %p341 = scmp.eq.s32.totalorder %s41, 1
      %p342 = por %p340, %p341
      %p344 = scmp.ne.s32.totalorder %s329, %s343
      %p345 = scmp.eq.s32.totalorder %s41, 0
      %p346 = por %p344, %p345
      %s347 = ssub.s32 %s35, %s42
      %p348 = scmp.eq.s32.totalorder %s347, 0
      %s350 = sadd.s32 %s349, 1
      %s351 = scalar_select %p348, %s349, %s350
      %p354 = pneg %p348
      %p355 = scmp.eq.s32.totalorder %s35, 1
      %p356 = por %p354, %p355
      %p357 = scmp.ne.s32.totalorder %s349, %s352
      %p358 = scmp.eq.s32.totalorder %s35, 0
      %p359 = por %p357, %p358
      %p360 = scmp.ne.s32.totalorder %s349, %s352
      %p361 = scmp.eq.s32.totalorder %s40, 1
      %p362 = por %p360, %p361
      %p363 = scmp.ne.s32.totalorder %s352, %s353
      %p364 = scmp.eq.s32.totalorder %s40, 0
      %p365 = por %p363, %p364
      %p366 = scmp.ne.s32.totalorder %s352, %s353
      %p367 = scmp.eq.s32.totalorder %s41, 1
      %p368 = por %p366, %p367
      %p370 = scmp.ne.s32.totalorder %s353, %s369
      %p371 = scmp.eq.s32.totalorder %s41, 0
      %p372 = por %p370, %p371
      %s373 = ssub.s32 %s35, %s42
      %p374 = scmp.eq.s32.totalorder %s373, 0
      %s376 = sadd.s32 %s375, 1
      %s377 = scalar_select %p374, %s375, %s376
      %p380 = pneg %p374
      %p381 = scmp.eq.s32.totalorder %s35, 1
      %p382 = por %p380, %p381
      %p383 = scmp.ne.s32.totalorder %s375, %s378
      %p384 = scmp.eq.s32.totalorder %s35, 0
      %p385 = por %p383, %p384
      %p386 = scmp.ne.s32.totalorder %s375, %s378
      %p387 = scmp.eq.s32.totalorder %s40, 1
      %p388 = por %p386, %p387
      %p389 = scmp.ne.s32.totalorder %s378, %s379
      %p390 = scmp.eq.s32.totalorder %s40, 0
      %p391 = por %p389, %p390
      %p392 = scmp.ne.s32.totalorder %s378, %s379
      %p393 = scmp.eq.s32.totalorder %s41, 1
      %p394 = por %p392, %p393
      %p396 = scmp.ne.s32.totalorder %s379, %s395
      %p397 = scmp.eq.s32.totalorder %s41, 0
      %p398 = por %p396, %p397
      %p399 = scmp.le.s32.totalorder 1, %s35
      %p400 = scmp.lt.s32.totalorder %s35, 3
      %p401 = pnand %p399, %p400
      %p402 = pneg %p401
      // Predicated region
      $region9: #{transformer_cross_attn_forward.1} parent=5 // pred_check
        _
      $region10: #{transformer_cross_attn_forward.1} parent=5 // pred_check_branch
        %404 = sbr.rel (%p401) target = $region12
      $region11: #{transformer_cross_attn_forward.1} parent=5 // pred_region
        %s405 = ssub.s32 %s35, 1
        // Predicated region
        $region13: #{transformer_cross_attn_forward.1} parent=11 // pred_check
          %p406 = pneg %p108
        $region14: #{transformer_cross_attn_forward.1} parent=11 // pred_check_branch
          %408 = sbr.rel (%p406) target = $region16
        $region15: #{transformer_cross_attn_forward.1} parent=11 // pred_region
          %s410 = ssub.s32 128, 128
          %411 = vsyncadd [#allocation6], %s410
          %s412 = sshll.u32 [#allocation5], 4
          %s413 = int_to_ptr.vmem [resolvable:$true] %s412
          %418 = dma.hbm_to_vmem [thread:$0]  %s2, 128, %s413, [#allocation6], 64, 64, 4
        $region16: #{transformer_cross_attn_forward.1} parent=11 // pred_fallthru
          _
        // Predicated region
        $region17: #{transformer_cross_attn_forward.1} parent=11 // pred_check
          %p419 = pneg %p129
        $region18: #{transformer_cross_attn_forward.1} parent=11 // pred_check_branch
          %421 = sbr.rel (%p419) target = $region20
        $region19: #{transformer_cross_attn_forward.1} parent=11 // pred_region
          _
        $region20: #{transformer_cross_attn_forward.1} parent=11 // pred_fallthru
          _
        // Predicated region
        $region21: #{transformer_cross_attn_forward.1} parent=11 // pred_check
          %p422 = pneg %p150
        $region22: #{transformer_cross_attn_forward.1} parent=11 // pred_check_branch
          %424 = sbr.rel (%p422) target = $region24
        $region23: #{transformer_cross_attn_forward.1} parent=11 // pred_region
          %s426 = ssub.s32 128, 128
          %427 = vsyncadd [#allocation6], %s426
          %s428 = sshll.u32 [#allocation7], 4
          %s429 = int_to_ptr.vmem [resolvable:$true] %s428
          %434 = dma.hbm_to_vmem [thread:$0]  %s4, 128, %s429, [#allocation6], 64, 64, 4
        $region24: #{transformer_cross_attn_forward.1} parent=11 // pred_fallthru
          _
        // Predicated region
        $region25: #{transformer_cross_attn_forward.1} parent=11 // pred_check
          %p435 = pneg %p171
        $region26: #{transformer_cross_attn_forward.1} parent=11 // pred_check_branch
          %437 = sbr.rel (%p435) target = $region28
        $region27: #{transformer_cross_attn_forward.1} parent=11 // pred_region
          %s439 = ssub.s32 256, 256
          %440 = vsyncadd [#allocation9], %s439
          %s441 = sshll.u32 [#allocation8], 4
          %s442 = int_to_ptr.vmem [resolvable:$true] %s441
          %447 = dma.hbm_to_vmem [thread:$0]  %s5, 256, %s442, [#allocation9], 128, 128, 8
        $region28: #{transformer_cross_attn_forward.1} parent=11 // pred_fallthru
          _
        // Predicated region
        $region29: #{transformer_cross_attn_forward.1} parent=11 // pred_check
          %p448 = pneg %p192
        $region30: #{transformer_cross_attn_forward.1} parent=11 // pred_check_branch
          %450 = sbr.rel (%p448) target = $region32
        $region31: #{transformer_cross_attn_forward.1} parent=11 // pred_region
          %s452 = ssub.s32 512, 512
          %453 = vsyncadd [#allocation9], %s452
          %s454 = sshll.u32 [#allocation10], 4
          %s455 = int_to_ptr.vmem [resolvable:$true] %s454
          %460 = dma.hbm_to_vmem [thread:$0]  %s6, 512, %s455, [#allocation9], 64, 64, 4
        $region32: #{transformer_cross_attn_forward.1} parent=11 // pred_fallthru
          _
        // Predicated region
        $region33: #{transformer_cross_attn_forward.1} parent=11 // pred_check
          %p461 = pneg %p213
        $region34: #{transformer_cross_attn_forward.1} parent=11 // pred_check_branch
          %463 = sbr.rel (%p461) target = $region36
        $region35: #{transformer_cross_attn_forward.1} parent=11 // pred_region
          _
        $region36: #{transformer_cross_attn_forward.1} parent=11 // pred_fallthru
          _
        // Predicated region
        $region37: #{transformer_cross_attn_forward.1} parent=11 // pred_check
          %p464 = pneg %p234
        $region38: #{transformer_cross_attn_forward.1} parent=11 // pred_check_branch
          %466 = sbr.rel (%p464) target = $region40
        $region39: #{transformer_cross_attn_forward.1} parent=11 // pred_region
          %s468 = ssub.s32 384, 384
          %469 = vsyncadd [#allocation12], %s468
          %s470 = sshll.u32 [#allocation11], 4
          %s471 = int_to_ptr.vmem [resolvable:$true] %s470
          %476 = dma.hbm_to_vmem [thread:$0]  %s8, 384, %s471, [#allocation12], 128, 128, 8
        $region40: #{transformer_cross_attn_forward.1} parent=11 // pred_fallthru
          _
        // Predicated region
        $region41: #{transformer_cross_attn_forward.1} parent=11 // pred_check
          %p477 = pneg %p255
        $region42: #{transformer_cross_attn_forward.1} parent=11 // pred_check_branch
          %479 = sbr.rel (%p477) target = $region44
        $region43: #{transformer_cross_attn_forward.1} parent=11 // pred_region
          _
        $region44: #{transformer_cross_attn_forward.1} parent=11 // pred_fallthru
          _
        // Predicated region
        $region45: #{transformer_cross_attn_forward.1} parent=11 // pred_check
          %p480 = pneg %p276
        $region46: #{transformer_cross_attn_forward.1} parent=11 // pred_check_branch
          %482 = sbr.rel (%p480) target = $region48
        $region47: #{transformer_cross_attn_forward.1} parent=11 // pred_region
          %s484 = ssub.s32 1024, 1024
          %485 = vsyncadd [#allocation12], %s484
          %s486 = sshll.u32 [#allocation13], 4
          %s487 = int_to_ptr.vmem [resolvable:$true] %s486
          %492 = dma.hbm_to_vmem [thread:$0]  %s10, 1024, %s487, [#allocation12], 64, 64, 4
        $region48: #{transformer_cross_attn_forward.1} parent=11 // pred_fallthru
          _
        // Predicated region
        $region49: #{transformer_cross_attn_forward.1} parent=11 // pred_check
          %p493 = pneg %p297
        $region50: #{transformer_cross_attn_forward.1} parent=11 // pred_check_branch
          %495 = sbr.rel (%p493) target = $region52
        $region51: #{transformer_cross_attn_forward.1} parent=11 // pred_region
          %s497 = ssub.s32 256, 256
          %498 = vsyncadd [#allocation15], %s497
          %s499 = sshll.u32 [#allocation14], 4
          %s500 = int_to_ptr.vmem [resolvable:$true] %s499
          %505 = dma.hbm_to_vmem [thread:$0]  %s11, 256, %s500, [#allocation15], 128, 128, 8
        $region52: #{transformer_cross_attn_forward.1} parent=11 // pred_fallthru
          _
        // Predicated region
        $region53: #{transformer_cross_attn_forward.1} parent=11 // pred_check
          %p506 = pneg %p318
        $region54: #{transformer_cross_attn_forward.1} parent=11 // pred_check_branch
          %508 = sbr.rel (%p506) target = $region56
        $region55: #{transformer_cross_attn_forward.1} parent=11 // pred_region
          _
        $region56: #{transformer_cross_attn_forward.1} parent=11 // pred_fallthru
          _
        // Predicated region
        $region57: #{transformer_cross_attn_forward.1} parent=11 // pred_check
          %p509 = pneg %p339
        $region58: #{transformer_cross_attn_forward.1} parent=11 // pred_check_branch
          %511 = sbr.rel (%p509) target = $region60
        $region59: #{transformer_cross_attn_forward.1} parent=11 // pred_region
          _
        $region60: #{transformer_cross_attn_forward.1} parent=11 // pred_fallthru
          _
      $region12: #{transformer_cross_attn_forward.1} parent=5 // pred_fallthru
        _
      %p512 = scmp.lt.s32.totalorder %s35, 2
      // Predicated region
      $region61: #{transformer_cross_attn_forward.1} parent=5 // pred_check
        %p513 = pneg %p512
      $region62: #{transformer_cross_attn_forward.1} parent=5 // pred_check_branch
        %515 = sbr.rel (%p513) target = $region64
      $region63: #{transformer_cross_attn_forward.1} parent=5 // pred_region
        // Predicated region
        $region65: #{transformer_cross_attn_forward.1} parent=63 // pred_check
          %p516 = pneg %p55
        $region66: #{transformer_cross_attn_forward.1} parent=63 // pred_check_branch
          %518 = sbr.rel (%p516) target = $region68
        $region67: #{transformer_cross_attn_forward.1} parent=63 // pred_region
          %s519 = sand.u32 %s45, 1
          %s520 = scalar_lea.sflag [#allocation3], %s519
          %s521 = sand.u32 %s45, 1
          %s522 = smul.addr %s521, 8
          %s523 = scalar_lea.vmem [#allocation2], %s522
          %s525 = ssub.s32 128, 128
          %526 = vsyncadd %s520, %s525
          %s527 = smul.addr %s35, 128
          %s528 = scalar_lea.hbm %s0, %s527
          %s530 = sshll.u32 %s523, 4
          %s531 = int_to_ptr.vmem [resolvable:$true] %s530
          %533 = dma.hbm_to_vmem [thread:$0]  %s528, 128, %s531, %s520
        $region68: #{transformer_cross_attn_forward.1} parent=63 // pred_fallthru
          _
        // Predicated region
        $region69: #{transformer_cross_attn_forward.1} parent=63 // pred_check
          %p534 = pneg %p81
        $region70: #{transformer_cross_attn_forward.1} parent=63 // pred_check_branch
          %536 = sbr.rel (%p534) target = $region72
        $region71: #{transformer_cross_attn_forward.1} parent=63 // pred_region
          %p537 = scmp.lt.s32.totalorder %s35, 1
          %s538 = scalar_select %p537, %s35, 1
          %s539 = smul.addr %s538, 2
          %s540 = smul.addr %s539, 8
          %s541 = scalar_lea.vmem %s1, %s540
        $region72: #{transformer_cross_attn_forward.1} parent=63 // pred_fallthru
          _
      $region64: #{transformer_cross_attn_forward.1} parent=5 // pred_fallthru
        _
      %p542 = scmp.le.s32.totalorder 1, %s35
      %p543 = scmp.lt.s32.totalorder %s35, 3
      %p544 = pnand %p542, %p543
      %p545 = pneg %p544
      // Predicated region
      $region73: #{transformer_cross_attn_forward.1} parent=5 // pred_check
        _
      $region74: #{transformer_cross_attn_forward.1} parent=5 // pred_check_branch
        %547 = sbr.rel (%p544) target = $region76
      $region75: #{transformer_cross_attn_forward.1} parent=5 // pred_region
        %s548 = ssub.s32 %s35, 1
        %s549 = sand.u32 %s48, 1
        %s550 = scalar_lea.sflag [#allocation3], %s549
        %s551 = sand.u32 %s48, 1
        %s552 = smul.addr %s551, 8
        %s553 = scalar_lea.vmem [#allocation2], %s552
        // Predicated region
        $region77: #{transformer_cross_attn_forward.1} parent=75 // pred_check
          %p554 = pneg %p61
        $region78: #{transformer_cross_attn_forward.1} parent=75 // pred_check_branch
          %556 = sbr.rel (%p554) target = $region80
        $region79: #{transformer_cross_attn_forward.1} parent=75 // pred_region
          %557 = dma.done %s550, 128
        $region80: #{transformer_cross_attn_forward.1} parent=75 // pred_fallthru
          _
        // Predicated region
        $region81: #{transformer_cross_attn_forward.1} parent=75 // pred_check
          %p558 = pneg %p108
        $region82: #{transformer_cross_attn_forward.1} parent=75 // pred_check_branch
          %560 = sbr.rel (%p558) target = $region84
        $region83: #{transformer_cross_attn_forward.1} parent=75 // pred_region
          %561 = dma.done [#allocation6], 128
        $region84: #{transformer_cross_attn_forward.1} parent=75 // pred_fallthru
          _
        // Predicated region
        $region85: #{transformer_cross_attn_forward.1} parent=75 // pred_check
          %p562 = pneg %p150
        $region86: #{transformer_cross_attn_forward.1} parent=75 // pred_check_branch
          %564 = sbr.rel (%p562) target = $region88
        $region87: #{transformer_cross_attn_forward.1} parent=75 // pred_region
          %565 = dma.done [#allocation6], 128
        $region88: #{transformer_cross_attn_forward.1} parent=75 // pred_fallthru
          _
        // Predicated region
        $region89: #{transformer_cross_attn_forward.1} parent=75 // pred_check
          %p566 = pneg %p171
        $region90: #{transformer_cross_attn_forward.1} parent=75 // pred_check_branch
          %568 = sbr.rel (%p566) target = $region92
        $region91: #{transformer_cross_attn_forward.1} parent=75 // pred_region
          %569 = dma.done [#allocation9], 256
        $region92: #{transformer_cross_attn_forward.1} parent=75 // pred_fallthru
          _
        // Predicated region
        $region93: #{transformer_cross_attn_forward.1} parent=75 // pred_check
          %p570 = pneg %p192
        $region94: #{transformer_cross_attn_forward.1} parent=75 // pred_check_branch
          %572 = sbr.rel (%p570) target = $region96
        $region95: #{transformer_cross_attn_forward.1} parent=75 // pred_region
          %573 = dma.done [#allocation9], 512
        $region96: #{transformer_cross_attn_forward.1} parent=75 // pred_fallthru
          _
        // Predicated region
        $region97: #{transformer_cross_attn_forward.1} parent=75 // pred_check
          %p574 = pneg %p234
        $region98: #{transformer_cross_attn_forward.1} parent=75 // pred_check_branch
          %576 = sbr.rel (%p574) target = $region100
        $region99: #{transformer_cross_attn_forward.1} parent=75 // pred_region
          %577 = dma.done [#allocation12], 384
        $region100: #{transformer_cross_attn_forward.1} parent=75 // pred_fallthru
          _
        // Predicated region
        $region101: #{transformer_cross_attn_forward.1} parent=75 // pred_check
          %p578 = pneg %p276
        $region102: #{transformer_cross_attn_forward.1} parent=75 // pred_check_branch
          %580 = sbr.rel (%p578) target = $region104
        $region103: #{transformer_cross_attn_forward.1} parent=75 // pred_region
          %581 = dma.done [#allocation12], 1024
        $region104: #{transformer_cross_attn_forward.1} parent=75 // pred_fallthru
          _
        // Predicated region
        $region105: #{transformer_cross_attn_forward.1} parent=75 // pred_check
          %p582 = pneg %p297
        $region106: #{transformer_cross_attn_forward.1} parent=75 // pred_check_branch
          %584 = sbr.rel (%p582) target = $region108
        $region107: #{transformer_cross_attn_forward.1} parent=75 // pred_region
          %585 = dma.done [#allocation15], 256
        $region108: #{transformer_cross_attn_forward.1} parent=75 // pred_fallthru
          _
        %s586 = sand.u32 %s48, 1
        %s587 = scalar_lea.sflag [#allocation3], %s586
        %s588 = sand.u32 %s48, 1
        %s589 = smul.addr %s588, 8
        %s590 = scalar_lea.vmem [#allocation2], %s589
        %p591 = pneg %p61
        %p592 = pneg %p58
        %p593 = scmp.lt.s32.totalorder %s40, 1
        %s594 = scalar_select %p593, %s40, 1
        %s595 = smul.addr %s594, 2
        %s596 = smul.addr %s595, 8
        %s597 = scalar_lea.vmem %s1, %s596
        %p598 = pneg %p87
        %p599 = pneg %p84
        %p600 = pneg %p108
        %p601 = pneg %p105
        %p602 = pneg %p129
        %p603 = pneg %p126
        %p604 = pneg %p150
        %p605 = pneg %p147
        %p606 = pneg %p171
        %p607 = pneg %p168
        %p608 = pneg %p192
        %p609 = pneg %p189
        %p610 = pneg %p213
        %p611 = pneg %p210
        %p612 = pneg %p234
        %p613 = pneg %p231
        %p614 = pneg %p255
        %p615 = pneg %p252
        %p616 = pneg %p276
        %p617 = pneg %p273
        %p618 = pneg %p297
        %p619 = pneg %p294
        %p620 = pneg %p318
        %p621 = pneg %p315
        %p622 = pneg %p339
        %p623 = pneg %p336
        %p624 = pneg %p365
        %p625 = pneg %p362
        %s626 = sand.u32 %s352, 1
        %s627 = scalar_lea.sflag [#allocation4], %s626
        %s628 = sand.u32 %s352, 1
        %s629 = scalar_lea.vmem [#allocation16], %s628
        %p630 = pneg %p391
        %p631 = pneg %p388
        %s632 = sand.u32 %s378, 1
        %s633 = scalar_lea.sflag [#allocation18], %s632
        %s634 = sand.u32 %s378, 1
        %s635 = scalar_lea.vmem [#allocation17], %s634
        %p636 = scmp.lt.s32.totalorder %s40, 1
        %s637 = scalar_select %p636, %s40, 1
        %s638 = smul.addr %s637, 2
        %s639 = smul.addr %s638, 8
        %s640 = scalar_lea.vmem %s1, %s639
        %v642 = vld [vmem:[%s553] sm:$0xff]
        %v643 = vpack.c.bf16 %v642, %v642
        %v644 = vld [vmem:[#allocation5] sm:$0xf]
        %v645 = vld [vmem:[#allocation5 + $0x4] sm:$0x3]
        %v646 = vld [vmem:[%s3] sm:$0xff]
        %v649 = vunpack.c.l.b16 %v644
        %v650 = vunpack.c.l.b16 %v645
        %v651 = vpack.c.b16 %v650, %v649
        %vm652 = vcmask 97280
        %v654 = vsel %vm652, %v643, 0
        %vm656 = vcmask 1045504
        %v658 = vsel %vm656, %v651, 0
        %660 = vmatprep.subr.bf16.mxu0 0
        %661 = vmatpush1.bf16.msra.mxu0 0
        %662 = vmatprep.subr.bf16.mxu0 0
        %663 = vmatpush1.bf16.msra.mxu0 0
        %664 = vmatprep.subr.bf16.mxu0 0
        %665 = vmatpush1.bf16.msra.mxu0 0
        %666 = vmatprep.subr.bf16.mxu0 0
        %667 = vmatpush1.bf16.msra.mxu0 0
        %668 = vmatprep.subr.bf16.mxu0 0
        %669 = vmatpush1.bf16.msra.mxu0 0
        %670 = vmatprep.subr.bf16.mxu0 0
        %671 = vmatpush1.bf16.msra.mxu0 0
        %672 = vmatprep.subr.bf16.mxu0 0
        %673 = vmatpush1.bf16.msra.mxu0 0
        %674 = vmatprep.subr.bf16.mxu0 0
        %675 = vmatpush1.bf16.msra.mxu0 %v658
        %676 = vmatprep.subr.bf16.mxu0 0
        %677 = vmatpush2.bf16.msra.mxu0 0
        %678 = vmatprep.subr.bf16.mxu0 0
        %679 = vmatpush2.bf16.msra.mxu0 0
        %680 = vmatprep.subr.bf16.mxu0 0
        %681 = vmatpush2.bf16.msra.mxu0 0
        %682 = vmatprep.subr.bf16.mxu0 0
        %683 = vmatpush2.bf16.msra.mxu0 0
        %684 = vmatprep.subr.bf16.mxu0 0
        %685 = vmatpush2.bf16.msra.mxu0 0
        %686 = vmatprep.subr.bf16.mxu0 0
        %687 = vmatpush2.bf16.msra.mxu0 0
        %688 = vmatprep.subr.bf16.mxu0 0
        %689 = vmatpush2.bf16.msra.mxu0 0
        %690 = vmatprep.subr.bf16.mxu0 0
        %691 = vmatpush2.bf16.msra.mxu0 0
        %692 = vmatprep.mubr.bf16.mxu0 0
        %693 = vmatmul.mubr.bf16.gmra.mxu0 %v654
        %v694 = vpop.f32.mrf.mxu0
        %v695 = vadd.f32 %v646, %v694
        %v696 = vpop.f32.mrf.mxu0
        %v697 = vpop.f32.mrf.mxu0
        %v698 = vpop.f32.mrf.mxu0
        %699 = vdwg.mxu0
        %v700 = vpack.c.bf16 %v695, %v695
        %v701 = vld [vmem:[#allocation10] sm:$0xf]
        %v702 = vld [vmem:[#allocation10 + $0x4] sm:$0xf]
        %v703 = vld [vmem:[#allocation10 + $0x8] sm:$0xf]
        %v704 = vld [vmem:[#allocation10 + $0xc] sm:$0xf]
        %v709 = vunpack.c.l.b16 %v701
        %v710 = vunpack.c.l.b16 %v702
        %v711 = vunpack.c.l.b16 %v703
        %v712 = vunpack.c.l.b16 %v704
        %v713 = vpack.c.b16 %v710, %v709
        %v714 = vpack.c.b16 %v712, %v711
        %vm717 = vcmask 261120
        %v719 = vsel %vm717, %v700, 0
        %721 = vmatprep.subr.bf16.mxu0 0
        %722 = vmatpush1.bf16.msra.mxu0 0
        %723 = vmatprep.subr.bf16.mxu0 0
        %724 = vmatpush1.bf16.msra.mxu0 0
        %725 = vmatprep.subr.bf16.mxu0 0
        %726 = vmatpush1.bf16.msra.mxu0 0
        %727 = vmatprep.subr.bf16.mxu0 0
        %728 = vmatpush1.bf16.msra.mxu0 0
        %729 = vmatprep.subr.bf16.mxu0 0
        %730 = vmatpush1.bf16.msra.mxu0 0
        %731 = vmatprep.subr.bf16.mxu0 0
        %732 = vmatpush1.bf16.msra.mxu0 0
        %733 = vmatprep.subr.bf16.mxu0 0
        %734 = vmatpush1.bf16.msra.mxu0 %v714
        %735 = vmatprep.subr.bf16.mxu0 0
        %736 = vmatpush1.bf16.msra.mxu0 %v713
        %737 = vmatprep.subr.bf16.mxu0 0
        %738 = vmatpush2.bf16.msra.mxu0 0
        %739 = vmatprep.subr.bf16.mxu0 0
        %740 = vmatpush2.bf16.msra.mxu0 0
        %741 = vmatprep.subr.bf16.mxu0 0
        %742 = vmatpush2.bf16.msra.mxu0 0
        %743 = vmatprep.subr.bf16.mxu0 0
        %744 = vmatpush2.bf16.msra.mxu0 0
        %745 = vmatprep.subr.bf16.mxu0 0
        %746 = vmatpush2.bf16.msra.mxu0 0
        %747 = vmatprep.subr.bf16.mxu0 0
        %748 = vmatpush2.bf16.msra.mxu0 0
        %749 = vmatprep.subr.bf16.mxu0 0
        %750 = vmatpush2.bf16.msra.mxu0 0
        %751 = vmatprep.subr.bf16.mxu0 0
        %752 = vmatpush2.bf16.msra.mxu0 0
        %753 = vmatprep.mubr.bf16.mxu0 0
        %754 = vmatmul.mubr.bf16.gmra.mxu0 %v719
        %v755 = vpop.f32.mrf.mxu0
        %v756 = vadd.f32 0.0, %v755
        %v757 = vpop.f32.mrf.mxu0
        %v758 = vpop.f32.mrf.mxu0
        %v759 = vpop.f32.mrf.mxu0
        %760 = vdwg.mxu0
        %v761 = vld [vmem:[#allocation11] sm:$0x1]
        %v762 = vlaneseq
        %v763 = vshrl.u32 %v762, 7
        %v764 = vsub.s32 0, %v763
        %v765 = vrot.slane %v761, %v764
        %v766 = vadd.f32 %v756, %v765
        %v767 = vld [vmem:[#allocation11 + $0x1] sm:$0x1]
        %v768 = vlaneseq
        %v769 = vshrl.u32 %v768, 7
        %v770 = vsub.s32 0, %v769
        %v771 = vrot.slane %v767, %v770
        %773 = vrot.lane.b32.xlu0 %v771, 32
        %v774 = vpop.permute.xlu0 %773
        %v776 = vadd.f32 %v756, %v774
        %v777 = vld [vmem:[#allocation11 + $0x2] sm:$0x1]
        %v778 = vlaneseq
        %v779 = vshrl.u32 %v778, 7
        %v780 = vsub.s32 0, %v779
        %v781 = vrot.slane %v777, %v780
        %783 = vrot.lane.b32.xlu0 %v781, 64
        %v784 = vpop.permute.xlu0 %783
        %v786 = vadd.f32 %v756, %v784
        %v787 = vpack.c.bf16 %v766, %v766
        %v788 = vpack.c.bf16 %v776, %v776
        %790 = vrot.lane.b32.xlu0 %v788, 96
        %v791 = vpop.permute.xlu0 %790
        %v793 = vsel %vm717, %v787, 0
        %v796 = vsel %vm717, %v791, 0
        %798 = vmatprep.subr.bf16.mxu0 0
        %799 = vmatpush1.bf16.xpose.msra.mxu0 0
        %800 = vmatprep.subr.bf16.mxu0 0
        %801 = vmatpush1.bf16.xpose.msra.mxu0 0
        %802 = vmatprep.subr.bf16.mxu0 0
        %803 = vmatpush1.bf16.xpose.msra.mxu0 0
        %804 = vmatprep.subr.bf16.mxu0 0
        %805 = vmatpush1.bf16.xpose.msra.mxu0 0
        %806 = vmatprep.subr.bf16.mxu0 0
        %807 = vmatpush1.bf16.xpose.msra.mxu0 0
        %808 = vmatprep.subr.bf16.mxu0 0
        %809 = vmatpush1.bf16.xpose.msra.mxu0 0
        %810 = vmatprep.subr.bf16.mxu0 0
        %811 = vmatpush1.bf16.xpose.msra.mxu0 0
        %812 = vmatprep.subr.bf16.mxu0 0
        %813 = vmatpush1.bf16.xpose.msra.mxu0 %v796
        %814 = vmatprep.subr.bf16.mxu0 0
        %815 = vmatpush2.bf16.xpose.msra.mxu0 0
        %816 = vmatprep.subr.bf16.mxu0 0
        %817 = vmatpush2.bf16.xpose.msra.mxu0 0
        %818 = vmatprep.subr.bf16.mxu0 0
        %819 = vmatpush2.bf16.xpose.msra.mxu0 0
        %820 = vmatprep.subr.bf16.mxu0 0
        %821 = vmatpush2.bf16.xpose.msra.mxu0 0
        %822 = vmatprep.subr.bf16.mxu0 0
        %823 = vmatpush2.bf16.xpose.msra.mxu0 0
        %824 = vmatprep.subr.bf16.mxu0 0
        %825 = vmatpush2.bf16.xpose.msra.mxu0 0
        %826 = vmatprep.subr.bf16.mxu0 0
        %827 = vmatpush2.bf16.xpose.msra.mxu0 0
        %828 = vmatprep.subr.bf16.mxu0 0
        %829 = vmatpush2.bf16.xpose.msra.mxu0 0
        %830 = vmatprep.mubr.bf16.mxu0 0
        %831 = vmatmul.mubr.bf16.gmra.mxu0 %v793
        %v832 = vpop.f32.mrf.mxu0
        %v833 = vadd.f32 0.0, %v832
        %v834 = vpop.f32.mrf.mxu0
        %v835 = vpop.f32.mrf.mxu0
        %v836 = vpop.f32.mrf.mxu0
        %837 = vdwg.mxu0
        %v838 = vmul.f32 %v833, 0.17677669
        %vm839 = vcmask 64512
        %v840 = vsel %vm839, %v838, -inf
        %841 = vmax.xlane.f32.xlu0 %v840
        %v842 = vpop.xlane.xlu0 %841
        %v843 = vsub.f32 %v838, %v842
        %v844 = vmul.f32 %v843, 1.442695
        %v845 = vpow.pop %v844
        %v846 = vsel %vm839, %v845, 0.0
        %847 = vadd.xlane.f32.xlu0 %v846
        %v848 = vpop.xlane.xlu0 %847
        %v849 = vrcp.pop %v848
        %v850 = vmul.f32 %v845, %v849
        %v851 = vpack.c.bf16 %v850, %v850
        %v852 = vpack.c.bf16 %v786, %v786
        %854 = vrot.lane.b32.xlu0 %v852, 64
        %v855 = vpop.permute.xlu0 %854
        %v857 = vsel %vm839, %v851, 0
        %vm859 = vcmask 1043456
        %v861 = vsel %vm859, %v855, 0
        %863 = vmatprep.subr.bf16.mxu0 0
        %864 = vmatpush1.bf16.msra.mxu0 0
        %865 = vmatprep.subr.bf16.mxu0 0
        %866 = vmatpush1.bf16.msra.mxu0 0
        %867 = vmatprep.subr.bf16.mxu0 0
        %868 = vmatpush1.bf16.msra.mxu0 0
        %869 = vmatprep.subr.bf16.mxu0 0
        %870 = vmatpush1.bf16.msra.mxu0 0
        %871 = vmatprep.subr.bf16.mxu0 0
        %872 = vmatpush1.bf16.msra.mxu0 0
        %873 = vmatprep.subr.bf16.mxu0 0
        %874 = vmatpush1.bf16.msra.mxu0 0
        %875 = vmatprep.subr.bf16.mxu0 0
        %876 = vmatpush1.bf16.msra.mxu0 0
        %877 = vmatprep.subr.bf16.mxu0 0
        %878 = vmatpush1.bf16.msra.mxu0 %v861
        %879 = vmatprep.subr.bf16.mxu0 0
        %880 = vmatpush2.bf16.msra.mxu0 0
        %881 = vmatprep.subr.bf16.mxu0 0
        %882 = vmatpush2.bf16.msra.mxu0 0
        %883 = vmatprep.subr.bf16.mxu0 0
        %884 = vmatpush2.bf16.msra.mxu0 0
        %885 = vmatprep.subr.bf16.mxu0 0
        %886 = vmatpush2.bf16.msra.mxu0 0
        %887 = vmatprep.subr.bf16.mxu0 0
        %888 = vmatpush2.bf16.msra.mxu0 0
        %889 = vmatprep.subr.bf16.mxu0 0
        %890 = vmatpush2.bf16.msra.mxu0 0
        %891 = vmatprep.subr.bf16.mxu0 0
        %892 = vmatpush2.bf16.msra.mxu0 0
        %893 = vmatprep.subr.bf16.mxu0 0
        %894 = vmatpush2.bf16.msra.mxu0 0
        %895 = vmatprep.mubr.bf16.mxu0 0
        %896 = vmatmul.mubr.bf16.gmra.mxu0 %v857
        %v897 = vpop.f32.mrf.mxu0
        %v898 = vadd.f32 0.0, %v897
        %v899 = vpop.f32.mrf.mxu0
        %v900 = vpop.f32.mrf.mxu0
        %v901 = vpop.f32.mrf.mxu0
        %902 = vdwg.mxu0
        %v903 = vpack.c.bf16 %v898, %v898
        %v904 = vld [vmem:[%s7] sm:$0xf]
        %v905 = vld [vmem:[%s7 + $0x4] sm:$0xf]
        %v906 = vld [vmem:[%s7 + $0x8] sm:$0xf]
        %v907 = vld [vmem:[%s7 + $0xc] sm:$0xf]
        %v908 = vld [vmem:[#allocation11 + $0x3] sm:$0x1]
        %v909 = vlaneseq
        %v910 = vshrl.u32 %v909, 7
        %v911 = vsub.s32 0, %v910
        %v912 = vrot.slane %v908, %v911
        %v917 = vunpack.c.l.b16 %v904
        %v918 = vunpack.c.l.b16 %v905
        %v919 = vunpack.c.l.b16 %v906
        %v920 = vunpack.c.l.b16 %v907
        %v921 = vpack.c.b16 %v918, %v917
        %v922 = vpack.c.b16 %v920, %v919
        %v926 = vsel %vm717, %v903, 0
        %928 = vmatprep.subr.bf16.mxu0 0
        %929 = vmatpush1.bf16.msra.mxu0 0
        %930 = vmatprep.subr.bf16.mxu0 0
        %931 = vmatpush1.bf16.msra.mxu0 0
        %932 = vmatprep.subr.bf16.mxu0 0
        %933 = vmatpush1.bf16.msra.mxu0 0
        %934 = vmatprep.subr.bf16.mxu0 0
        %935 = vmatpush1.bf16.msra.mxu0 0
        %936 = vmatprep.subr.bf16.mxu0 0
        %937 = vmatpush1.bf16.msra.mxu0 0
        %938 = vmatprep.subr.bf16.mxu0 0
        %939 = vmatpush1.bf16.msra.mxu0 0
        %940 = vmatprep.subr.bf16.mxu0 0
        %941 = vmatpush1.bf16.msra.mxu0 %v922
        %942 = vmatprep.subr.bf16.mxu0 0
        %943 = vmatpush1.bf16.msra.mxu0 %v921
        %944 = vmatprep.subr.bf16.mxu0 0
        %945 = vmatpush2.bf16.msra.mxu0 0
        %946 = vmatprep.subr.bf16.mxu0 0
        %947 = vmatpush2.bf16.msra.mxu0 0
        %948 = vmatprep.subr.bf16.mxu0 0
        %949 = vmatpush2.bf16.msra.mxu0 0
        %950 = vmatprep.subr.bf16.mxu0 0
        %951 = vmatpush2.bf16.msra.mxu0 0
        %952 = vmatprep.subr.bf16.mxu0 0
        %953 = vmatpush2.bf16.msra.mxu0 0
        %954 = vmatprep.subr.bf16.mxu0 0
        %955 = vmatpush2.bf16.msra.mxu0 0
        %956 = vmatprep.subr.bf16.mxu0 0
        %957 = vmatpush2.bf16.msra.mxu0 0
        %958 = vmatprep.subr.bf16.mxu0 0
        %959 = vmatpush2.bf16.msra.mxu0 0
        %960 = vmatprep.mubr.bf16.mxu0 0
        %961 = vmatmul.mubr.bf16.gmra.mxu0 %v926
        %v962 = vpop.f32.mrf.mxu0
        %v963 = vadd.f32 %v912, %v962
        %v964 = vpop.f32.mrf.mxu0
        %v965 = vpop.f32.mrf.mxu0
        %v966 = vpop.f32.mrf.mxu0
        %967 = vdwg.mxu0
        %v968 = vadd.f32 %v963, %v695
        %v969 = vld [vmem:[#allocation11 + $0x6] sm:$0x1]
        %v970 = vld [vmem:[#allocation11 + $0x7] sm:$0x1]
        %v971 = vsel %vm717, %v968, 0.0
        %972 = vadd.xlane.f32.xlu0 %v971
        %v973 = vpop.xlane.xlu0 %972
        %v974 = vrcp.pop 32.0
        %v975 = vmul.f32 %v973, %v974
        %v976 = vsub.f32 %v968, %v975
        %v977 = vmul.f32 %v976, %v976
        %v978 = vsel %vm717, %v977, 0.0
        %979 = vadd.xlane.f32.xlu0 %v978
        %v980 = vpop.xlane.xlu0 %979
        %v981 = vmul.f32 %v980, %v974
        %v982 = vadd.f32 %v981, 1e-05
        %v983 = vrsqrt.pop %v982
        %v984 = vmul.f32 %v976, %v983
        %v985 = vlaneseq
        %v986 = vshrl.u32 %v985, 7
        %v987 = vsub.s32 0, %v986
        %v988 = vrot.slane %v969, %v987
        %v989 = vmul.f32 %v984, %v988
        %v990 = vlaneseq
        %v991 = vshrl.u32 %v990, 7
        %v992 = vsub.s32 0, %v991
        %v993 = vrot.slane %v970, %v992
        %v994 = vadd.f32 %v989, %v993
        %v995 = vpack.c.bf16 %v994, %v994
        %s996 = scalar_lea.vmem %s7, 16
        %v997 = vld [vmem:[%s996] sm:$0xf]
        %v998 = vld [vmem:[%s996 + $0x4] sm:$0xf]
        %v999 = vld [vmem:[%s996 + $0x8] sm:$0xf]
        %v1000 = vld [vmem:[%s996 + $0xc] sm:$0xf]
        %v1001 = vld [vmem:[#allocation11 + $0x4] sm:$0x1]
        %v1002 = vlaneseq
        %v1003 = vshrl.u32 %v1002, 7
        %v1004 = vsub.s32 0, %v1003
        %v1005 = vrot.slane %v1001, %v1004
        %v1010 = vunpack.c.l.b16 %v997
        %v1011 = vunpack.c.l.b16 %v998
        %v1012 = vunpack.c.l.b16 %v999
        %v1013 = vunpack.c.l.b16 %v1000
        %v1014 = vpack.c.b16 %v1011, %v1010
        %v1015 = vpack.c.b16 %v1013, %v1012
        %v1019 = vsel %vm717, %v995, 0
        %1021 = vmatprep.subr.bf16.mxu0 0
        %1022 = vmatpush1.bf16.msra.mxu0 0
        %1023 = vmatprep.subr.bf16.mxu0 0
        %1024 = vmatpush1.bf16.msra.mxu0 0
        %1025 = vmatprep.subr.bf16.mxu0 0
        %1026 = vmatpush1.bf16.msra.mxu0 0
        %1027 = vmatprep.subr.bf16.mxu0 0
        %1028 = vmatpush1.bf16.msra.mxu0 0
        %1029 = vmatprep.subr.bf16.mxu0 0
        %1030 = vmatpush1.bf16.msra.mxu0 0
        %1031 = vmatprep.subr.bf16.mxu0 0
        %1032 = vmatpush1.bf16.msra.mxu0 0
        %1033 = vmatprep.subr.bf16.mxu0 0
        %1034 = vmatpush1.bf16.msra.mxu0 %v1015
        %1035 = vmatprep.subr.bf16.mxu0 0
        %1036 = vmatpush1.bf16.msra.mxu0 %v1014
        %1037 = vmatprep.subr.bf16.mxu0 0
        %1038 = vmatpush2.bf16.msra.mxu0 0
        %1039 = vmatprep.subr.bf16.mxu0 0
        %1040 = vmatpush2.bf16.msra.mxu0 0
        %1041 = vmatprep.subr.bf16.mxu0 0
        %1042 = vmatpush2.bf16.msra.mxu0 0
        %1043 = vmatprep.subr.bf16.mxu0 0
        %1044 = vmatpush2.bf16.msra.mxu0 0
        %1045 = vmatprep.subr.bf16.mxu0 0
        %1046 = vmatpush2.bf16.msra.mxu0 0
        %1047 = vmatprep.subr.bf16.mxu0 0
        %1048 = vmatpush2.bf16.msra.mxu0 0
        %1049 = vmatprep.subr.bf16.mxu0 0
        %1050 = vmatpush2.bf16.msra.mxu0 0
        %1051 = vmatprep.subr.bf16.mxu0 0
        %1052 = vmatpush2.bf16.msra.mxu0 0
        %1053 = vmatprep.mubr.bf16.mxu0 0
        %1054 = vmatmul.mubr.bf16.gmra.mxu0 %v1019
        %v1055 = vpop.f32.mrf.mxu0
        %v1056 = vadd.f32 %v1005, %v1055
        %v1057 = vpop.f32.mrf.mxu0
        %v1058 = vpop.f32.mrf.mxu0
        %v1059 = vpop.f32.mrf.mxu0
        %1060 = vdwg.mxu0
        %v1061 = vmax.f32 %v1056, 0.0
        %v1062 = vpack.c.bf16 %v1061, %v1061
        %s1063 = scalar_lea.vmem %s7, 32
        %v1064 = vld [vmem:[%s1063] sm:$0xf]
        %v1065 = vld [vmem:[%s1063 + $0x4] sm:$0xf]
        %v1066 = vld [vmem:[%s1063 + $0x8] sm:$0xf]
        %v1067 = vld [vmem:[%s1063 + $0xc] sm:$0xf]
        %v1068 = vld [vmem:[#allocation11 + $0x5] sm:$0x1]
        %v1069 = vlaneseq
        %v1070 = vshrl.u32 %v1069, 7
        %v1071 = vsub.s32 0, %v1070
        %v1072 = vrot.slane %v1068, %v1071
        %v1077 = vunpack.c.l.b16 %v1064
        %v1078 = vunpack.c.l.b16 %v1065
        %v1079 = vunpack.c.l.b16 %v1066
        %v1080 = vunpack.c.l.b16 %v1067
        %v1081 = vpack.c.b16 %v1078, %v1077
        %v1082 = vpack.c.b16 %v1080, %v1079
        %v1086 = vsel %vm717, %v1062, 0
        %1088 = vmatprep.subr.bf16.mxu0 0
        %1089 = vmatpush1.bf16.msra.mxu0 0
        %1090 = vmatprep.subr.bf16.mxu0 0
        %1091 = vmatpush1.bf16.msra.mxu0 0
        %1092 = vmatprep.subr.bf16.mxu0 0
        %1093 = vmatpush1.bf16.msra.mxu0 0
        %1094 = vmatprep.subr.bf16.mxu0 0
        %1095 = vmatpush1.bf16.msra.mxu0 0
        %1096 = vmatprep.subr.bf16.mxu0 0
        %1097 = vmatpush1.bf16.msra.mxu0 0
        %1098 = vmatprep.subr.bf16.mxu0 0
        %1099 = vmatpush1.bf16.msra.mxu0 0
        %1100 = vmatprep.subr.bf16.mxu0 0
        %1101 = vmatpush1.bf16.msra.mxu0 %v1082
        %1102 = vmatprep.subr.bf16.mxu0 0
        %1103 = vmatpush1.bf16.msra.mxu0 %v1081
        %1104 = vmatprep.subr.bf16.mxu0 0
        %1105 = vmatpush2.bf16.msra.mxu0 0
        %1106 = vmatprep.subr.bf16.mxu0 0
        %1107 = vmatpush2.bf16.msra.mxu0 0
        %1108 = vmatprep.subr.bf16.mxu0 0
        %1109 = vmatpush2.bf16.msra.mxu0 0
        %1110 = vmatprep.subr.bf16.mxu0 0
        %1111 = vmatpush2.bf16.msra.mxu0 0
        %1112 = vmatprep.subr.bf16.mxu0 0
        %1113 = vmatpush2.bf16.msra.mxu0 0
        %1114 = vmatprep.subr.bf16.mxu0 0
        %1115 = vmatpush2.bf16.msra.mxu0 0
        %1116 = vmatprep.subr.bf16.mxu0 0
        %1117 = vmatpush2.bf16.msra.mxu0 0
        %1118 = vmatprep.subr.bf16.mxu0 0
        %1119 = vmatpush2.bf16.msra.mxu0 0
        %1120 = vmatprep.mubr.bf16.mxu0 0
        %1121 = vmatmul.mubr.bf16.gmra.mxu0 %v1086
        %v1122 = vpop.f32.mrf.mxu0
        %v1123 = vadd.f32 %v1072, %v1122
        %v1124 = vpop.f32.mrf.mxu0
        %v1125 = vpop.f32.mrf.mxu0
        %v1126 = vpop.f32.mrf.mxu0
        %1127 = vdwg.mxu0
        %v1128 = vmax.f32 %v1123, 0.0
        %v1129 = vadd.f32 %v1128, %v994
        %v1130 = vld [vmem:[#allocation11 + $0x8] sm:$0x1]
        %v1131 = vld [vmem:[#allocation11 + $0x9] sm:$0x1]
        %v1132 = vsel %vm717, %v1129, 0.0
        %1133 = vadd.xlane.f32.xlu0 %v1132
        %v1134 = vpop.xlane.xlu0 %1133
        %v1135 = vmul.f32 %v1134, %v974
        %v1136 = vsub.f32 %v1129, %v1135
        %v1137 = vmul.f32 %v1136, %v1136
        %v1138 = vsel %vm717, %v1137, 0.0
        %1139 = vadd.xlane.f32.xlu0 %v1138
        %v1140 = vpop.xlane.xlu0 %1139
        %v1141 = vmul.f32 %v1140, %v974
        %v1142 = vadd.f32 %v1141, 1e-05
        %v1143 = vrsqrt.pop %v1142
        %v1144 = vmul.f32 %v1136, %v1143
        %v1145 = vlaneseq
        %v1146 = vshrl.u32 %v1145, 7
        %v1147 = vsub.s32 0, %v1146
        %v1148 = vrot.slane %v1130, %v1147
        %v1149 = vmul.f32 %v1144, %v1148
        %v1150 = vlaneseq
        %v1151 = vshrl.u32 %v1150, 7
        %v1152 = vsub.s32 0, %v1151
        %v1153 = vrot.slane %v1131, %v1152
        %v1154 = vadd.f32 %v1149, %v1153
        %v1155 = vld [vmem:[%s640] sm:$0xff]
        %v1156 = vld [vmem:[%s640 + $0x8] sm:$0x3]
        %v1157 = vpack.c.bf16 %v1156, %v1155
        %v1158 = vld [vmem:[#allocation7] sm:$0xf]
        %v1159 = vld [vmem:[#allocation7 + $0x4] sm:$0x1]
        %v1160 = vld [vmem:[#allocation8] sm:$0xff]
        %v1161 = vld [vmem:[#allocation8 + $0x8] sm:$0x3]
        %v1164 = vunpack.c.l.b16 %v1158
        %v1165 = vunpack.c.l.b16 %v1159
        %v1166 = vpack.c.b16 %v1165, %v1164
        %vm1167 = vcmask 80896
        %v1169 = vsel %vm1167, %v1157, 0
        %vm1171 = vcmask 1044480
        %v1173 = vsel %vm1171, %v1166, 0
        %1175 = vmatprep.subr.bf16.mxu0 0
        %1176 = vmatpush1.bf16.msra.mxu0 0
        %1177 = vmatprep.subr.bf16.mxu0 0
        %1178 = vmatpush1.bf16.msra.mxu0 0
        %1179 = vmatprep.subr.bf16.mxu0 0
        %1180 = vmatpush1.bf16.msra.mxu0 0
        %1181 = vmatprep.subr.bf16.mxu0 0
        %1182 = vmatpush1.bf16.msra.mxu0 0
        %1183 = vmatprep.subr.bf16.mxu0 0
        %1184 = vmatpush1.bf16.msra.mxu0 0
        %1185 = vmatprep.subr.bf16.mxu0 0
        %1186 = vmatpush1.bf16.msra.mxu0 0
        %1187 = vmatprep.subr.bf16.mxu0 0
        %1188 = vmatpush1.bf16.msra.mxu0 0
        %1189 = vmatprep.subr.bf16.mxu0 0
        %1190 = vmatpush1.bf16.msra.mxu0 %v1173
        %1191 = vmatprep.subr.bf16.mxu0 0
        %1192 = vmatpush2.bf16.msra.mxu0 0
        %1193 = vmatprep.subr.bf16.mxu0 0
        %1194 = vmatpush2.bf16.msra.mxu0 0
        %1195 = vmatprep.subr.bf16.mxu0 0
        %1196 = vmatpush2.bf16.msra.mxu0 0
        %1197 = vmatprep.subr.bf16.mxu0 0
        %1198 = vmatpush2.bf16.msra.mxu0 0
        %1199 = vmatprep.subr.bf16.mxu0 0
        %1200 = vmatpush2.bf16.msra.mxu0 0
        %1201 = vmatprep.subr.bf16.mxu0 0
        %1202 = vmatpush2.bf16.msra.mxu0 0
        %1203 = vmatprep.subr.bf16.mxu0 0
        %1204 = vmatpush2.bf16.msra.mxu0 0
        %1205 = vmatprep.subr.bf16.mxu0 0
        %1206 = vmatpush2.bf16.msra.mxu0 0
        %1207 = vmatprep.mubr.bf16.mxu0 0
        %1208 = vmatmul.mubr.bf16.gmra.mxu0 %v1169
        %v1209 = vpop.f32.mrf.mxu0
        %v1210 = vadd.f32 %v1160, %v1209
        %v1211 = vpop.f32.mrf.mxu0
        %v1212 = vpop.f32.mrf.mxu0
        %v1213 = vadd.f32 %v1161, %v1212
        %v1214 = vpop.f32.mrf.mxu0
        %1215 = vdwg.mxu0
        %v1216 = vpack.c.bf16 %v1213, %v1210
        %s1217 = scalar_lea.vmem [#allocation10], 16
        %v1218 = vld [vmem:[%s1217] sm:$0xf]
        %v1219 = vld [vmem:[%s1217 + $0x4] sm:$0xf]
        %v1220 = vld [vmem:[%s1217 + $0x8] sm:$0xf]
        %v1221 = vld [vmem:[%s1217 + $0xc] sm:$0xf]
        %v1226 = vunpack.c.l.b16 %v1218
        %v1227 = vunpack.c.l.b16 %v1219
        %v1228 = vunpack.c.l.b16 %v1220
        %v1229 = vunpack.c.l.b16 %v1221
        %v1230 = vpack.c.b16 %v1227, %v1226
        %v1231 = vpack.c.b16 %v1229, %v1228
        %v1235 = vsel %vm717, %v1216, 0
        %1237 = vmatprep.subr.bf16.mxu0 0
        %1238 = vmatpush1.bf16.msra.mxu0 0
        %1239 = vmatprep.subr.bf16.mxu0 0
        %1240 = vmatpush1.bf16.msra.mxu0 0
        %1241 = vmatprep.subr.bf16.mxu0 0
        %1242 = vmatpush1.bf16.msra.mxu0 0
        %1243 = vmatprep.subr.bf16.mxu0 0
        %1244 = vmatpush1.bf16.msra.mxu0 0
        %1245 = vmatprep.subr.bf16.mxu0 0
        %1246 = vmatpush1.bf16.msra.mxu0 0
        %1247 = vmatprep.subr.bf16.mxu0 0
        %1248 = vmatpush1.bf16.msra.mxu0 0
        %1249 = vmatprep.subr.bf16.mxu0 0
        %1250 = vmatpush1.bf16.msra.mxu0 %v1231
        %1251 = vmatprep.subr.bf16.mxu0 0
        %1252 = vmatpush1.bf16.msra.mxu0 %v1230
        %1253 = vmatprep.subr.bf16.mxu0 0
        %1254 = vmatpush2.bf16.msra.mxu0 0
        %1255 = vmatprep.subr.bf16.mxu0 0
        %1256 = vmatpush2.bf16.msra.mxu0 0
        %1257 = vmatprep.subr.bf16.mxu0 0
        %1258 = vmatpush2.bf16.msra.mxu0 0
        %1259 = vmatprep.subr.bf16.mxu0 0
        %1260 = vmatpush2.bf16.msra.mxu0 0
        %1261 = vmatprep.subr.bf16.mxu0 0
        %1262 = vmatpush2.bf16.msra.mxu0 0
        %1263 = vmatprep.subr.bf16.mxu0 0
        %1264 = vmatpush2.bf16.msra.mxu0 0
        %1265 = vmatprep.subr.bf16.mxu0 0
        %1266 = vmatpush2.bf16.msra.mxu0 0
        %1267 = vmatprep.subr.bf16.mxu0 0
        %1268 = vmatpush2.bf16.msra.mxu0 0
        %1269 = vmatprep.mubr.bf16.mxu0 0
        %1270 = vmatmul.mubr.bf16.gmra.mxu0 %v1235
        %v1271 = vpop.f32.mrf.mxu0
        %v1272 = vadd.f32 0.0, %v1271
        %v1273 = vpop.f32.mrf.mxu0
        %v1274 = vpop.f32.mrf.mxu0
        %v1275 = vadd.f32 0.0, %v1274
        %v1276 = vpop.f32.mrf.mxu0
        %1277 = vdwg.mxu0
        %v1278 = vld [vmem:[#allocation11 + $0xa] sm:$0x1]
        %v1279 = vlaneseq
        %v1280 = vshrl.u32 %v1279, 7
        %v1281 = vsub.s32 0, %v1280
        %v1282 = vrot.slane %v1278, %v1281
        %v1283 = vadd.f32 %v1272, %v1282
        %v1284 = vadd.f32 %v1275, %v1282
        %v1285 = vld [vmem:[#allocation11 + $0xb] sm:$0x1]
        %v1286 = vlaneseq
        %v1287 = vshrl.u32 %v1286, 7
        %v1288 = vsub.s32 0, %v1287
        %v1289 = vrot.slane %v1285, %v1288
        %1291 = vrot.lane.b32.xlu0 %v1289, 32
        %v1292 = vpop.permute.xlu0 %1291
        %v1294 = vadd.f32 %v1272, %v1292
        %v1295 = vadd.f32 %v1275, %v1292
        %v1296 = vld [vmem:[#allocation11 + $0xc] sm:$0x1]
        %v1297 = vlaneseq
        %v1298 = vshrl.u32 %v1297, 7
        %v1299 = vsub.s32 0, %v1298
        %v1300 = vrot.slane %v1296, %v1299
        %1302 = vrot.lane.b32.xlu0 %v1300, 64
        %v1303 = vpop.permute.xlu0 %1302
        %v1305 = vadd.f32 %v1272, %v1303
        %v1306 = vadd.f32 %v1275, %v1303
        %v1307 = vpack.c.bf16 %v1284, %v1283
        %v1308 = vpack.c.bf16 %v1295, %v1294
        %1310 = vrot.lane.b32.xlu0 %v1308, 96
        %v1311 = vpop.permute.xlu0 %1310
        %v1313 = vsel %vm717, %v1307, 0
        %v1316 = vsel %vm717, %v1311, 0
        %1318 = vmatprep.subr.bf16.mxu0 0
        %1319 = vmatpush1.bf16.xpose.msra.mxu0 0
        %1320 = vmatprep.subr.bf16.mxu0 0
        %1321 = vmatpush1.bf16.xpose.msra.mxu0 0
        %1322 = vmatprep.subr.bf16.mxu0 0
        %1323 = vmatpush1.bf16.xpose.msra.mxu0 0
        %1324 = vmatprep.subr.bf16.mxu0 0
        %1325 = vmatpush1.bf16.xpose.msra.mxu0 0
        %1326 = vmatprep.subr.bf16.mxu0 0
        %1327 = vmatpush1.bf16.xpose.msra.mxu0 0
        %1328 = vmatprep.subr.bf16.mxu0 0
        %1329 = vmatpush1.bf16.xpose.msra.mxu0 0
        %1330 = vmatprep.subr.bf16.mxu0 0
        %1331 = vmatpush1.bf16.xpose.msra.mxu0 0
        %1332 = vmatprep.subr.bf16.mxu0 0
        %1333 = vmatpush1.bf16.xpose.msra.mxu0 %v1316
        %1334 = vmatprep.subr.bf16.mxu0 0
        %1335 = vmatpush2.bf16.xpose.msra.mxu0 0
        %1336 = vmatprep.subr.bf16.mxu0 0
        %1337 = vmatpush2.bf16.xpose.msra.mxu0 0
        %1338 = vmatprep.subr.bf16.mxu0 0
        %1339 = vmatpush2.bf16.xpose.msra.mxu0 0
        %1340 = vmatprep.subr.bf16.mxu0 0
        %1341 = vmatpush2.bf16.xpose.msra.mxu0 0
        %1342 = vmatprep.subr.bf16.mxu0 0
        %1343 = vmatpush2.bf16.xpose.msra.mxu0 0
        %1344 = vmatprep.subr.bf16.mxu0 0
        %1345 = vmatpush2.bf16.xpose.msra.mxu0 0
        %1346 = vmatprep.subr.bf16.mxu0 0
        %1347 = vmatpush2.bf16.xpose.msra.mxu0 0
        %1348 = vmatprep.subr.bf16.mxu0 0
        %1349 = vmatpush2.bf16.xpose.msra.mxu0 0
        %1350 = vmatprep.mubr.bf16.mxu0 0
        %1351 = vmatmul.mubr.bf16.gmra.mxu0 %v1313
        %v1352 = vpop.f32.mrf.mxu0
        %v1353 = vadd.f32 0.0, %v1352
        %v1354 = vpop.f32.mrf.mxu0
        %v1355 = vpop.f32.mrf.mxu0
        %v1356 = vadd.f32 0.0, %v1355
        %v1357 = vpop.f32.mrf.mxu0
        %1358 = vdwg.mxu0
        %v1359 = vmul.f32 %v1353, 0.17677669
        %v1360 = vmul.f32 %v1356, 0.17677669
        %v1361 = vsel %vm1167, %v1359, -inf
        %1362 = vmax.xlane.f32.xlu0 %v1361
        %v1363 = vpop.xlane.xlu0 %1362
        %vm1364 = vcmask 74752
        %v1365 = vsel %vm1364, %v1360, -inf
        %1366 = vmax.xlane.f32.xlu0 %v1365
        %v1367 = vpop.xlane.xlu0 %1366
        %v1368 = vsub.f32 %v1359, %v1363
        %v1369 = vsub.f32 %v1360, %v1367
        %v1370 = vmul.f32 %v1368, 1.442695
        %v1371 = vpow.pop %v1370
        %v1372 = vmul.f32 %v1369, 1.442695
        %v1373 = vpow.pop %v1372
        %v1374 = vsel %vm1167, %v1371, 0.0
        %1375 = vadd.xlane.f32.xlu0 %v1374
        %v1376 = vpop.xlane.xlu0 %1375
        %v1377 = vsel %vm1364, %v1373, 0.0
        %1378 = vadd.xlane.f32.xlu0 %v1377
        %v1379 = vpop.xlane.xlu0 %1378
        %v1380 = vrcp.pop %v1376
        %v1381 = vrcp.pop %v1379
        %v1382 = vmul.f32 %v1371, %v1380
        %v1383 = vmul.f32 %v1373, %v1381
        %v1384 = vpack.c.bf16 %v1383, %v1382
        %v1385 = vpack.c.bf16 %v1306, %v1305
        %1387 = vrot.lane.b32.xlu0 %v1385, 64
        %v1388 = vpop.permute.xlu0 %1387
        %v1390 = vsel %vm1167, %v1384, 0
        %v1393 = vsel %vm1171, %v1388, 0
        %1395 = vmatprep.subr.bf16.mxu0 0
        %1396 = vmatpush1.bf16.msra.mxu0 0
        %1397 = vmatprep.subr.bf16.mxu0 0
        %1398 = vmatpush1.bf16.msra.mxu0 0
        %1399 = vmatprep.subr.bf16.mxu0 0
        %1400 = vmatpush1.bf16.msra.mxu0 0
        %1401 = vmatprep.subr.bf16.mxu0 0
        %1402 = vmatpush1.bf16.msra.mxu0 0
        %1403 = vmatprep.subr.bf16.mxu0 0
        %1404 = vmatpush1.bf16.msra.mxu0 0
        %1405 = vmatprep.subr.bf16.mxu0 0
        %1406 = vmatpush1.bf16.msra.mxu0 0
        %1407 = vmatprep.subr.bf16.mxu0 0
        %1408 = vmatpush1.bf16.msra.mxu0 0
        %1409 = vmatprep.subr.bf16.mxu0 0
        %1410 = vmatpush1.bf16.msra.mxu0 %v1393
        %1411 = vmatprep.subr.bf16.mxu0 0
        %1412 = vmatpush2.bf16.msra.mxu0 0
        %1413 = vmatprep.subr.bf16.mxu0 0
        %1414 = vmatpush2.bf16.msra.mxu0 0
        %1415 = vmatprep.subr.bf16.mxu0 0
        %1416 = vmatpush2.bf16.msra.mxu0 0
        %1417 = vmatprep.subr.bf16.mxu0 0
        %1418 = vmatpush2.bf16.msra.mxu0 0
        %1419 = vmatprep.subr.bf16.mxu0 0
        %1420 = vmatpush2.bf16.msra.mxu0 0
        %1421 = vmatprep.subr.bf16.mxu0 0
        %1422 = vmatpush2.bf16.msra.mxu0 0
        %1423 = vmatprep.subr.bf16.mxu0 0
        %1424 = vmatpush2.bf16.msra.mxu0 0
        %1425 = vmatprep.subr.bf16.mxu0 0
        %1426 = vmatpush2.bf16.msra.mxu0 0
        %1427 = vmatprep.mubr.bf16.mxu0 0
        %1428 = vmatmul.mubr.bf16.gmra.mxu0 %v1390
        %v1429 = vpop.f32.mrf.mxu0
        %v1430 = vadd.f32 0.0, %v1429
        %v1431 = vpop.f32.mrf.mxu0
        %v1432 = vpop.f32.mrf.mxu0
        %v1433 = vadd.f32 0.0, %v1432
        %v1434 = vpop.f32.mrf.mxu0
        %1435 = vdwg.mxu0
        %v1436 = vpack.c.bf16 %v1433, %v1430
        %s1437 = scalar_lea.vmem %s7, 48
        %v1438 = vld [vmem:[%s1437] sm:$0xf]
        %v1439 = vld [vmem:[%s1437 + $0x4] sm:$0xf]
        %v1440 = vld [vmem:[%s1437 + $0x8] sm:$0xf]
        %v1441 = vld [vmem:[%s1437 + $0xc] sm:$0xf]
        %v1442 = vld [vmem:[#allocation11 + $0xd] sm:$0x1]
        %v1443 = vlaneseq
        %v1444 = vshrl.u32 %v1443, 7
        %v1445 = vsub.s32 0, %v1444
        %v1446 = vrot.slane %v1442, %v1445
        %v1451 = vunpack.c.l.b16 %v1438
        %v1452 = vunpack.c.l.b16 %v1439
        %v1453 = vunpack.c.l.b16 %v1440
        %v1454 = vunpack.c.l.b16 %v1441
        %v1455 = vpack.c.b16 %v1452, %v1451
        %v1456 = vpack.c.b16 %v1454, %v1453
        %v1460 = vsel %vm717, %v1436, 0
        %1462 = vmatprep.subr.bf16.mxu0 0
        %1463 = vmatpush1.bf16.msra.mxu0 0
        %1464 = vmatprep.subr.bf16.mxu0 0
        %1465 = vmatpush1.bf16.msra.mxu0 0
        %1466 = vmatprep.subr.bf16.mxu0 0
        %1467 = vmatpush1.bf16.msra.mxu0 0
        %1468 = vmatprep.subr.bf16.mxu0 0
        %1469 = vmatpush1.bf16.msra.mxu0 0
        %1470 = vmatprep.subr.bf16.mxu0 0
        %1471 = vmatpush1.bf16.msra.mxu0 0
        %1472 = vmatprep.subr.bf16.mxu0 0
        %1473 = vmatpush1.bf16.msra.mxu0 0
        %1474 = vmatprep.subr.bf16.mxu0 0
        %1475 = vmatpush1.bf16.msra.mxu0 %v1456
        %1476 = vmatprep.subr.bf16.mxu0 0
        %1477 = vmatpush1.bf16.msra.mxu0 %v1455
        %1478 = vmatprep.subr.bf16.mxu0 0
        %1479 = vmatpush2.bf16.msra.mxu0 0
        %1480 = vmatprep.subr.bf16.mxu0 0
        %1481 = vmatpush2.bf16.msra.mxu0 0
        %1482 = vmatprep.subr.bf16.mxu0 0
        %1483 = vmatpush2.bf16.msra.mxu0 0
        %1484 = vmatprep.subr.bf16.mxu0 0
        %1485 = vmatpush2.bf16.msra.mxu0 0
        %1486 = vmatprep.subr.bf16.mxu0 0
        %1487 = vmatpush2.bf16.msra.mxu0 0
        %1488 = vmatprep.subr.bf16.mxu0 0
        %1489 = vmatpush2.bf16.msra.mxu0 0
        %1490 = vmatprep.subr.bf16.mxu0 0
        %1491 = vmatpush2.bf16.msra.mxu0 0
        %1492 = vmatprep.subr.bf16.mxu0 0
        %1493 = vmatpush2.bf16.msra.mxu0 0
        %1494 = vmatprep.mubr.bf16.mxu0 0
        %1495 = vmatmul.mubr.bf16.gmra.mxu0 %v1460
        %v1496 = vpop.f32.mrf.mxu0
        %v1497 = vadd.f32 %v1446, %v1496
        %v1498 = vpop.f32.mrf.mxu0
        %v1499 = vpop.f32.mrf.mxu0
        %v1500 = vadd.f32 %v1446, %v1499
        %v1501 = vpop.f32.mrf.mxu0
        %1502 = vdwg.mxu0
        %v1503 = vadd.f32 %v1497, %v1210
        %v1504 = vadd.f32 %v1500, %v1213
        %v1505 = vld [vmem:[#allocation11 + $0x10] sm:$0x1]
        %v1506 = vld [vmem:[#allocation11 + $0x11] sm:$0x1]
        %v1507 = vsel %vm717, %v1503, 0.0
        %1508 = vadd.xlane.f32.xlu0 %v1507
        %v1509 = vpop.xlane.xlu0 %1508
        %vm1510 = vcmask 254976
        %v1511 = vsel %vm1510, %v1504, 0.0
        %1512 = vadd.xlane.f32.xlu0 %v1511
        %v1513 = vpop.xlane.xlu0 %1512
        %v1514 = vmul.f32 %v1509, %v974
        %v1515 = vmul.f32 %v1513, %v974
        %v1516 = vsub.f32 %v1503, %v1514
        %v1517 = vsub.f32 %v1504, %v1515
        %v1518 = vmul.f32 %v1516, %v1516
        %v1519 = vmul.f32 %v1517, %v1517
        %v1520 = vsel %vm717, %v1518, 0.0
        %1521 = vadd.xlane.f32.xlu0 %v1520
        %v1522 = vpop.xlane.xlu0 %1521
        %v1523 = vsel %vm1510, %v1519, 0.0
        %1524 = vadd.xlane.f32.xlu0 %v1523
        %v1525 = vpop.xlane.xlu0 %1524
        %v1526 = vmul.f32 %v1522, %v974
        %v1527 = vmul.f32 %v1525, %v974
        %v1528 = vadd.f32 %v1526, 1e-05
        %v1529 = vadd.f32 %v1527, 1e-05
        %v1530 = vrsqrt.pop %v1528
        %v1531 = vrsqrt.pop %v1529
        %v1532 = vmul.f32 %v1516, %v1530
        %v1533 = vmul.f32 %v1517, %v1531
        %v1534 = vlaneseq
        %v1535 = vshrl.u32 %v1534, 7
        %v1536 = vsub.s32 0, %v1535
        %v1537 = vrot.slane %v1505, %v1536
        %v1538 = vmul.f32 %v1532, %v1537
        %v1539 = vmul.f32 %v1533, %v1537
        %v1540 = vlaneseq
        %v1541 = vshrl.u32 %v1540, 7
        %v1542 = vsub.s32 0, %v1541
        %v1543 = vrot.slane %v1506, %v1542
        %v1544 = vadd.f32 %v1538, %v1543
        %v1545 = vadd.f32 %v1539, %v1543
        %v1546 = vpack.c.bf16 %v1545, %v1544
        %s1547 = scalar_lea.vmem %s7, 64
        %v1548 = vld [vmem:[%s1547] sm:$0xf]
        %v1549 = vld [vmem:[%s1547 + $0x4] sm:$0xf]
        %v1550 = vld [vmem:[%s1547 + $0x8] sm:$0xf]
        %v1551 = vld [vmem:[%s1547 + $0xc] sm:$0xf]
        %v1552 = vld [vmem:[#allocation11 + $0xe] sm:$0x1]
        %v1553 = vlaneseq
        %v1554 = vshrl.u32 %v1553, 7
        %v1555 = vsub.s32 0, %v1554
        %v1556 = vrot.slane %v1552, %v1555
        %v1561 = vunpack.c.l.b16 %v1548
        %v1562 = vunpack.c.l.b16 %v1549
        %v1563 = vunpack.c.l.b16 %v1550
        %v1564 = vunpack.c.l.b16 %v1551
        %v1565 = vpack.c.b16 %v1562, %v1561
        %v1566 = vpack.c.b16 %v1564, %v1563
        %v1570 = vsel %vm717, %v1546, 0
        %1572 = vmatprep.subr.bf16.mxu0 0
        %1573 = vmatpush1.bf16.msra.mxu0 0
        %1574 = vmatprep.subr.bf16.mxu0 0
        %1575 = vmatpush1.bf16.msra.mxu0 0
        %1576 = vmatprep.subr.bf16.mxu0 0
        %1577 = vmatpush1.bf16.msra.mxu0 0
        %1578 = vmatprep.subr.bf16.mxu0 0
        %1579 = vmatpush1.bf16.msra.mxu0 0
        %1580 = vmatprep.subr.bf16.mxu0 0
        %1581 = vmatpush1.bf16.msra.mxu0 0
        %1582 = vmatprep.subr.bf16.mxu0 0
        %1583 = vmatpush1.bf16.msra.mxu0 0
        %1584 = vmatprep.subr.bf16.mxu0 0
        %1585 = vmatpush1.bf16.msra.mxu0 %v1566
        %1586 = vmatprep.subr.bf16.mxu0 0
        %1587 = vmatpush1.bf16.msra.mxu0 %v1565
        %1588 = vmatprep.subr.bf16.mxu0 0
        %1589 = vmatpush2.bf16.msra.mxu0 0
        %1590 = vmatprep.subr.bf16.mxu0 0
        %1591 = vmatpush2.bf16.msra.mxu0 0
        %1592 = vmatprep.subr.bf16.mxu0 0
        %1593 = vmatpush2.bf16.msra.mxu0 0
        %1594 = vmatprep.subr.bf16.mxu0 0
        %1595 = vmatpush2.bf16.msra.mxu0 0
        %1596 = vmatprep.subr.bf16.mxu0 0
        %1597 = vmatpush2.bf16.msra.mxu0 0
        %1598 = vmatprep.subr.bf16.mxu0 0
        %1599 = vmatpush2.bf16.msra.mxu0 0
        %1600 = vmatprep.subr.bf16.mxu0 0
        %1601 = vmatpush2.bf16.msra.mxu0 0
        %1602 = vmatprep.subr.bf16.mxu0 0
        %1603 = vmatpush2.bf16.msra.mxu0 0
        %1604 = vmatprep.mubr.bf16.mxu0 0
        %1605 = vmatmul.mubr.bf16.gmra.mxu0 %v1570
        %v1606 = vpop.f32.mrf.mxu0
        %v1607 = vadd.f32 %v1556, %v1606
        %v1608 = vpop.f32.mrf.mxu0
        %v1609 = vpop.f32.mrf.mxu0
        %v1610 = vadd.f32 %v1556, %v1609
        %v1611 = vpop.f32.mrf.mxu0
        %1612 = vdwg.mxu0
        %v1613 = vmax.f32 %v1607, 0.0
        %v1614 = vmax.f32 %v1610, 0.0
        %v1615 = vpack.c.bf16 %v1614, %v1613
        %s1616 = scalar_lea.vmem %s7, 80
        %v1617 = vld [vmem:[%s1616] sm:$0xf]
        %v1618 = vld [vmem:[%s1616 + $0x4] sm:$0xf]
        %v1619 = vld [vmem:[%s1616 + $0x8] sm:$0xf]
        %v1620 = vld [vmem:[%s1616 + $0xc] sm:$0xf]
        %v1621 = vld [vmem:[#allocation11 + $0xf] sm:$0x1]
        %v1622 = vlaneseq
        %v1623 = vshrl.u32 %v1622, 7
        %v1624 = vsub.s32 0, %v1623
        %v1625 = vrot.slane %v1621, %v1624
        %v1630 = vunpack.c.l.b16 %v1617
        %v1631 = vunpack.c.l.b16 %v1618
        %v1632 = vunpack.c.l.b16 %v1619
        %v1633 = vunpack.c.l.b16 %v1620
        %v1634 = vpack.c.b16 %v1631, %v1630
        %v1635 = vpack.c.b16 %v1633, %v1632
        %v1639 = vsel %vm717, %v1615, 0
        %1641 = vmatprep.subr.bf16.mxu0 0
        %1642 = vmatpush1.bf16.msra.mxu0 0
        %1643 = vmatprep.subr.bf16.mxu0 0
        %1644 = vmatpush1.bf16.msra.mxu0 0
        %1645 = vmatprep.subr.bf16.mxu0 0
        %1646 = vmatpush1.bf16.msra.mxu0 0
        %1647 = vmatprep.subr.bf16.mxu0 0
        %1648 = vmatpush1.bf16.msra.mxu0 0
        %1649 = vmatprep.subr.bf16.mxu0 0
        %1650 = vmatpush1.bf16.msra.mxu0 0
        %1651 = vmatprep.subr.bf16.mxu0 0
        %1652 = vmatpush1.bf16.msra.mxu0 0
        %1653 = vmatprep.subr.bf16.mxu0 0
        %1654 = vmatpush1.bf16.msra.mxu0 %v1635
        %1655 = vmatprep.subr.bf16.mxu0 0
        %1656 = vmatpush1.bf16.msra.mxu0 %v1634
        %1657 = vmatprep.subr.bf16.mxu0 0
        %1658 = vmatpush2.bf16.msra.mxu0 0
        %1659 = vmatprep.subr.bf16.mxu0 0
        %1660 = vmatpush2.bf16.msra.mxu0 0
        %1661 = vmatprep.subr.bf16.mxu0 0
        %1662 = vmatpush2.bf16.msra.mxu0 0
        %1663 = vmatprep.subr.bf16.mxu0 0
        %1664 = vmatpush2.bf16.msra.mxu0 0
        %1665 = vmatprep.subr.bf16.mxu0 0
        %1666 = vmatpush2.bf16.msra.mxu0 0
        %1667 = vmatprep.subr.bf16.mxu0 0
        %1668 = vmatpush2.bf16.msra.mxu0 0
        %1669 = vmatprep.subr.bf16.mxu0 0
        %1670 = vmatpush2.bf16.msra.mxu0 0
        %1671 = vmatprep.subr.bf16.mxu0 0
        %1672 = vmatpush2.bf16.msra.mxu0 0
        %1673 = vmatprep.mubr.bf16.mxu0 0
        %1674 = vmatmul.mubr.bf16.gmra.mxu0 %v1639
        %v1675 = vpop.f32.mrf.mxu0
        %v1676 = vadd.f32 %v1625, %v1675
        %v1677 = vpop.f32.mrf.mxu0
        %v1678 = vpop.f32.mrf.mxu0
        %v1679 = vadd.f32 %v1625, %v1678
        %v1680 = vpop.f32.mrf.mxu0
        %1681 = vdwg.mxu0
        %v1682 = vmax.f32 %v1676, 0.0
        %v1683 = vmax.f32 %v1679, 0.0
        %v1684 = vadd.f32 %v1682, %v1544
        %v1685 = vadd.f32 %v1683, %v1545
        %v1686 = vld [vmem:[#allocation11 + $0x12] sm:$0x1]
        %v1687 = vld [vmem:[#allocation11 + $0x13] sm:$0x1]
        %v1688 = vsel %vm717, %v1684, 0.0
        %1689 = vadd.xlane.f32.xlu0 %v1688
        %v1690 = vpop.xlane.xlu0 %1689
        %v1691 = vsel %vm1510, %v1685, 0.0
        %1692 = vadd.xlane.f32.xlu0 %v1691
        %v1693 = vpop.xlane.xlu0 %1692
        %v1694 = vmul.f32 %v1690, %v974
        %v1695 = vmul.f32 %v1693, %v974
        %v1696 = vsub.f32 %v1684, %v1694
        %v1697 = vsub.f32 %v1685, %v1695
        %v1698 = vmul.f32 %v1696, %v1696
        %v1699 = vmul.f32 %v1697, %v1697
        %v1700 = vsel %vm717, %v1698, 0.0
        %1701 = vadd.xlane.f32.xlu0 %v1700
        %v1702 = vpop.xlane.xlu0 %1701
        %v1703 = vsel %vm1510, %v1699, 0.0
        %1704 = vadd.xlane.f32.xlu0 %v1703
        %v1705 = vpop.xlane.xlu0 %1704
        %v1706 = vmul.f32 %v1702, %v974
        %v1707 = vmul.f32 %v1705, %v974
        %v1708 = vadd.f32 %v1706, 1e-05
        %v1709 = vadd.f32 %v1707, 1e-05
        %v1710 = vrsqrt.pop %v1708
        %v1711 = vrsqrt.pop %v1709
        %v1712 = vmul.f32 %v1696, %v1710
        %v1713 = vmul.f32 %v1697, %v1711
        %v1714 = vlaneseq
        %v1715 = vshrl.u32 %v1714, 7
        %v1716 = vsub.s32 0, %v1715
        %v1717 = vrot.slane %v1686, %v1716
        %v1718 = vmul.f32 %v1712, %v1717
        %v1719 = vmul.f32 %v1713, %v1717
        %v1720 = vlaneseq
        %v1721 = vshrl.u32 %v1720, 7
        %v1722 = vsub.s32 0, %v1721
        %v1723 = vrot.slane %v1687, %v1722
        %v1724 = vadd.f32 %v1718, %v1723
        %v1725 = vadd.f32 %v1719, %v1723
        %v1726 = vld [vmem:[#allocation14 + $0x8] sm:$0x1]
        %v1727 = vld [vmem:[#allocation14 + $0x9] sm:$0x1]
        %v1728 = vld [vmem:[%s9] sm:$0xf]
        %v1729 = vld [vmem:[%s9 + $0x4] sm:$0xf]
        %v1730 = vld [vmem:[%s9 + $0x8] sm:$0xf]
        %v1731 = vld [vmem:[%s9 + $0xc] sm:$0xf]
        %v1732 = vld [vmem:[#allocation14] sm:$0x1]
        %v1737 = vunpack.c.l.b16 %v1728
        %v1738 = vunpack.c.l.b16 %v1729
        %v1739 = vunpack.c.l.b16 %v1730
        %v1740 = vunpack.c.l.b16 %v1731
        %v1741 = vpack.c.b16 %v1738, %v1737
        %v1742 = vpack.c.b16 %v1740, %v1739
        %v1746 = vsel %vm717, 0, 0
        %1748 = vmatprep.subr.bf16.mxu0 0
        %1749 = vmatpush1.bf16.msra.mxu0 0
        %1750 = vmatprep.subr.bf16.mxu0 0
        %1751 = vmatpush1.bf16.msra.mxu0 0
        %1752 = vmatprep.subr.bf16.mxu0 0
        %1753 = vmatpush1.bf16.msra.mxu0 0
        %1754 = vmatprep.subr.bf16.mxu0 0
        %1755 = vmatpush1.bf16.msra.mxu0 0
        %1756 = vmatprep.subr.bf16.mxu0 0
        %1757 = vmatpush1.bf16.msra.mxu0 0
        %1758 = vmatprep.subr.bf16.mxu0 0
        %1759 = vmatpush1.bf16.msra.mxu0 0
        %1760 = vmatprep.subr.bf16.mxu0 0
        %1761 = vmatpush1.bf16.msra.mxu0 %v1742
        %1762 = vmatprep.subr.bf16.mxu0 0
        %1763 = vmatpush1.bf16.msra.mxu0 %v1741
        %1764 = vmatprep.subr.bf16.mxu0 0
        %1765 = vmatpush2.bf16.msra.mxu0 0
        %1766 = vmatprep.subr.bf16.mxu0 0
        %1767 = vmatpush2.bf16.msra.mxu0 0
        %1768 = vmatprep.subr.bf16.mxu0 0
        %1769 = vmatpush2.bf16.msra.mxu0 0
        %1770 = vmatprep.subr.bf16.mxu0 0
        %1771 = vmatpush2.bf16.msra.mxu0 0
        %1772 = vmatprep.subr.bf16.mxu0 0
        %1773 = vmatpush2.bf16.msra.mxu0 0
        %1774 = vmatprep.subr.bf16.mxu0 0
        %1775 = vmatpush2.bf16.msra.mxu0 0
        %1776 = vmatprep.subr.bf16.mxu0 0
        %1777 = vmatpush2.bf16.msra.mxu0 0
        %1778 = vmatprep.subr.bf16.mxu0 0
        %1779 = vmatpush2.bf16.msra.mxu0 0
        %1780 = vmatprep.mubr.bf16.mxu0 0
        %1781 = vmatmul.mubr.bf16.gmra.mxu0 %v1746
        %v1782 = vpop.f32.mrf.mxu0
        %v1783 = vadd.f32 %v1732, %v1782
        %v1784 = vpop.f32.mrf.mxu0
        %v1785 = vpop.f32.mrf.mxu0
        %v1786 = vpop.f32.mrf.mxu0
        %1787 = vdwg.mxu0
        %v1788 = vpack.c.bf16 %v1154, %v1154
        %v1789 = vld [vmem:[#allocation13] sm:$0xf]
        %v1790 = vld [vmem:[#allocation13 + $0x4] sm:$0xf]
        %v1791 = vld [vmem:[#allocation13 + $0x8] sm:$0xf]
        %v1792 = vld [vmem:[#allocation13 + $0xc] sm:$0xf]
        %v1793 = vld [vmem:[#allocation14 + $0x1] sm:$0x1]
        %v1794 = vlaneseq
        %v1795 = vshrl.u32 %v1794, 7
        %v1796 = vsub.s32 0, %v1795
        %v1797 = vrot.slane %v1793, %v1796
        %v1802 = vunpack.c.l.b16 %v1789
        %v1803 = vunpack.c.l.b16 %v1790
        %v1804 = vunpack.c.l.b16 %v1791
        %v1805 = vunpack.c.l.b16 %v1792
        %v1806 = vpack.c.b16 %v1803, %v1802
        %v1807 = vpack.c.b16 %v1805, %v1804
        %v1811 = vsel %vm717, %v1788, 0
        %1813 = vmatprep.subr.bf16.mxu0 0
        %1814 = vmatpush1.bf16.msra.mxu0 0
        %1815 = vmatprep.subr.bf16.mxu0 0
        %1816 = vmatpush1.bf16.msra.mxu0 0
        %1817 = vmatprep.subr.bf16.mxu0 0
        %1818 = vmatpush1.bf16.msra.mxu0 0
        %1819 = vmatprep.subr.bf16.mxu0 0
        %1820 = vmatpush1.bf16.msra.mxu0 0
        %1821 = vmatprep.subr.bf16.mxu0 0
        %1822 = vmatpush1.bf16.msra.mxu0 0
        %1823 = vmatprep.subr.bf16.mxu0 0
        %1824 = vmatpush1.bf16.msra.mxu0 0
        %1825 = vmatprep.subr.bf16.mxu0 0
        %1826 = vmatpush1.bf16.msra.mxu0 %v1807
        %1827 = vmatprep.subr.bf16.mxu0 0
        %1828 = vmatpush1.bf16.msra.mxu0 %v1806
        %1829 = vmatprep.subr.bf16.mxu0 0
        %1830 = vmatpush2.bf16.msra.mxu0 0
        %1831 = vmatprep.subr.bf16.mxu0 0
        %1832 = vmatpush2.bf16.msra.mxu0 0
        %1833 = vmatprep.subr.bf16.mxu0 0
        %1834 = vmatpush2.bf16.msra.mxu0 0
        %1835 = vmatprep.subr.bf16.mxu0 0
        %1836 = vmatpush2.bf16.msra.mxu0 0
        %1837 = vmatprep.subr.bf16.mxu0 0
        %1838 = vmatpush2.bf16.msra.mxu0 0
        %1839 = vmatprep.subr.bf16.mxu0 0
        %1840 = vmatpush2.bf16.msra.mxu0 0
        %1841 = vmatprep.subr.bf16.mxu0 0
        %1842 = vmatpush2.bf16.msra.mxu0 0
        %1843 = vmatprep.subr.bf16.mxu0 0
        %1844 = vmatpush2.bf16.msra.mxu0 0
        %1845 = vmatprep.mubr.bf16.mxu0 0
        %1846 = vmatmul.mubr.bf16.gmra.mxu0 %v1811
        %v1847 = vpop.f32.mrf.mxu0
        %v1848 = vadd.f32 %v1797, %v1847
        %v1849 = vpop.f32.mrf.mxu0
        %v1850 = vpop.f32.mrf.mxu0
        %v1851 = vpop.f32.mrf.mxu0
        %1852 = vdwg.mxu0
        %s1853 = scalar_lea.vmem [#allocation13], 16
        %v1854 = vld [vmem:[%s1853] sm:$0xf]
        %v1855 = vld [vmem:[%s1853 + $0x4] sm:$0xf]
        %v1856 = vld [vmem:[%s1853 + $0x8] sm:$0xf]
        %v1857 = vld [vmem:[%s1853 + $0xc] sm:$0xf]
        %v1858 = vld [vmem:[#allocation14 + $0x2] sm:$0x1]
        %v1859 = vlaneseq
        %v1860 = vshrl.u32 %v1859, 7
        %v1861 = vsub.s32 0, %v1860
        %v1862 = vrot.slane %v1858, %v1861
        %v1867 = vunpack.c.l.b16 %v1854
        %v1868 = vunpack.c.l.b16 %v1855
        %v1869 = vunpack.c.l.b16 %v1856
        %v1870 = vunpack.c.l.b16 %v1857
        %v1871 = vpack.c.b16 %v1868, %v1867
        %v1872 = vpack.c.b16 %v1870, %v1869
        %1875 = vmatprep.subr.bf16.mxu0 0
        %1876 = vmatpush1.bf16.msra.mxu0 0
        %1877 = vmatprep.subr.bf16.mxu0 0
        %1878 = vmatpush1.bf16.msra.mxu0 0
        %1879 = vmatprep.subr.bf16.mxu0 0
        %1880 = vmatpush1.bf16.msra.mxu0 0
        %1881 = vmatprep.subr.bf16.mxu0 0
        %1882 = vmatpush1.bf16.msra.mxu0 0
        %1883 = vmatprep.subr.bf16.mxu0 0
        %1884 = vmatpush1.bf16.msra.mxu0 0
        %1885 = vmatprep.subr.bf16.mxu0 0
        %1886 = vmatpush1.bf16.msra.mxu0 0
        %1887 = vmatprep.subr.bf16.mxu0 0
        %1888 = vmatpush1.bf16.msra.mxu0 %v1872
        %1889 = vmatprep.subr.bf16.mxu0 0
        %1890 = vmatpush1.bf16.msra.mxu0 %v1871
        %1891 = vmatprep.subr.bf16.mxu0 0
        %1892 = vmatpush2.bf16.msra.mxu0 0
        %1893 = vmatprep.subr.bf16.mxu0 0
        %1894 = vmatpush2.bf16.msra.mxu0 0
        %1895 = vmatprep.subr.bf16.mxu0 0
        %1896 = vmatpush2.bf16.msra.mxu0 0
        %1897 = vmatprep.subr.bf16.mxu0 0
        %1898 = vmatpush2.bf16.msra.mxu0 0
        %1899 = vmatprep.subr.bf16.mxu0 0
        %1900 = vmatpush2.bf16.msra.mxu0 0
        %1901 = vmatprep.subr.bf16.mxu0 0
        %1902 = vmatpush2.bf16.msra.mxu0 0
        %1903 = vmatprep.subr.bf16.mxu0 0
        %1904 = vmatpush2.bf16.msra.mxu0 0
        %1905 = vmatprep.subr.bf16.mxu0 0
        %1906 = vmatpush2.bf16.msra.mxu0 0
        %1907 = vmatprep.mubr.bf16.mxu0 0
        %1908 = vmatmul.mubr.bf16.gmra.mxu0 %v1811
        %v1909 = vpop.f32.mrf.mxu0
        %v1910 = vadd.f32 %v1862, %v1909
        %v1911 = vpop.f32.mrf.mxu0
        %v1912 = vpop.f32.mrf.mxu0
        %v1913 = vpop.f32.mrf.mxu0
        %1914 = vdwg.mxu0
        %v1915 = vpack.c.bf16 %v1783, %v1783
        %v1916 = vpack.c.bf16 %v1848, %v1848
        %v1918 = vsel %vm717, %v1915, 0
        %v1921 = vsel %vm717, %v1916, 0
        %1923 = vmatprep.subr.bf16.mxu0 0
        %1924 = vmatpush1.bf16.xpose.msra.mxu0 0
        %1925 = vmatprep.subr.bf16.mxu0 0
        %1926 = vmatpush1.bf16.xpose.msra.mxu0 0
        %1927 = vmatprep.subr.bf16.mxu0 0
        %1928 = vmatpush1.bf16.xpose.msra.mxu0 0
        %1929 = vmatprep.subr.bf16.mxu0 0
        %1930 = vmatpush1.bf16.xpose.msra.mxu0 0
        %1931 = vmatprep.subr.bf16.mxu0 0
        %1932 = vmatpush1.bf16.xpose.msra.mxu0 0
        %1933 = vmatprep.subr.bf16.mxu0 0
        %1934 = vmatpush1.bf16.xpose.msra.mxu0 0
        %1935 = vmatprep.subr.bf16.mxu0 0
        %1936 = vmatpush1.bf16.xpose.msra.mxu0 0
        %1937 = vmatprep.subr.bf16.mxu0 0
        %1938 = vmatpush1.bf16.xpose.msra.mxu0 %v1921
        %1939 = vmatprep.subr.bf16.mxu0 0
        %1940 = vmatpush2.bf16.xpose.msra.mxu0 0
        %1941 = vmatprep.subr.bf16.mxu0 0
        %1942 = vmatpush2.bf16.xpose.msra.mxu0 0
        %1943 = vmatprep.subr.bf16.mxu0 0
        %1944 = vmatpush2.bf16.xpose.msra.mxu0 0
        %1945 = vmatprep.subr.bf16.mxu0 0
        %1946 = vmatpush2.bf16.xpose.msra.mxu0 0
        %1947 = vmatprep.subr.bf16.mxu0 0
        %1948 = vmatpush2.bf16.xpose.msra.mxu0 0
        %1949 = vmatprep.subr.bf16.mxu0 0
        %1950 = vmatpush2.bf16.xpose.msra.mxu0 0
        %1951 = vmatprep.subr.bf16.mxu0 0
        %1952 = vmatpush2.bf16.xpose.msra.mxu0 0
        %1953 = vmatprep.subr.bf16.mxu0 0
        %1954 = vmatpush2.bf16.xpose.msra.mxu0 0
        %1955 = vmatprep.mubr.bf16.mxu0 0
        %1956 = vmatmul.mubr.bf16.gmra.mxu0 %v1918
        %v1957 = vpop.f32.mrf.mxu0
        %v1958 = vadd.f32 0.0, %v1957
        %v1959 = vpop.f32.mrf.mxu0
        %v1960 = vpop.f32.mrf.mxu0
        %v1961 = vpop.f32.mrf.mxu0
        %1962 = vdwg.mxu0
        %v1963 = vmul.f32 %v1958, 0.17677669
        %vm1964 = vcmask 57344
        %v1965 = vsel %vm1964, %v1963, -inf
        %1966 = vmax.xlane.f32.xlu0 %v1965
        %v1967 = vpop.xlane.xlu0 %1966
        %v1968 = vsub.f32 %v1963, %v1967
        %v1969 = vmul.f32 %v1968, 1.442695
        %v1970 = vpow.pop %v1969
        %v1971 = vsel %vm1964, %v1970, 0.0
        %1972 = vadd.xlane.f32.xlu0 %v1971
        %v1973 = vpop.xlane.xlu0 %1972
        %v1974 = vrcp.pop %v1973
        %v1975 = vmul.f32 %v1970, %v1974
        %v1976 = vpack.c.bf16 %v1975, %v1975
        %v1977 = vpack.c.bf16 %v1910, %v1910
        %v1979 = vsel %vm839, %v1976, 0
        %v1982 = vsel %vm859, %v1977, 0
        %1984 = vmatprep.subr.bf16.mxu0 0
        %1985 = vmatpush1.bf16.msra.mxu0 0
        %1986 = vmatprep.subr.bf16.mxu0 0
        %1987 = vmatpush1.bf16.msra.mxu0 0
        %1988 = vmatprep.subr.bf16.mxu0 0
        %1989 = vmatpush1.bf16.msra.mxu0 0
        %1990 = vmatprep.subr.bf16.mxu0 0
        %1991 = vmatpush1.bf16.msra.mxu0 0
        %1992 = vmatprep.subr.bf16.mxu0 0
        %1993 = vmatpush1.bf16.msra.mxu0 0
        %1994 = vmatprep.subr.bf16.mxu0 0
        %1995 = vmatpush1.bf16.msra.mxu0 0
        %1996 = vmatprep.subr.bf16.mxu0 0
        %1997 = vmatpush1.bf16.msra.mxu0 0
        %1998 = vmatprep.subr.bf16.mxu0 0
        %1999 = vmatpush1.bf16.msra.mxu0 %v1982
        %2000 = vmatprep.subr.bf16.mxu0 0
        %2001 = vmatpush2.bf16.msra.mxu0 0
        %2002 = vmatprep.subr.bf16.mxu0 0
        %2003 = vmatpush2.bf16.msra.mxu0 0
        %2004 = vmatprep.subr.bf16.mxu0 0
        %2005 = vmatpush2.bf16.msra.mxu0 0
        %2006 = vmatprep.subr.bf16.mxu0 0
        %2007 = vmatpush2.bf16.msra.mxu0 0
        %2008 = vmatprep.subr.bf16.mxu0 0
        %2009 = vmatpush2.bf16.msra.mxu0 0
        %2010 = vmatprep.subr.bf16.mxu0 0
        %2011 = vmatpush2.bf16.msra.mxu0 0
        %2012 = vmatprep.subr.bf16.mxu0 0
        %2013 = vmatpush2.bf16.msra.mxu0 0
        %2014 = vmatprep.subr.bf16.mxu0 0
        %2015 = vmatpush2.bf16.msra.mxu0 0
        %2016 = vmatprep.mubr.bf16.mxu0 0
        %2017 = vmatmul.mubr.bf16.gmra.mxu0 %v1979
        %v2018 = vpop.f32.mrf.mxu0
        %v2019 = vadd.f32 0.0, %v2018
        %v2020 = vpop.f32.mrf.mxu0
        %v2021 = vpop.f32.mrf.mxu0
        %v2022 = vpop.f32.mrf.mxu0
        %2023 = vdwg.mxu0
        %v2024 = vpack.c.bf16 %v2019, %v2019
        %s2025 = scalar_lea.vmem %s9, 16
        %v2026 = vld [vmem:[%s2025] sm:$0xf]
        %v2027 = vld [vmem:[%s2025 + $0x4] sm:$0xf]
        %v2028 = vld [vmem:[%s2025 + $0x8] sm:$0xf]
        %v2029 = vld [vmem:[%s2025 + $0xc] sm:$0xf]
        %v2030 = vld [vmem:[#allocation14 + $0x3] sm:$0x1]
        %v2035 = vunpack.c.l.b16 %v2026
        %v2036 = vunpack.c.l.b16 %v2027
        %v2037 = vunpack.c.l.b16 %v2028
        %v2038 = vunpack.c.l.b16 %v2029
        %v2039 = vpack.c.b16 %v2036, %v2035
        %v2040 = vpack.c.b16 %v2038, %v2037
        %v2044 = vsel %vm717, %v2024, 0
        %2046 = vmatprep.subr.bf16.mxu0 0
        %2047 = vmatpush1.bf16.msra.mxu0 0
        %2048 = vmatprep.subr.bf16.mxu0 0
        %2049 = vmatpush1.bf16.msra.mxu0 0
        %2050 = vmatprep.subr.bf16.mxu0 0
        %2051 = vmatpush1.bf16.msra.mxu0 0
        %2052 = vmatprep.subr.bf16.mxu0 0
        %2053 = vmatpush1.bf16.msra.mxu0 0
        %2054 = vmatprep.subr.bf16.mxu0 0
        %2055 = vmatpush1.bf16.msra.mxu0 0
        %2056 = vmatprep.subr.bf16.mxu0 0
        %2057 = vmatpush1.bf16.msra.mxu0 0
        %2058 = vmatprep.subr.bf16.mxu0 0
        %2059 = vmatpush1.bf16.msra.mxu0 %v2040
        %2060 = vmatprep.subr.bf16.mxu0 0
        %2061 = vmatpush1.bf16.msra.mxu0 %v2039
        %2062 = vmatprep.subr.bf16.mxu0 0
        %2063 = vmatpush2.bf16.msra.mxu0 0
        %2064 = vmatprep.subr.bf16.mxu0 0
        %2065 = vmatpush2.bf16.msra.mxu0 0
        %2066 = vmatprep.subr.bf16.mxu0 0
        %2067 = vmatpush2.bf16.msra.mxu0 0
        %2068 = vmatprep.subr.bf16.mxu0 0
        %2069 = vmatpush2.bf16.msra.mxu0 0
        %2070 = vmatprep.subr.bf16.mxu0 0
        %2071 = vmatpush2.bf16.msra.mxu0 0
        %2072 = vmatprep.subr.bf16.mxu0 0
        %2073 = vmatpush2.bf16.msra.mxu0 0
        %2074 = vmatprep.subr.bf16.mxu0 0
        %2075 = vmatpush2.bf16.msra.mxu0 0
        %2076 = vmatprep.subr.bf16.mxu0 0
        %2077 = vmatpush2.bf16.msra.mxu0 0
        %2078 = vmatprep.mubr.bf16.mxu0 0
        %2079 = vmatmul.mubr.bf16.gmra.mxu0 %v2044
        %v2080 = vpop.f32.mrf.mxu0
        %v2081 = vadd.f32 %v2030, %v2080
        %v2082 = vpop.f32.mrf.mxu0
        %v2083 = vpop.f32.mrf.mxu0
        %v2084 = vpop.f32.mrf.mxu0
        %2085 = vdwg.mxu0
        %v2086 = vadd.f32 %v2081, 0.0
        %vm2087 = vcmask 253952
        %v2088 = vsel %vm2087, %v2086, 0.0
        %2089 = vadd.xlane.f32.xlu0 %v2088
        %v2090 = vpop.xlane.xlu0 %2089
        %v2091 = vmul.f32 %v2090, %v974
        %v2092 = vsub.f32 %v2086, %v2091
        %v2093 = vmul.f32 %v2092, %v2092
        %v2094 = vsel %vm2087, %v2093, 0.0
        %2095 = vadd.xlane.f32.xlu0 %v2094
        %v2096 = vpop.xlane.xlu0 %2095
        %v2097 = vmul.f32 %v2096, %v974
        %v2098 = vadd.f32 %v2097, 1e-05
        %v2099 = vrsqrt.pop %v2098
        %v2100 = vmul.f32 %v2092, %v2099
        %v2101 = vmul.f32 %v2100, %v1726
        %v2102 = vadd.f32 %v2101, %v1727
        %v2103 = vpack.c.bf16 %v2102, %v2102
        %s2104 = scalar_lea.vmem %s9, 32
        %v2105 = vld [vmem:[%s2104] sm:$0xf]
        %v2106 = vld [vmem:[%s2104 + $0x4] sm:$0xf]
        %v2107 = vld [vmem:[%s2104 + $0x8] sm:$0xf]
        %v2108 = vld [vmem:[%s2104 + $0xc] sm:$0xf]
        %v2109 = vld [vmem:[#allocation14 + $0x4] sm:$0x1]
        %v2114 = vunpack.c.l.b16 %v2105
        %v2115 = vunpack.c.l.b16 %v2106
        %v2116 = vunpack.c.l.b16 %v2107
        %v2117 = vunpack.c.l.b16 %v2108
        %v2118 = vpack.c.b16 %v2115, %v2114
        %v2119 = vpack.c.b16 %v2117, %v2116
        %v2123 = vsel %vm717, %v2103, 0
        %2125 = vmatprep.subr.bf16.mxu0 0
        %2126 = vmatpush1.bf16.msra.mxu0 0
        %2127 = vmatprep.subr.bf16.mxu0 0
        %2128 = vmatpush1.bf16.msra.mxu0 0
        %2129 = vmatprep.subr.bf16.mxu0 0
        %2130 = vmatpush1.bf16.msra.mxu0 0
        %2131 = vmatprep.subr.bf16.mxu0 0
        %2132 = vmatpush1.bf16.msra.mxu0 0
        %2133 = vmatprep.subr.bf16.mxu0 0
        %2134 = vmatpush1.bf16.msra.mxu0 0
        %2135 = vmatprep.subr.bf16.mxu0 0
        %2136 = vmatpush1.bf16.msra.mxu0 0
        %2137 = vmatprep.subr.bf16.mxu0 0
        %2138 = vmatpush1.bf16.msra.mxu0 %v2119
        %2139 = vmatprep.subr.bf16.mxu0 0
        %2140 = vmatpush1.bf16.msra.mxu0 %v2118
        %2141 = vmatprep.subr.bf16.mxu0 0
        %2142 = vmatpush2.bf16.msra.mxu0 0
        %2143 = vmatprep.subr.bf16.mxu0 0
        %2144 = vmatpush2.bf16.msra.mxu0 0
        %2145 = vmatprep.subr.bf16.mxu0 0
        %2146 = vmatpush2.bf16.msra.mxu0 0
        %2147 = vmatprep.subr.bf16.mxu0 0
        %2148 = vmatpush2.bf16.msra.mxu0 0
        %2149 = vmatprep.subr.bf16.mxu0 0
        %2150 = vmatpush2.bf16.msra.mxu0 0
        %2151 = vmatprep.subr.bf16.mxu0 0
        %2152 = vmatpush2.bf16.msra.mxu0 0
        %2153 = vmatprep.subr.bf16.mxu0 0
        %2154 = vmatpush2.bf16.msra.mxu0 0
        %2155 = vmatprep.subr.bf16.mxu0 0
        %2156 = vmatpush2.bf16.msra.mxu0 0
        %2157 = vmatprep.mubr.bf16.mxu0 0
        %2158 = vmatmul.mubr.bf16.gmra.mxu0 %v2123
        %v2159 = vpop.f32.mrf.mxu0
        %v2160 = vadd.f32 %v2109, %v2159
        %v2161 = vpop.f32.mrf.mxu0
        %v2162 = vpop.f32.mrf.mxu0
        %v2163 = vpop.f32.mrf.mxu0
        %2164 = vdwg.mxu0
        %v2165 = vpack.c.bf16 %v1725, %v1724
        %s2166 = scalar_lea.vmem [#allocation13], 32
        %v2167 = vld [vmem:[%s2166] sm:$0xf]
        %v2168 = vld [vmem:[%s2166 + $0x4] sm:$0xf]
        %v2169 = vld [vmem:[%s2166 + $0x8] sm:$0xf]
        %v2170 = vld [vmem:[%s2166 + $0xc] sm:$0xf]
        %v2171 = vld [vmem:[#allocation14 + $0x5] sm:$0x1]
        %v2172 = vlaneseq
        %v2173 = vshrl.u32 %v2172, 7
        %v2174 = vsub.s32 0, %v2173
        %v2175 = vrot.slane %v2171, %v2174
        %v2180 = vunpack.c.l.b16 %v2167
        %v2181 = vunpack.c.l.b16 %v2168
        %v2182 = vunpack.c.l.b16 %v2169
        %v2183 = vunpack.c.l.b16 %v2170
        %v2184 = vpack.c.b16 %v2181, %v2180
        %v2185 = vpack.c.b16 %v2183, %v2182
        %v2189 = vsel %vm717, %v2165, 0
        %2191 = vmatprep.subr.bf16.mxu0 0
        %2192 = vmatpush1.bf16.msra.mxu0 0
        %2193 = vmatprep.subr.bf16.mxu0 0
        %2194 = vmatpush1.bf16.msra.mxu0 0
        %2195 = vmatprep.subr.bf16.mxu0 0
        %2196 = vmatpush1.bf16.msra.mxu0 0
        %2197 = vmatprep.subr.bf16.mxu0 0
        %2198 = vmatpush1.bf16.msra.mxu0 0
        %2199 = vmatprep.subr.bf16.mxu0 0
        %2200 = vmatpush1.bf16.msra.mxu0 0
        %2201 = vmatprep.subr.bf16.mxu0 0
        %2202 = vmatpush1.bf16.msra.mxu0 0
        %2203 = vmatprep.subr.bf16.mxu0 0
        %2204 = vmatpush1.bf16.msra.mxu0 %v2185
        %2205 = vmatprep.subr.bf16.mxu0 0
        %2206 = vmatpush1.bf16.msra.mxu0 %v2184
        %2207 = vmatprep.subr.bf16.mxu0 0
        %2208 = vmatpush2.bf16.msra.mxu0 0
        %2209 = vmatprep.subr.bf16.mxu0 0
        %2210 = vmatpush2.bf16.msra.mxu0 0
        %2211 = vmatprep.subr.bf16.mxu0 0
        %2212 = vmatpush2.bf16.msra.mxu0 0
        %2213 = vmatprep.subr.bf16.mxu0 0
        %2214 = vmatpush2.bf16.msra.mxu0 0
        %2215 = vmatprep.subr.bf16.mxu0 0
        %2216 = vmatpush2.bf16.msra.mxu0 0
        %2217 = vmatprep.subr.bf16.mxu0 0
        %2218 = vmatpush2.bf16.msra.mxu0 0
        %2219 = vmatprep.subr.bf16.mxu0 0
        %2220 = vmatpush2.bf16.msra.mxu0 0
        %2221 = vmatprep.subr.bf16.mxu0 0
        %2222 = vmatpush2.bf16.msra.mxu0 0
        %2223 = vmatprep.mubr.bf16.mxu0 0
        %2224 = vmatmul.mubr.bf16.gmra.mxu0 %v2189
        %v2225 = vpop.f32.mrf.mxu0
        %v2226 = vadd.f32 %v2175, %v2225
        %v2227 = vpop.f32.mrf.mxu0
        %v2228 = vpop.f32.mrf.mxu0
        %v2229 = vadd.f32 %v2175, %v2228
        %v2230 = vpop.f32.mrf.mxu0
        %2231 = vdwg.mxu0
        %s2232 = scalar_lea.vmem [#allocation13], 48
        %v2233 = vld [vmem:[%s2232] sm:$0xf]
        %v2234 = vld [vmem:[%s2232 + $0x4] sm:$0xf]
        %v2235 = vld [vmem:[%s2232 + $0x8] sm:$0xf]
        %v2236 = vld [vmem:[%s2232 + $0xc] sm:$0xf]
        %v2237 = vld [vmem:[#allocation14 + $0x6] sm:$0x1]
        %v2238 = vlaneseq
        %v2239 = vshrl.u32 %v2238, 7
        %v2240 = vsub.s32 0, %v2239
        %v2241 = vrot.slane %v2237, %v2240
        %v2246 = vunpack.c.l.b16 %v2233
        %v2247 = vunpack.c.l.b16 %v2234
        %v2248 = vunpack.c.l.b16 %v2235
        %v2249 = vunpack.c.l.b16 %v2236
        %v2250 = vpack.c.b16 %v2247, %v2246
        %v2251 = vpack.c.b16 %v2249, %v2248
        %2254 = vmatprep.subr.bf16.mxu0 0
        %2255 = vmatpush1.bf16.msra.mxu0 0
        %2256 = vmatprep.subr.bf16.mxu0 0
        %2257 = vmatpush1.bf16.msra.mxu0 0
        %2258 = vmatprep.subr.bf16.mxu0 0
        %2259 = vmatpush1.bf16.msra.mxu0 0
        %2260 = vmatprep.subr.bf16.mxu0 0
        %2261 = vmatpush1.bf16.msra.mxu0 0
        %2262 = vmatprep.subr.bf16.mxu0 0
        %2263 = vmatpush1.bf16.msra.mxu0 0
        %2264 = vmatprep.subr.bf16.mxu0 0
        %2265 = vmatpush1.bf16.msra.mxu0 0
        %2266 = vmatprep.subr.bf16.mxu0 0
        %2267 = vmatpush1.bf16.msra.mxu0 %v2251
        %2268 = vmatprep.subr.bf16.mxu0 0
        %2269 = vmatpush1.bf16.msra.mxu0 %v2250
        %2270 = vmatprep.subr.bf16.mxu0 0
        %2271 = vmatpush2.bf16.msra.mxu0 0
        %2272 = vmatprep.subr.bf16.mxu0 0
        %2273 = vmatpush2.bf16.msra.mxu0 0
        %2274 = vmatprep.subr.bf16.mxu0 0
        %2275 = vmatpush2.bf16.msra.mxu0 0
        %2276 = vmatprep.subr.bf16.mxu0 0
        %2277 = vmatpush2.bf16.msra.mxu0 0
        %2278 = vmatprep.subr.bf16.mxu0 0
        %2279 = vmatpush2.bf16.msra.mxu0 0
        %2280 = vmatprep.subr.bf16.mxu0 0
        %2281 = vmatpush2.bf16.msra.mxu0 0
        %2282 = vmatprep.subr.bf16.mxu0 0
        %2283 = vmatpush2.bf16.msra.mxu0 0
        %2284 = vmatprep.subr.bf16.mxu0 0
        %2285 = vmatpush2.bf16.msra.mxu0 0
        %2286 = vmatprep.mubr.bf16.mxu0 0
        %2287 = vmatmul.mubr.bf16.gmra.mxu0 %v2189
        %v2288 = vpop.f32.mrf.mxu0
        %v2289 = vadd.f32 %v2241, %v2288
        %v2290 = vpop.f32.mrf.mxu0
        %v2291 = vpop.f32.mrf.mxu0
        %v2292 = vadd.f32 %v2241, %v2291
        %v2293 = vpop.f32.mrf.mxu0
        %2294 = vdwg.mxu0
        %v2295 = vpack.c.bf16 %v2160, %v2160
        %v2296 = vpack.c.bf16 %v2229, %v2226
        %v2298 = vsel %vm717, %v2295, 0
        %v2301 = vsel %vm717, %v2296, 0
        %2303 = vmatprep.subr.bf16.mxu0 0
        %2304 = vmatpush1.bf16.xpose.msra.mxu0 0
        %2305 = vmatprep.subr.bf16.mxu0 0
        %2306 = vmatpush1.bf16.xpose.msra.mxu0 0
        %2307 = vmatprep.subr.bf16.mxu0 0
        %2308 = vmatpush1.bf16.xpose.msra.mxu0 0
        %2309 = vmatprep.subr.bf16.mxu0 0
        %2310 = vmatpush1.bf16.xpose.msra.mxu0 0
        %2311 = vmatprep.subr.bf16.mxu0 0
        %2312 = vmatpush1.bf16.xpose.msra.mxu0 0
        %2313 = vmatprep.subr.bf16.mxu0 0
        %2314 = vmatpush1.bf16.xpose.msra.mxu0 0
        %2315 = vmatprep.subr.bf16.mxu0 0
        %2316 = vmatpush1.bf16.xpose.msra.mxu0 0
        %2317 = vmatprep.subr.bf16.mxu0 0
        %2318 = vmatpush1.bf16.xpose.msra.mxu0 %v2301
        %2319 = vmatprep.subr.bf16.mxu0 0
        %2320 = vmatpush2.bf16.xpose.msra.mxu0 0
        %2321 = vmatprep.subr.bf16.mxu0 0
        %2322 = vmatpush2.bf16.xpose.msra.mxu0 0
        %2323 = vmatprep.subr.bf16.mxu0 0
        %2324 = vmatpush2.bf16.xpose.msra.mxu0 0
        %2325 = vmatprep.subr.bf16.mxu0 0
        %2326 = vmatpush2.bf16.xpose.msra.mxu0 0
        %2327 = vmatprep.subr.bf16.mxu0 0
        %2328 = vmatpush2.bf16.xpose.msra.mxu0 0
        %2329 = vmatprep.subr.bf16.mxu0 0
        %2330 = vmatpush2.bf16.xpose.msra.mxu0 0
        %2331 = vmatprep.subr.bf16.mxu0 0
        %2332 = vmatpush2.bf16.xpose.msra.mxu0 0
        %2333 = vmatprep.subr.bf16.mxu0 0
        %2334 = vmatpush2.bf16.xpose.msra.mxu0 0
        %2335 = vmatprep.mubr.bf16.mxu0 0
        %2336 = vmatmul.mubr.bf16.gmra.mxu0 %v2298
        %v2337 = vpop.f32.mrf.mxu0
        %v2338 = vadd.f32 0.0, %v2337
        %v2339 = vpop.f32.mrf.mxu0
        %v2340 = vpop.f32.mrf.mxu0
        %v2341 = vpop.f32.mrf.mxu0
        %2342 = vdwg.mxu0
        %v2343 = vmul.f32 %v2338, 0.17677669
        %vm2344 = vcmask 73728
        %v2345 = vsel %vm2344, %v2343, -inf
        %2346 = vmax.xlane.f32.xlu0 %v2345
        %v2347 = vpop.xlane.xlu0 %2346
        %v2348 = vsub.f32 %v2343, %v2347
        %v2349 = vmul.f32 %v2348, 1.442695
        %v2350 = vpow.pop %v2349
        %v2351 = vsel %vm2344, %v2350, 0.0
        %2352 = vadd.xlane.f32.xlu0 %v2351
        %v2353 = vpop.xlane.xlu0 %2352
        %v2354 = vrcp.pop %v2353
        %v2355 = vmul.f32 %v2350, %v2354
        %v2356 = vpack.c.bf16 %v2355, %v2355
        %v2357 = vpack.c.bf16 %v2292, %v2289
        %v2359 = vsel %vm1167, %v2356, 0
        %v2362 = vsel %vm1171, %v2357, 0
        %2364 = vmatprep.subr.bf16.mxu0 0
        %2365 = vmatpush1.bf16.msra.mxu0 0
        %2366 = vmatprep.subr.bf16.mxu0 0
        %2367 = vmatpush1.bf16.msra.mxu0 0
        %2368 = vmatprep.subr.bf16.mxu0 0
        %2369 = vmatpush1.bf16.msra.mxu0 0
        %2370 = vmatprep.subr.bf16.mxu0 0
        %2371 = vmatpush1.bf16.msra.mxu0 0
        %2372 = vmatprep.subr.bf16.mxu0 0
        %2373 = vmatpush1.bf16.msra.mxu0 0
        %2374 = vmatprep.subr.bf16.mxu0 0
        %2375 = vmatpush1.bf16.msra.mxu0 0
        %2376 = vmatprep.subr.bf16.mxu0 0
        %2377 = vmatpush1.bf16.msra.mxu0 0
        %2378 = vmatprep.subr.bf16.mxu0 0
        %2379 = vmatpush1.bf16.msra.mxu0 %v2362
        %2380 = vmatprep.subr.bf16.mxu0 0
        %2381 = vmatpush2.bf16.msra.mxu0 0
        %2382 = vmatprep.subr.bf16.mxu0 0
        %2383 = vmatpush2.bf16.msra.mxu0 0
        %2384 = vmatprep.subr.bf16.mxu0 0
        %2385 = vmatpush2.bf16.msra.mxu0 0
        %2386 = vmatprep.subr.bf16.mxu0 0
        %2387 = vmatpush2.bf16.msra.mxu0 0
        %2388 = vmatprep.subr.bf16.mxu0 0
        %2389 = vmatpush2.bf16.msra.mxu0 0
        %2390 = vmatprep.subr.bf16.mxu0 0
        %2391 = vmatpush2.bf16.msra.mxu0 0
        %2392 = vmatprep.subr.bf16.mxu0 0
        %2393 = vmatpush2.bf16.msra.mxu0 0
        %2394 = vmatprep.subr.bf16.mxu0 0
        %2395 = vmatpush2.bf16.msra.mxu0 0
        %2396 = vmatprep.mubr.bf16.mxu0 0
        %2397 = vmatmul.mubr.bf16.gmra.mxu0 %v2359
        %v2398 = vpop.f32.mrf.mxu0
        %v2399 = vadd.f32 0.0, %v2398
        %v2400 = vpop.f32.mrf.mxu0
        %v2401 = vpop.f32.mrf.mxu0
        %v2402 = vpop.f32.mrf.mxu0
        %2403 = vdwg.mxu0
        %v2404 = vpack.c.bf16 %v2399, %v2399
        %s2405 = scalar_lea.vmem %s9, 48
        %v2406 = vld [vmem:[%s2405] sm:$0xf]
        %v2407 = vld [vmem:[%s2405 + $0x4] sm:$0xf]
        %v2408 = vld [vmem:[%s2405 + $0x8] sm:$0xf]
        %v2409 = vld [vmem:[%s2405 + $0xc] sm:$0xf]
        %v2410 = vld [vmem:[#allocation14 + $0x7] sm:$0x1]
        %v2415 = vunpack.c.l.b16 %v2406
        %v2416 = vunpack.c.l.b16 %v2407
        %v2417 = vunpack.c.l.b16 %v2408
        %v2418 = vunpack.c.l.b16 %v2409
        %v2419 = vpack.c.b16 %v2416, %v2415
        %v2420 = vpack.c.b16 %v2418, %v2417
        %v2424 = vsel %vm717, %v2404, 0
        %2426 = vmatprep.subr.bf16.mxu0 0
        %2427 = vmatpush1.bf16.msra.mxu0 0
        %2428 = vmatprep.subr.bf16.mxu0 0
        %2429 = vmatpush1.bf16.msra.mxu0 0
        %2430 = vmatprep.subr.bf16.mxu0 0
        %2431 = vmatpush1.bf16.msra.mxu0 0
        %2432 = vmatprep.subr.bf16.mxu0 0
        %2433 = vmatpush1.bf16.msra.mxu0 0
        %2434 = vmatprep.subr.bf16.mxu0 0
        %2435 = vmatpush1.bf16.msra.mxu0 0
        %2436 = vmatprep.subr.bf16.mxu0 0
        %2437 = vmatpush1.bf16.msra.mxu0 0
        %2438 = vmatprep.subr.bf16.mxu0 0
        %2439 = vmatpush1.bf16.msra.mxu0 %v2420
        %2440 = vmatprep.subr.bf16.mxu0 0
        %2441 = vmatpush1.bf16.msra.mxu0 %v2419
        %2442 = vmatprep.subr.bf16.mxu0 0
        %2443 = vmatpush2.bf16.msra.mxu0 0
        %2444 = vmatprep.subr.bf16.mxu0 0
        %2445 = vmatpush2.bf16.msra.mxu0 0
        %2446 = vmatprep.subr.bf16.mxu0 0
        %2447 = vmatpush2.bf16.msra.mxu0 0
        %2448 = vmatprep.subr.bf16.mxu0 0
        %2449 = vmatpush2.bf16.msra.mxu0 0
        %2450 = vmatprep.subr.bf16.mxu0 0
        %2451 = vmatpush2.bf16.msra.mxu0 0
        %2452 = vmatprep.subr.bf16.mxu0 0
        %2453 = vmatpush2.bf16.msra.mxu0 0
        %2454 = vmatprep.subr.bf16.mxu0 0
        %2455 = vmatpush2.bf16.msra.mxu0 0
        %2456 = vmatprep.subr.bf16.mxu0 0
        %2457 = vmatpush2.bf16.msra.mxu0 0
        %2458 = vmatprep.mubr.bf16.mxu0 0
        %2459 = vmatmul.mubr.bf16.gmra.mxu0 %v2424
        %v2460 = vpop.f32.mrf.mxu0
        %v2461 = vadd.f32 %v2410, %v2460
        %v2462 = vpop.f32.mrf.mxu0
        %v2463 = vpop.f32.mrf.mxu0
        %v2464 = vpop.f32.mrf.mxu0
        %2465 = vdwg.mxu0
        %v2466 = vadd.f32 %v2461, %v2102
        %v2467 = vsel %vm2087, %v2466, 0.0
        %2468 = vadd.xlane.f32.xlu0 %v2467
        %v2469 = vpop.xlane.xlu0 %2468
        %v2470 = vmul.f32 %v2469, %v974
        %v2471 = vsub.f32 %v2466, %v2470
        %v2472 = vmul.f32 %v2471, %v2471
        %v2473 = vsel %vm2087, %v2472, 0.0
        %2474 = vadd.xlane.f32.xlu0 %v2473
        %v2475 = vpop.xlane.xlu0 %2474
        %v2476 = vmul.f32 %v2475, %v974
        %v2477 = vadd.f32 %v2476, 1e-05
        %v2478 = vrsqrt.pop %v2477
        %v2479 = vmul.f32 %v2471, %v2478
        %v2480 = vmul.f32 %v2479, %v1726
        %v2481 = vadd.f32 %v2480, %v1727
        %v2482 = vpack.c.bf16 %v2481, %v2481
        %v2483 = vld [vmem:[%s12] sm:$0xf]
        %v2484 = vld [vmem:[%s12 + $0x4] sm:$0xf]
        %v2485 = vld [vmem:[%s12 + $0x8] sm:$0xf]
        %v2486 = vld [vmem:[%s12 + $0xc] sm:$0xf]
        %v2487 = vld [vmem:[%s13] sm:$0x1]
        %v2492 = vunpack.c.l.b16 %v2483
        %v2493 = vunpack.c.l.b16 %v2484
        %v2494 = vunpack.c.l.b16 %v2485
        %v2495 = vunpack.c.l.b16 %v2486
        %v2496 = vpack.c.b16 %v2493, %v2492
        %v2497 = vpack.c.b16 %v2495, %v2494
        %v2501 = vsel %vm717, %v2482, 0
        %2503 = vmatprep.subr.bf16.mxu0 0
        %2504 = vmatpush1.bf16.msra.mxu0 0
        %2505 = vmatprep.subr.bf16.mxu0 0
        %2506 = vmatpush1.bf16.msra.mxu0 0
        %2507 = vmatprep.subr.bf16.mxu0 0
        %2508 = vmatpush1.bf16.msra.mxu0 0
        %2509 = vmatprep.subr.bf16.mxu0 0
        %2510 = vmatpush1.bf16.msra.mxu0 0
        %2511 = vmatprep.subr.bf16.mxu0 0
        %2512 = vmatpush1.bf16.msra.mxu0 0
        %2513 = vmatprep.subr.bf16.mxu0 0
        %2514 = vmatpush1.bf16.msra.mxu0 0
        %2515 = vmatprep.subr.bf16.mxu0 0
        %2516 = vmatpush1.bf16.msra.mxu0 %v2497
        %2517 = vmatprep.subr.bf16.mxu0 0
        %2518 = vmatpush1.bf16.msra.mxu0 %v2496
        %2519 = vmatprep.subr.bf16.mxu0 0
        %2520 = vmatpush2.bf16.msra.mxu0 0
        %2521 = vmatprep.subr.bf16.mxu0 0
        %2522 = vmatpush2.bf16.msra.mxu0 0
        %2523 = vmatprep.subr.bf16.mxu0 0
        %2524 = vmatpush2.bf16.msra.mxu0 0
        %2525 = vmatprep.subr.bf16.mxu0 0
        %2526 = vmatpush2.bf16.msra.mxu0 0
        %2527 = vmatprep.subr.bf16.mxu0 0
        %2528 = vmatpush2.bf16.msra.mxu0 0
        %2529 = vmatprep.subr.bf16.mxu0 0
        %2530 = vmatpush2.bf16.msra.mxu0 0
        %2531 = vmatprep.subr.bf16.mxu0 0
        %2532 = vmatpush2.bf16.msra.mxu0 0
        %2533 = vmatprep.subr.bf16.mxu0 0
        %2534 = vmatpush2.bf16.msra.mxu0 0
        %2535 = vmatprep.mubr.bf16.mxu0 0
        %2536 = vmatmul.mubr.bf16.gmra.mxu0 %v2501
        %v2537 = vpop.f32.mrf.mxu0
        %v2538 = vadd.f32 %v2487, %v2537
        %v2539 = vpop.f32.mrf.mxu0
        %v2540 = vpop.f32.mrf.mxu0
        %v2541 = vpop.f32.mrf.mxu0
        %2542 = vdwg.mxu0
        %vm2543 = vcmask 122880
        %v2544 = vsel %vm2543, %v2538, -inf
        %2545 = vmax.xlane.f32.xlu0 %v2544
        %v2546 = vpop.xlane.xlu0 %2545
        %v2547 = vsub.f32 %v2538, %v2546
        %v2548 = vmul.f32 %v2547, 1.442695
        %v2549 = vpow.pop %v2548
        %v2550 = vsel %vm2543, %v2549, 0.0
        %2551 = vadd.xlane.f32.xlu0 %v2550
        %v2552 = vpop.xlane.xlu0 %2551
        %v2553 = vlog2.pop %v2552
        %v2554 = vmul.f32 %v2553, 0.6931472
        %v2555 = vsub.f32 %v2547, %v2554
        %2556 = vst.msk [vmem:[%s629] sm:$0x1] %vm2543, %v2555
        %2557 = vst.msk [vmem:[%s635] sm:$0x1] %vm2087, %v2481
        %s2558 = sand.u32 %s352, 1
        %s2559 = scalar_lea.sflag [#allocation4], %s2558
        %s2560 = sand.u32 %s352, 1
        %s2561 = scalar_lea.vmem [#allocation16], %s2560
        %s2562 = sand.u32 %s378, 1
        %s2563 = scalar_lea.sflag [#allocation18], %s2562
        %s2564 = sand.u32 %s378, 1
        %s2565 = scalar_lea.vmem [#allocation17], %s2564
        // Predicated region
        $region109: #{transformer_cross_attn_forward.1} parent=75 // pred_check
          %p2566 = pneg %p362
        $region110: #{transformer_cross_attn_forward.1} parent=75 // pred_check_branch
          %2568 = sbr.rel (%p2566) target = $region112
        $region111: #{transformer_cross_attn_forward.1} parent=75 // pred_region
          %s2570 = ssub.s32 16, 16
          %2571 = vsyncadd %s2559, %s2570
          %s2572 = smul.addr %s40, 16
          %s2573 = scalar_lea.hbm %s14, %s2572
          %s2575 = sshll.u32 %s2561, 4
          %s2576 = int_to_ptr.vmem [resolvable:$true] %s2575
          %2578 = dma.vmem_to_hbm [thread:$0]  %s2576, 16, %s2573, %s2559
        $region112: #{transformer_cross_attn_forward.1} parent=75 // pred_fallthru
          _
        // Predicated region
        $region113: #{transformer_cross_attn_forward.1} parent=75 // pred_check
          %p2579 = pneg %p388
        $region114: #{transformer_cross_attn_forward.1} parent=75 // pred_check_branch
          %2581 = sbr.rel (%p2579) target = $region116
        $region115: #{transformer_cross_attn_forward.1} parent=75 // pred_region
          %s2583 = ssub.s32 16, 16
          %2584 = vsyncadd %s2563, %s2583
          %s2585 = smul.addr %s40, 16
          %s2586 = scalar_lea.hbm %s15, %s2585
          %s2588 = sshll.u32 %s2565, 4
          %s2589 = int_to_ptr.vmem [resolvable:$true] %s2588
          %2591 = dma.vmem_to_hbm [thread:$0]  %s2589, 16, %s2586, %s2563
        $region116: #{transformer_cross_attn_forward.1} parent=75 // pred_fallthru
          _
      $region76: #{transformer_cross_attn_forward.1} parent=5 // pred_fallthru
        _
      %p2592 = scmp.le.s32.totalorder 2, %s35
      // Predicated region
      $region117: #{transformer_cross_attn_forward.1} parent=5 // pred_check
        %p2593 = pneg %p2592
      $region118: #{transformer_cross_attn_forward.1} parent=5 // pred_check_branch
        %2595 = sbr.rel (%p2593) target = $region120
      $region119: #{transformer_cross_attn_forward.1} parent=5 // pred_region
        %s2596 = ssub.s32 %s35, 2
        // Predicated region
        $region121: #{transformer_cross_attn_forward.1} parent=119 // pred_check
          %p2597 = pneg %p368
        $region122: #{transformer_cross_attn_forward.1} parent=119 // pred_check_branch
          %2599 = sbr.rel (%p2597) target = $region124
        $region123: #{transformer_cross_attn_forward.1} parent=119 // pred_region
          %s2600 = sand.u32 %s353, 1
          %s2601 = scalar_lea.sflag [#allocation4], %s2600
          %s2602 = sand.u32 %s353, 1
          %s2603 = scalar_lea.vmem [#allocation16], %s2602
          %2604 = dma.done %s2601, 16
        $region124: #{transformer_cross_attn_forward.1} parent=119 // pred_fallthru
          _
        // Predicated region
        $region125: #{transformer_cross_attn_forward.1} parent=119 // pred_check
          %p2605 = pneg %p394
        $region126: #{transformer_cross_attn_forward.1} parent=119 // pred_check_branch
          %2607 = sbr.rel (%p2605) target = $region128
        $region127: #{transformer_cross_attn_forward.1} parent=119 // pred_region
          %s2608 = sand.u32 %s379, 1
          %s2609 = scalar_lea.sflag [#allocation18], %s2608
          %s2610 = sand.u32 %s379, 1
          %s2611 = scalar_lea.vmem [#allocation17], %s2610
          %2612 = dma.done %s2609, 16
        $region128: #{transformer_cross_attn_forward.1} parent=119 // pred_fallthru
          _
      $region120: #{transformer_cross_attn_forward.1} parent=5 // pred_fallthru
        _
    $region6: #{transformer_cross_attn_forward.1} parent=1 // loop_footer
      %s39 = sadd.s32 1, %s35
    $region7: #{transformer_cross_attn_forward.1} parent=1 // loop_footer_branch
      %34 = sbr.rel target = $region3
    $region8: #{transformer_cross_attn_forward.1} parent=1 // loop_exit
      _
    %2613 = vsyncpa [#allocation3], 1
    %s2614 = scalar_lea.sflag [#allocation3], 1
    %2615 = vsyncpa %s2614, 1
    %2616 = vsyncpa [#allocation6], 1
    %2617 = vsyncpa [#allocation9], 1
    %2618 = vsyncpa [#allocation12], 1
    %2619 = vsyncpa [#allocation15], 1
    %2620 = vsyncpa [#allocation4], 1
    %s2621 = scalar_lea.sflag [#allocation4], 1
    %2622 = vsyncpa %s2621, 1
    %2623 = vsyncpa [#allocation18], 1
    %s2624 = scalar_lea.sflag [#allocation18], 1
    %2625 = vsyncpa %s2624, 1

</llo_original>
